<compile_context>
chip_gen: v6e
topology: v6e:2x2x1
jax: 0.10.0
libtpu: 0.0.40
codegen_flags: <defaults>
</compile_context>

<pallas_src>
import functools

import jax
import jax.numpy as jnp
from jax.experimental import pallas as pl
from jax.experimental.pallas import tpu as pltpu


def _decoder_layer_kernel(
    tgt_ref, mem_ref,
    w_qkv_ref, b_qkv_ref,        # self-attn fused QKV   (E, 3E), (1, 3E)
    w_cq_ref, b_cq_ref,          # cross-attn Q          (E, E),  (1, E)
    w_ckv_ref, b_ckv_ref,        # cross-attn fused KV   (E, 2E), (1, 2E)
    w_fc_ref, b_fc_ref,          # fc                    (E, E),  (1, E)
    g1_ref, be1_ref, g2_ref, be2_ref, g3_ref, be3_ref,   # LayerNorm affine, each (1, E)
    o_ref,                       # output                (S, E) for this batch element
    *, tgt_len, mem_len, num_heads, head_dim, ln_eps):
  S, M, H, D = tgt_len, mem_len, num_heads, head_dim
  E = H * D

  # Reference quirk: scores / head_dim**-0.5  ==  scores * sqrt(head_dim).
  inv_scaling = float(D) ** 0.5

  x = tgt_ref[...]              # (S, E), native dtype -> feeds the MXU directly
  mem = mem_ref[...]            # (M, E)
  in_dtype = x.dtype

  def layer_norm(y, g, b):      # y: (N, E) float32
    mu = jnp.mean(y, axis=-1, keepdims=True)
    yc = y - mu
    var = jnp.mean(yc * yc, axis=-1, keepdims=True)
    return yc * jax.lax.rsqrt(var + ln_eps) * g + b

  def mha(q2, k2, v2, sq, sk):
    """All heads of MHA for one batch element via head-batched MXU matmuls.

    q2: (sq, E) f32, k2/v2: (sk, E) f32 (projection accumulators).  Operands are cast
    to the input dtype for the MXU; accumulation is f32; softmax math stays f32.
    """
    qh = jnp.swapaxes(q2.reshape(sq, H, D), 0, 1).astype(in_dtype)   # (H, sq, D)
    kh = jnp.swapaxes(k2.reshape(sk, H, D), 0, 1).astype(in_dtype)   # (H, sk, D)
    vh = jnp.swapaxes(v2.reshape(sk, H, D), 0, 1).astype(in_dtype)   # (H, sk, D)

    s = jnp.einsum('hqd,hkd->hqk', qh, kh,
                   preferred_element_type=jnp.float32)               # (H, sq, sk) f32
    s = s * inv_scaling
    s = s - jnp.max(s, axis=-1, keepdims=True)
    p = jnp.exp(s)
    p = p / jnp.sum(p, axis=-1, keepdims=True)                       # exact divide

    ctx = jnp.einsum('hqk,hkd->hqd', p.astype(in_dtype), vh,
                     preferred_element_type=jnp.float32)             # (H, sq, D) f32
    return jnp.swapaxes(ctx, 0, 1).reshape(sq, E)                    # (sq, E) f32

  # ---- self attention: one fused QKV projection (single (E,3E)-wide MXU matmul) ----
  qkv = jnp.dot(x, w_qkv_ref[...], preferred_element_type=jnp.float32) + b_qkv_ref[...]
  sa = mha(qkv[:, :E], qkv[:, E:2 * E], qkv[:, 2 * E:], S, S)

  out1 = layer_norm(x.astype(jnp.float32) + sa, g1_ref[...], be1_ref[...])   # dropout1 = id

  # ---- encoder-decoder attention: Q from out1, fused K/V projection of memory ----
  qc = jnp.dot(out1.astype(in_dtype), w_cq_ref[...],
               preferred_element_type=jnp.float32) + b_cq_ref[...]
  kv = jnp.dot(mem, w_ckv_ref[...], preferred_element_type=jnp.float32) + b_ckv_ref[...]
  ca = mha(qc, kv[:, :E], kv[:, E:], S, M)

  out2 = layer_norm(out1 + ca, g2_ref[...], be2_ref[...])                    # dropout2 = id

  # ---- position-wise fc + residual + norm ----
  fc = jnp.dot(out2.astype(in_dtype), w_fc_ref[...],
               preferred_element_type=jnp.float32) + b_fc_ref[...]
  out3 = layer_norm(out2 + fc, g3_ref[...], be3_ref[...])                    # dropout3 = id

  o_ref[...] = out3.astype(o_ref.dtype)      # single contiguous (S, E) store


def transformer_decoder_layer(tgt, memory, params, *, num_heads, ln_eps=1e-5):
  """tgt: (B, S, E); memory: (B, M, E); params: dict of torch-layout tensors."""
  B, S, E = tgt.shape
  Bm, M, Em = memory.shape
  assert Bm == B and Em == E
  head_dim = E // num_heads
  assert head_dim * num_heads == E, "d_model must be divisible by n_heads"

  # --- fuse / transpose parameters once, outside the kernel (plain XLA) ---
  sa, ca, fc = params["self_attn"], params["cross_attn"], params["fc"]
  # torch nn.Linear stores W as (out, in); the kernel consumes W^T so y = x @ W^T + b.
  w_qkv = jnp.concatenate([sa["wq"].T, sa["wk"].T, sa["wv"].T], axis=1)     # (E, 3E)
  b_qkv = jnp.concatenate([sa["bq"], sa["bk"], sa["bv"]])[None, :]          # (1, 3E)
  w_cq, b_cq = ca["wq"].T, ca["bq"][None, :]                                # (E, E), (1, E)
  w_ckv = jnp.concatenate([ca["wk"].T, ca["wv"].T], axis=1)                 # (E, 2E)
  b_ckv = jnp.concatenate([ca["bk"], ca["bv"]])[None, :]                    # (1, 2E)
  w_fc, b_fc = fc["w"].T, fc["b"][None, :]
  ln = []
  for name in ("norm1", "norm2", "norm3"):
    ln += [params[name]["g"][None, :], params[name]["b"][None, :]]

  # 2-D, lane-dense views of the activations (reshape is free at the XLA level).
  tgt2 = tgt.reshape(B * S, E)
  mem2 = memory.reshape(B * M, E)

  kernel = functools.partial(
      _decoder_layer_kernel, tgt_len=S, mem_len=M,
      num_heads=num_heads, head_dim=head_dim, ln_eps=ln_eps)

  def _const_spec(arr):
    nd = arr.ndim
    # TODO(synk): at production E use pipeline_mode=pl.Buffered(1) here (constant block
    #             index => single-buffered weights) to halve weight VMEM residency on v7x.
    return pl.BlockSpec(arr.shape, lambda b, _nd=nd: (0,) * _nd)

  weight_ops = [w_qkv, b_qkv, w_cq, b_cq, w_ckv, b_ckv, w_fc, b_fc, *ln]

  out2d = pl.pallas_call(
      kernel,
      out_shape=jax.ShapeDtypeStruct((B * S, E), tgt.dtype),
      grid_spec=pltpu.PrefetchScalarGridSpec(
          num_scalar_prefetch=0,
          grid=(B,),                                   # one parallel step per batch element
          in_specs=[
              pl.BlockSpec((S, E), lambda b: (b, 0)),
              pl.BlockSpec((M, E), lambda b: (b, 0)),
              *[_const_spec(w) for w in weight_ops],
          ],
          out_specs=pl.BlockSpec((S, E), lambda b: (b, 0)),
      ),
      compiler_params=pltpu.CompilerParams(
          dimension_semantics=("parallel",),
          vmem_limit_bytes=32 * 1024 * 1024),
  )(tgt2, mem2, *weight_ops)

  return out2d.reshape(B, S, E)


# ----------------------------- pure-JAX reference ---------------------------------
def _mha_ref(q_in, kv_in, ap, num_heads):
  B, Sq, E = q_in.shape
  Sk = kv_in.shape[1]
  D = E // num_heads
  q = q_in @ ap["wq"].T + ap["bq"]
  k = kv_in @ ap["wk"].T + ap["bk"]
  v = kv_in @ ap["wv"].T + ap["bv"]
  q = q.reshape(B, Sq, num_heads, D).transpose(0, 2, 1, 3)
  k = k.reshape(B, Sk, num_heads, D).transpose(0, 2, 1, 3)
  v = v.reshape(B, Sk, num_heads, D).transpose(0, 2, 1, 3)
  scores = jnp.einsum("bhqd,bhkd->bhqk", q, k) / (D ** -0.5)   # same inverted-scaling quirk
  w = jax.nn.softmax(scores, axis=-1)
  ctx = jnp.einsum("bhqk,bhkd->bhqd", w, v)
  return ctx.transpose(0, 2, 1, 3).reshape(B, Sq, E)


def _decoder_layer_reference(tgt, memory, params, *, num_heads, ln_eps=1e-5):
  def layer_norm(x, name):
    g, b = params[name]["g"], params[name]["b"]
    mu = x.mean(-1, keepdims=True)
    var = ((x - mu) ** 2).mean(-1, keepdims=True)
    return (x - mu) / jnp.sqrt(var + ln_eps) * g + b

  sa = _mha_ref(tgt, tgt, params["self_attn"], num_heads)
  out1 = layer_norm(tgt + sa, "norm1")
  ca = _mha_ref(out1, memory, params["cross_attn"], num_heads)
  out2 = layer_norm(out1 + ca, "norm2")
  fc_out = out2 @ params["fc"]["w"].T + params["fc"]["b"]
  out3 = layer_norm(out2 + fc_out, "norm3")
  return out3


if __name__ == "__main__":
  # d_model=32, n_heads=8 -> head_dim=4; tgt seq=8, memory seq=8, batch=2.
  B, S, M, E, H = 2, 8, 8, 32, 8

  key = jax.random.PRNGKey(0)
  keys = iter(jax.random.split(key, 16))

  def linear_init(out_dim, in_dim):
    kw, kb = jax.random.split(next(keys))
    bound = 1.0 / (in_dim ** 0.5)
    return (jax.random.uniform(kw, (out_dim, in_dim), jnp.float32, -bound, bound),
            jax.random.uniform(kb, (out_dim,), jnp.float32, -bound, bound))

  def mha_init():
    wq, bq = linear_init(E, E)
    wk, bk = linear_init(E, E)
    wv, bv = linear_init(E, E)
    return {"wq": wq, "bq": bq, "wk": wk, "bk": bk, "wv": wv, "bv": bv}

  def norm_init():
    kg, kb = jax.random.split(next(keys))
    return {"g": 1.0 + 0.05 * jax.random.normal(kg, (E,), jnp.float32),
            "b": 0.05 * jax.random.normal(kb, (E,), jnp.float32)}

  params = {
      "self_attn": mha_init(),
      "cross_attn": mha_init(),
      "fc": dict(zip(("w", "b"), linear_init(E, E))),
      "norm1": norm_init(), "norm2": norm_init(), "norm3": norm_init(),
  }

  tgt = jax.random.normal(next(keys), (B, S, E), jnp.float32)
  memory = jax.random.normal(next(keys), (B, M, E), jnp.float32)

  out = transformer_decoder_layer(tgt, memory, params, num_heads=H)
  out = jax.block_until_ready(out)

  with jax.default_matmul_precision("highest"):
    ref = _decoder_layer_reference(tgt, memory, params, num_heads=H)

  assert out.shape == (B, S, E)
  # Tolerance covers default (non-"highest") MXU matmul precision inside the kernel.
  assert jnp.allclose(out, ref, atol=2e-2, rtol=2e-2), float(jnp.max(jnp.abs(out - ref)))

  print("KERNEL_OK")
</pallas_src>

<mosaic_0001>
module attributes {stable_mosaic.version = 11 : i64} {
  func.func @_decoder_layer_kernel(%arg0: i32, %arg1: memref<8x32xf32, #tpu.memory_space<vmem>>, %arg2: memref<8x32xf32, #tpu.memory_space<vmem>>, %arg3: memref<32x96xf32, #tpu.memory_space<vmem>>, %arg4: memref<1x96xf32, #tpu.memory_space<vmem>>, %arg5: memref<32x32xf32, #tpu.memory_space<vmem>>, %arg6: memref<1x32xf32, #tpu.memory_space<vmem>>, %arg7: memref<32x64xf32, #tpu.memory_space<vmem>>, %arg8: memref<1x64xf32, #tpu.memory_space<vmem>>, %arg9: memref<32x32xf32, #tpu.memory_space<vmem>>, %arg10: memref<1x32xf32, #tpu.memory_space<vmem>>, %arg11: memref<1x32xf32, #tpu.memory_space<vmem>>, %arg12: memref<1x32xf32, #tpu.memory_space<vmem>>, %arg13: memref<1x32xf32, #tpu.memory_space<vmem>>, %arg14: memref<1x32xf32, #tpu.memory_space<vmem>>, %arg15: memref<1x32xf32, #tpu.memory_space<vmem>>, %arg16: memref<1x32xf32, #tpu.memory_space<vmem>>, %arg17: memref<8x32xf32, #tpu.memory_space<vmem>>) attributes {dimension_semantics = [#tpu.dimension_semantics<parallel>], iteration_bounds = array<i64: 2>, scalar_prefetch = 0 : i64, scratch_operands = 0 : i64, tpu.core_type = #tpu.core_type<tc>, window_params = [{transform_indices = @transform_0, window_bounds = array<i64: 8, 32>}, {transform_indices = @transform_1, window_bounds = array<i64: 8, 32>}, {pipeline_mode = #tpu.pipeline_mode<synchronous>, transform_indices = @transform_2, window_bounds = array<i64: 32, 96>}, {pipeline_mode = #tpu.pipeline_mode<synchronous>, transform_indices = @transform_3, window_bounds = array<i64: 1, 96>}, {pipeline_mode = #tpu.pipeline_mode<synchronous>, transform_indices = @transform_4, window_bounds = array<i64: 32, 32>}, {pipeline_mode = #tpu.pipeline_mode<synchronous>, transform_indices = @transform_5, window_bounds = array<i64: 1, 32>}, {pipeline_mode = #tpu.pipeline_mode<synchronous>, transform_indices = @transform_6, window_bounds = array<i64: 32, 64>}, {pipeline_mode = #tpu.pipeline_mode<synchronous>, transform_indices = @transform_7, window_bounds = array<i64: 1, 64>}, {pipeline_mode = #tpu.pipeline_mode<synchronous>, transform_indices = @transform_8, window_bounds = array<i64: 32, 32>}, {pipeline_mode = #tpu.pipeline_mode<synchronous>, transform_indices = @transform_9, window_bounds = array<i64: 1, 32>}, {pipeline_mode = #tpu.pipeline_mode<synchronous>, transform_indices = @transform_10, window_bounds = array<i64: 1, 32>}, {pipeline_mode = #tpu.pipeline_mode<synchronous>, transform_indices = @transform_11, window_bounds = array<i64: 1, 32>}, {pipeline_mode = #tpu.pipeline_mode<synchronous>, transform_indices = @transform_12, window_bounds = array<i64: 1, 32>}, {pipeline_mode = #tpu.pipeline_mode<synchronous>, transform_indices = @transform_13, window_bounds = array<i64: 1, 32>}, {pipeline_mode = #tpu.pipeline_mode<synchronous>, transform_indices = @transform_14, window_bounds = array<i64: 1, 32>}, {pipeline_mode = #tpu.pipeline_mode<synchronous>, transform_indices = @transform_15, window_bounds = array<i64: 1, 32>}, {transform_indices = @transform_16, window_bounds = array<i64: 8, 32>}]} {
    %c0 = arith.constant 0 : index
    %c0_0 = arith.constant 0 : index
    %0 = vector.load %arg1[%c0, %c0_0] : memref<8x32xf32, #tpu.memory_space<vmem>>, vector<8x32xf32>
    %c0_1 = arith.constant 0 : index
    %c0_2 = arith.constant 0 : index
    %1 = vector.load %arg2[%c0_1, %c0_2] : memref<8x32xf32, #tpu.memory_space<vmem>>, vector<8x32xf32>
    %c0_3 = arith.constant 0 : index
    %c0_4 = arith.constant 0 : index
    %2 = vector.load %arg3[%c0_3, %c0_4] : memref<32x96xf32, #tpu.memory_space<vmem>>, vector<32x96xf32>
    %cst = arith.constant dense<0.000000e+00> : vector<8x96xf32>
    %3 = tpu.matmul %0, %2, %cst {dimension_numbers = #tpu.dot_dimension_numbers<[1], [0], [0], [1], [0, 0, 1, 1], [], []>} : vector<8x32xf32>, vector<32x96xf32>, vector<8x96xf32> -> vector<8x96xf32>
    %c0_5 = arith.constant 0 : index
    %c0_6 = arith.constant 0 : index
    %4 = vector.load %arg4[%c0_5, %c0_6] : memref<1x96xf32, #tpu.memory_space<vmem>>, vector<1x96xf32>
    %5 = vector.broadcast %4 : vector<1x96xf32> to vector<8x96xf32>
    %6 = arith.addf %3, %5 : vector<8x96xf32>
    %7 = vector.extract_strided_slice %6 {offsets = [0, 0], sizes = [8, 32], strides = [1, 1]} : vector<8x96xf32> to vector<8x32xf32>
    %8 = vector.extract_strided_slice %6 {offsets = [0, 32], sizes = [8, 32], strides = [1, 1]} : vector<8x96xf32> to vector<8x32xf32>
    %9 = vector.extract_strided_slice %6 {offsets = [0, 64], sizes = [8, 32], strides = [1, 1]} : vector<8x96xf32> to vector<8x32xf32>
    %10 = vector.shape_cast %7 : vector<8x32xf32> to vector<8x8x4xf32>
    %11 = tpu.transpose %10, [1, 0, 2] : vector<8x8x4xf32> -> vector<8x8x4xf32>
    %12 = vector.shape_cast %8 : vector<8x32xf32> to vector<8x8x4xf32>
    %13 = tpu.transpose %12, [1, 0, 2] : vector<8x8x4xf32> -> vector<8x8x4xf32>
    %14 = vector.shape_cast %9 : vector<8x32xf32> to vector<8x8x4xf32>
    %15 = tpu.transpose %14, [1, 0, 2] : vector<8x8x4xf32> -> vector<8x8x4xf32>
    "tpu.trace_start"() <{level = 10 : i32, message = "hqd,hkd->hqk"}> : () -> ()
    %cst_7 = arith.constant dense<0.000000e+00> : vector<8x8x8xf32>
    %16 = tpu.matmul %11, %13, %cst_7 {dimension_numbers = #tpu.dot_dimension_numbers<[2], [2], [1], [1], [0, 0, 0, 1, 1, 1], [0], [0]>} : vector<8x8x4xf32>, vector<8x8x4xf32>, vector<8x8x8xf32> -> vector<8x8x8xf32>
    "tpu.trace_stop"() : () -> ()
    %cst_8 = arith.constant 2.000000e+00 : f32
    %17 = vector.broadcast %cst_8 : f32 to vector<8x8x8xf32>
    %18 = arith.mulf %16, %17 : vector<8x8x8xf32>
    %cst_9 = arith.constant dense<0xFF800000> : vector<8x8xf32>
    %19 = vector.multi_reduction <maximumf>, %18, %cst_9 [2] : vector<8x8x8xf32> to vector<8x8xf32>
    %20 = vector.shape_cast %19 : vector<8x8xf32> to vector<8x8x1xf32>
    %21 = vector.broadcast %20 : vector<8x8x1xf32> to vector<8x8x8xf32>
    %22 = arith.subf %18, %21 : vector<8x8x8xf32>
    %23 = math.exp %22 : vector<8x8x8xf32>
    %cst_10 = arith.constant dense<0.000000e+00> : vector<8x8xf32>
    %24 = vector.multi_reduction <add>, %23, %cst_10 [2] : vector<8x8x8xf32> to vector<8x8xf32>
    %25 = vector.shape_cast %24 : vector<8x8xf32> to vector<8x8x1xf32>
    %26 = vector.broadcast %25 : vector<8x8x1xf32> to vector<8x8x8xf32>
    %27 = arith.divf %23, %26 : vector<8x8x8xf32>
    "tpu.trace_start"() <{level = 10 : i32, message = "hqk,hkd->hqd"}> : () -> ()
    %cst_11 = arith.constant dense<0.000000e+00> : vector<8x8x4xf32>
    %28 = tpu.matmul %27, %15, %cst_11 {dimension_numbers = #tpu.dot_dimension_numbers<[2], [1], [1], [2], [0, 0, 0, 1, 1, 2], [0], [0]>} : vector<8x8x8xf32>, vector<8x8x4xf32>, vector<8x8x4xf32> -> vector<8x8x4xf32>
    "tpu.trace_stop"() : () -> ()
    %29 = tpu.transpose %28, [1, 0, 2] : vector<8x8x4xf32> -> vector<8x8x4xf32>
    %30 = vector.shape_cast %29 : vector<8x8x4xf32> to vector<8x32xf32>
    %31 = arith.addf %0, %30 : vector<8x32xf32>
    %c0_12 = arith.constant 0 : index
    %c0_13 = arith.constant 0 : index
    %32 = vector.load %arg11[%c0_12, %c0_13] : memref<1x32xf32, #tpu.memory_space<vmem>>, vector<1x32xf32>
    %c0_14 = arith.constant 0 : index
    %c0_15 = arith.constant 0 : index
    %33 = vector.load %arg12[%c0_14, %c0_15] : memref<1x32xf32, #tpu.memory_space<vmem>>, vector<1x32xf32>
    %cst_16 = arith.constant dense<0.000000e+00> : vector<8xf32>
    %34 = vector.multi_reduction <add>, %31, %cst_16 [1] : vector<8x32xf32> to vector<8xf32>
    %35 = vector.shape_cast %34 : vector<8xf32> to vector<8x1xf32>
    %cst_17 = arith.constant 3.200000e+01 : f32
    %36 = vector.broadcast %cst_17 : f32 to vector<8x1xf32>
    %37 = arith.divf %35, %36 : vector<8x1xf32>
    %38 = vector.broadcast %37 : vector<8x1xf32> to vector<8x32xf32>
    %39 = arith.subf %31, %38 : vector<8x32xf32>
    %40 = arith.mulf %39, %39 : vector<8x32xf32>
    %cst_18 = arith.constant dense<0.000000e+00> : vector<8xf32>
    %41 = vector.multi_reduction <add>, %40, %cst_18 [1] : vector<8x32xf32> to vector<8xf32>
    %42 = vector.shape_cast %41 : vector<8xf32> to vector<8x1xf32>
    %cst_19 = arith.constant 3.200000e+01 : f32
    %43 = vector.broadcast %cst_19 : f32 to vector<8x1xf32>
    %44 = arith.divf %42, %43 : vector<8x1xf32>
    %cst_20 = arith.constant 9.99999974E-6 : f32
    %45 = vector.broadcast %cst_20 : f32 to vector<8x1xf32>
    %46 = arith.addf %44, %45 : vector<8x1xf32>
    %47 = math.rsqrt %46 : vector<8x1xf32>
    %48 = vector.broadcast %47 : vector<8x1xf32> to vector<8x32xf32>
    %49 = arith.mulf %39, %48 : vector<8x32xf32>
    %50 = vector.broadcast %32 : vector<1x32xf32> to vector<8x32xf32>
    %51 = arith.mulf %49, %50 : vector<8x32xf32>
    %52 = vector.broadcast %33 : vector<1x32xf32> to vector<8x32xf32>
    %53 = arith.addf %51, %52 : vector<8x32xf32>
    %c0_21 = arith.constant 0 : index
    %c0_22 = arith.constant 0 : index
    %54 = vector.load %arg5[%c0_21, %c0_22] : memref<32x32xf32, #tpu.memory_space<vmem>>, vector<32x32xf32>
    %cst_23 = arith.constant dense<0.000000e+00> : vector<8x32xf32>
    %55 = tpu.matmul %53, %54, %cst_23 {dimension_numbers = #tpu.dot_dimension_numbers<[1], [0], [0], [1], [0, 0, 1, 1], [], []>} : vector<8x32xf32>, vector<32x32xf32>, vector<8x32xf32> -> vector<8x32xf32>
    %c0_24 = arith.constant 0 : index
    %c0_25 = arith.constant 0 : index
    %56 = vector.load %arg6[%c0_24, %c0_25] : memref<1x32xf32, #tpu.memory_space<vmem>>, vector<1x32xf32>
    %57 = vector.broadcast %56 : vector<1x32xf32> to vector<8x32xf32>
    %58 = arith.addf %55, %57 : vector<8x32xf32>
    %c0_26 = arith.constant 0 : index
    %c0_27 = arith.constant 0 : index
    %59 = vector.load %arg7[%c0_26, %c0_27] : memref<32x64xf32, #tpu.memory_space<vmem>>, vector<32x64xf32>
    %cst_28 = arith.constant dense<0.000000e+00> : vector<8x64xf32>
    %60 = tpu.matmul %1, %59, %cst_28 {dimension_numbers = #tpu.dot_dimension_numbers<[1], [0], [0], [1], [0, 0, 1, 1], [], []>} : vector<8x32xf32>, vector<32x64xf32>, vector<8x64xf32> -> vector<8x64xf32>
    %c0_29 = arith.constant 0 : index
    %c0_30 = arith.constant 0 : index
    %61 = vector.load %arg8[%c0_29, %c0_30] : memref<1x64xf32, #tpu.memory_space<vmem>>, vector<1x64xf32>
    %62 = vector.broadcast %61 : vector<1x64xf32> to vector<8x64xf32>
    %63 = arith.addf %60, %62 : vector<8x64xf32>
    %64 = vector.extract_strided_slice %63 {offsets = [0, 0], sizes = [8, 32], strides = [1, 1]} : vector<8x64xf32> to vector<8x32xf32>
    %65 = vector.extract_strided_slice %63 {offsets = [0, 32], sizes = [8, 32], strides = [1, 1]} : vector<8x64xf32> to vector<8x32xf32>
    %66 = vector.shape_cast %58 : vector<8x32xf32> to vector<8x8x4xf32>
    %67 = tpu.transpose %66, [1, 0, 2] : vector<8x8x4xf32> -> vector<8x8x4xf32>
    %68 = vector.shape_cast %64 : vector<8x32xf32> to vector<8x8x4xf32>
    %69 = tpu.transpose %68, [1, 0, 2] : vector<8x8x4xf32> -> vector<8x8x4xf32>
    %70 = vector.shape_cast %65 : vector<8x32xf32> to vector<8x8x4xf32>
    %71 = tpu.transpose %70, [1, 0, 2] : vector<8x8x4xf32> -> vector<8x8x4xf32>
    "tpu.trace_start"() <{level = 10 : i32, message = "hqd,hkd->hqk"}> : () -> ()
    %cst_31 = arith.constant dense<0.000000e+00> : vector<8x8x8xf32>
    %72 = tpu.matmul %67, %69, %cst_31 {dimension_numbers = #tpu.dot_dimension_numbers<[2], [2], [1], [1], [0, 0, 0, 1, 1, 1], [0], [0]>} : vector<8x8x4xf32>, vector<8x8x4xf32>, vector<8x8x8xf32> -> vector<8x8x8xf32>
    "tpu.trace_stop"() : () -> ()
    %cst_32 = arith.constant 2.000000e+00 : f32
    %73 = vector.broadcast %cst_32 : f32 to vector<8x8x8xf32>
    %74 = arith.mulf %72, %73 : vector<8x8x8xf32>
    %cst_33 = arith.constant dense<0xFF800000> : vector<8x8xf32>
    %75 = vector.multi_reduction <maximumf>, %74, %cst_33 [2] : vector<8x8x8xf32> to vector<8x8xf32>
    %76 = vector.shape_cast %75 : vector<8x8xf32> to vector<8x8x1xf32>
    %77 = vector.broadcast %76 : vector<8x8x1xf32> to vector<8x8x8xf32>
    %78 = arith.subf %74, %77 : vector<8x8x8xf32>
    %79 = math.exp %78 : vector<8x8x8xf32>
    %cst_34 = arith.constant dense<0.000000e+00> : vector<8x8xf32>
    %80 = vector.multi_reduction <add>, %79, %cst_34 [2] : vector<8x8x8xf32> to vector<8x8xf32>
    %81 = vector.shape_cast %80 : vector<8x8xf32> to vector<8x8x1xf32>
    %82 = vector.broadcast %81 : vector<8x8x1xf32> to vector<8x8x8xf32>
    %83 = arith.divf %79, %82 : vector<8x8x8xf32>
    "tpu.trace_start"() <{level = 10 : i32, message = "hqk,hkd->hqd"}> : () -> ()
    %cst_35 = arith.constant dense<0.000000e+00> : vector<8x8x4xf32>
    %84 = tpu.matmul %83, %71, %cst_35 {dimension_numbers = #tpu.dot_dimension_numbers<[2], [1], [1], [2], [0, 0, 0, 1, 1, 2], [0], [0]>} : vector<8x8x8xf32>, vector<8x8x4xf32>, vector<8x8x4xf32> -> vector<8x8x4xf32>
    "tpu.trace_stop"() : () -> ()
    %85 = tpu.transpose %84, [1, 0, 2] : vector<8x8x4xf32> -> vector<8x8x4xf32>
    %86 = vector.shape_cast %85 : vector<8x8x4xf32> to vector<8x32xf32>
    %87 = arith.addf %53, %86 : vector<8x32xf32>
    %c0_36 = arith.constant 0 : index
    %c0_37 = arith.constant 0 : index
    %88 = vector.load %arg13[%c0_36, %c0_37] : memref<1x32xf32, #tpu.memory_space<vmem>>, vector<1x32xf32>
    %c0_38 = arith.constant 0 : index
    %c0_39 = arith.constant 0 : index
    %89 = vector.load %arg14[%c0_38, %c0_39] : memref<1x32xf32, #tpu.memory_space<vmem>>, vector<1x32xf32>
    %cst_40 = arith.constant dense<0.000000e+00> : vector<8xf32>
    %90 = vector.multi_reduction <add>, %87, %cst_40 [1] : vector<8x32xf32> to vector<8xf32>
    %91 = vector.shape_cast %90 : vector<8xf32> to vector<8x1xf32>
    %cst_41 = arith.constant 3.200000e+01 : f32
    %92 = vector.broadcast %cst_41 : f32 to vector<8x1xf32>
    %93 = arith.divf %91, %92 : vector<8x1xf32>
    %94 = vector.broadcast %93 : vector<8x1xf32> to vector<8x32xf32>
    %95 = arith.subf %87, %94 : vector<8x32xf32>
    %96 = arith.mulf %95, %95 : vector<8x32xf32>
    %cst_42 = arith.constant dense<0.000000e+00> : vector<8xf32>
    %97 = vector.multi_reduction <add>, %96, %cst_42 [1] : vector<8x32xf32> to vector<8xf32>
    %98 = vector.shape_cast %97 : vector<8xf32> to vector<8x1xf32>
    %cst_43 = arith.constant 3.200000e+01 : f32
    %99 = vector.broadcast %cst_43 : f32 to vector<8x1xf32>
    %100 = arith.divf %98, %99 : vector<8x1xf32>
    %cst_44 = arith.constant 9.99999974E-6 : f32
    %101 = vector.broadcast %cst_44 : f32 to vector<8x1xf32>
    %102 = arith.addf %100, %101 : vector<8x1xf32>
    %103 = math.rsqrt %102 : vector<8x1xf32>
    %104 = vector.broadcast %103 : vector<8x1xf32> to vector<8x32xf32>
    %105 = arith.mulf %95, %104 : vector<8x32xf32>
    %106 = vector.broadcast %88 : vector<1x32xf32> to vector<8x32xf32>
    %107 = arith.mulf %105, %106 : vector<8x32xf32>
    %108 = vector.broadcast %89 : vector<1x32xf32> to vector<8x32xf32>
    %109 = arith.addf %107, %108 : vector<8x32xf32>
    %c0_45 = arith.constant 0 : index
    %c0_46 = arith.constant 0 : index
    %110 = vector.load %arg9[%c0_45, %c0_46] : memref<32x32xf32, #tpu.memory_space<vmem>>, vector<32x32xf32>
    %cst_47 = arith.constant dense<0.000000e+00> : vector<8x32xf32>
    %111 = tpu.matmul %109, %110, %cst_47 {dimension_numbers = #tpu.dot_dimension_numbers<[1], [0], [0], [1], [0, 0, 1, 1], [], []>} : vector<8x32xf32>, vector<32x32xf32>, vector<8x32xf32> -> vector<8x32xf32>
    %c0_48 = arith.constant 0 : index
    %c0_49 = arith.constant 0 : index
    %112 = vector.load %arg10[%c0_48, %c0_49] : memref<1x32xf32, #tpu.memory_space<vmem>>, vector<1x32xf32>
    %113 = vector.broadcast %112 : vector<1x32xf32> to vector<8x32xf32>
    %114 = arith.addf %111, %113 : vector<8x32xf32>
    %115 = arith.addf %109, %114 : vector<8x32xf32>
    %c0_50 = arith.constant 0 : index
    %c0_51 = arith.constant 0 : index
    %116 = vector.load %arg15[%c0_50, %c0_51] : memref<1x32xf32, #tpu.memory_space<vmem>>, vector<1x32xf32>
    %c0_52 = arith.constant 0 : index
    %c0_53 = arith.constant 0 : index
    %117 = vector.load %arg16[%c0_52, %c0_53] : memref<1x32xf32, #tpu.memory_space<vmem>>, vector<1x32xf32>
    %cst_54 = arith.constant dense<0.000000e+00> : vector<8xf32>
    %118 = vector.multi_reduction <add>, %115, %cst_54 [1] : vector<8x32xf32> to vector<8xf32>
    %119 = vector.shape_cast %118 : vector<8xf32> to vector<8x1xf32>
    %cst_55 = arith.constant 3.200000e+01 : f32
    %120 = vector.broadcast %cst_55 : f32 to vector<8x1xf32>
    %121 = arith.divf %119, %120 : vector<8x1xf32>
    %122 = vector.broadcast %121 : vector<8x1xf32> to vector<8x32xf32>
    %123 = arith.subf %115, %122 : vector<8x32xf32>
    %124 = arith.mulf %123, %123 : vector<8x32xf32>
    %cst_56 = arith.constant dense<0.000000e+00> : vector<8xf32>
    %125 = vector.multi_reduction <add>, %124, %cst_56 [1] : vector<8x32xf32> to vector<8xf32>
    %126 = vector.shape_cast %125 : vector<8xf32> to vector<8x1xf32>
    %cst_57 = arith.constant 3.200000e+01 : f32
    %127 = vector.broadcast %cst_57 : f32 to vector<8x1xf32>
    %128 = arith.divf %126, %127 : vector<8x1xf32>
    %cst_58 = arith.constant 9.99999974E-6 : f32
    %129 = vector.broadcast %cst_58 : f32 to vector<8x1xf32>
    %130 = arith.addf %128, %129 : vector<8x1xf32>
    %131 = math.rsqrt %130 : vector<8x1xf32>
    %132 = vector.broadcast %131 : vector<8x1xf32> to vector<8x32xf32>
    %133 = arith.mulf %123, %132 : vector<8x32xf32>
    %134 = vector.broadcast %116 : vector<1x32xf32> to vector<8x32xf32>
    %135 = arith.mulf %133, %134 : vector<8x32xf32>
    %136 = vector.broadcast %117 : vector<1x32xf32> to vector<8x32xf32>
    %137 = arith.addf %135, %136 : vector<8x32xf32>
    %c0_59 = arith.constant 0 : index
    %c0_60 = arith.constant 0 : index
    %138 = vector.load %arg17[%c0_59, %c0_60] : memref<8x32xf32, #tpu.memory_space<vmem>>, vector<8x32xf32>
    tpu.vector_store %arg17[%c0_59, %c0_60], %137 {strides = array<i32>} : memref<8x32xf32, #tpu.memory_space<vmem>>, vector<8x32xf32>,
    return
  }
  func.func @transform_0(%arg0: i32) -> (i32, i32) {
    %c0_i32 = arith.constant 0 : i32
    %c0_i32_0 = arith.constant 0 : i32
    return %arg0, %c0_i32 : i32, i32
  }
  func.func @transform_1(%arg0: i32) -> (i32, i32) {
    %c0_i32 = arith.constant 0 : i32
    %c0_i32_0 = arith.constant 0 : i32
    return %arg0, %c0_i32 : i32, i32
  }
  func.func @transform_2(%arg0: i32) -> (i32, i32) {
    %c0_i32 = arith.constant 0 : i32
    %c0_i32_0 = arith.constant 0 : i32
    %c0_i32_1 = arith.constant 0 : i32
    return %c0_i32, %c0_i32_0 : i32, i32
  }
  func.func @transform_3(%arg0: i32) -> (i32, i32) {
    %c0_i32 = arith.constant 0 : i32
    %c0_i32_0 = arith.constant 0 : i32
    %c0_i32_1 = arith.constant 0 : i32
    return %c0_i32, %c0_i32_0 : i32, i32
  }
  func.func @transform_4(%arg0: i32) -> (i32, i32) {
    %c0_i32 = arith.constant 0 : i32
    %c0_i32_0 = arith.constant 0 : i32
    %c0_i32_1 = arith.constant 0 : i32
    return %c0_i32, %c0_i32_0 : i32, i32
  }
  func.func @transform_5(%arg0: i32) -> (i32, i32) {
    %c0_i32 = arith.constant 0 : i32
    %c0_i32_0 = arith.constant 0 : i32
    %c0_i32_1 = arith.constant 0 : i32
    return %c0_i32, %c0_i32_0 : i32, i32
  }
  func.func @transform_6(%arg0: i32) -> (i32, i32) {
    %c0_i32 = arith.constant 0 : i32
    %c0_i32_0 = arith.constant 0 : i32
    %c0_i32_1 = arith.constant 0 : i32
    return %c0_i32, %c0_i32_0 : i32, i32
  }
  func.func @transform_7(%arg0: i32) -> (i32, i32) {
    %c0_i32 = arith.constant 0 : i32
    %c0_i32_0 = arith.constant 0 : i32
    %c0_i32_1 = arith.constant 0 : i32
    return %c0_i32, %c0_i32_0 : i32, i32
  }
  func.func @transform_8(%arg0: i32) -> (i32, i32) {
    %c0_i32 = arith.constant 0 : i32
    %c0_i32_0 = arith.constant 0 : i32
    %c0_i32_1 = arith.constant 0 : i32
    return %c0_i32, %c0_i32_0 : i32, i32
  }
  func.func @transform_9(%arg0: i32) -> (i32, i32) {
    %c0_i32 = arith.constant 0 : i32
    %c0_i32_0 = arith.constant 0 : i32
    %c0_i32_1 = arith.constant 0 : i32
    return %c0_i32, %c0_i32_0 : i32, i32
  }
  func.func @transform_10(%arg0: i32) -> (i32, i32) {
    %c0_i32 = arith.constant 0 : i32
    %c0_i32_0 = arith.constant 0 : i32
    %c0_i32_1 = arith.constant 0 : i32
    return %c0_i32, %c0_i32_0 : i32, i32
  }
  func.func @transform_11(%arg0: i32) -> (i32, i32) {
    %c0_i32 = arith.constant 0 : i32
    %c0_i32_0 = arith.constant 0 : i32
    %c0_i32_1 = arith.constant 0 : i32
    return %c0_i32, %c0_i32_0 : i32, i32
  }
  func.func @transform_12(%arg0: i32) -> (i32, i32) {
    %c0_i32 = arith.constant 0 : i32
    %c0_i32_0 = arith.constant 0 : i32
    %c0_i32_1 = arith.constant 0 : i32
    return %c0_i32, %c0_i32_0 : i32, i32
  }
  func.func @transform_13(%arg0: i32) -> (i32, i32) {
    %c0_i32 = arith.constant 0 : i32
    %c0_i32_0 = arith.constant 0 : i32
    %c0_i32_1 = arith.constant 0 : i32
    return %c0_i32, %c0_i32_0 : i32, i32
  }
  func.func @transform_14(%arg0: i32) -> (i32, i32) {
    %c0_i32 = arith.constant 0 : i32
    %c0_i32_0 = arith.constant 0 : i32
    %c0_i32_1 = arith.constant 0 : i32
    return %c0_i32, %c0_i32_0 : i32, i32
  }
  func.func @transform_15(%arg0: i32) -> (i32, i32) {
    %c0_i32 = arith.constant 0 : i32
    %c0_i32_0 = arith.constant 0 : i32
    %c0_i32_1 = arith.constant 0 : i32
    return %c0_i32, %c0_i32_0 : i32, i32
  }
  func.func @transform_16(%arg0: i32) -> (i32, i32) {
    %c0_i32 = arith.constant 0 : i32
    %c0_i32_0 = arith.constant 0 : i32
    return %arg0, %c0_i32 : i32, i32
  }
}

</mosaic_0001>

<llo_original>
// kernel: tpu_custom_call.1
$region0: #{tpu_custom_call.1}
  #allocation0 [shape = 'u32[]', space=smem, size = 0x4, offset = 0x4, fixed_abs, tag = 'smem constant byte address 0x4 - core index']
  #allocation1 [shape = 'u32[144,128]{1,0:T(1,128)}', space=vmem, size = 0x12000, scoped, tag = 'internal scratch']
  %s0 = inlined_call_operand.hbm [shape: f32[16,32], index: 0, kind: input, shape index: {}]
  %s1 = inlined_call_operand.hbm [shape: f32[16,32], index: 1, kind: input, shape index: {}]
  %s2 = inlined_call_operand.hbm [shape: f32[32,96], index: 2, kind: input, shape index: {}]
  %s3 = inlined_call_operand.vmem [shape: f32[1,96], index: 3, kind: input, shape index: {}]
  %s4 = inlined_call_operand.hbm [shape: f32[32,32], index: 4, kind: input, shape index: {}]
  %s5 = inlined_call_operand.vmem [shape: f32[1,32], index: 5, kind: input, shape index: {}]
  %s6 = inlined_call_operand.hbm [shape: f32[32,64], index: 6, kind: input, shape index: {}]
  %s7 = inlined_call_operand.vmem [shape: f32[1,64], index: 7, kind: input, shape index: {}]
  %s8 = inlined_call_operand.hbm [shape: f32[32,32], index: 8, kind: input, shape index: {}]
  %s9 = inlined_call_operand.vmem [shape: f32[1,32], index: 9, kind: input, shape index: {}]
  %s10 = inlined_call_operand.vmem [shape: f32[1,32], index: 10, kind: input, shape index: {}]
  %s11 = inlined_call_operand.vmem [shape: f32[1,32], index: 11, kind: input, shape index: {}]
  %s12 = inlined_call_operand.vmem [shape: f32[1,32], index: 12, kind: input, shape index: {}]
  %s13 = inlined_call_operand.vmem [shape: f32[1,32], index: 13, kind: input, shape index: {}]
  %s14 = inlined_call_operand.vmem [shape: f32[1,32], index: 14, kind: input, shape index: {}]
  %s15 = inlined_call_operand.vmem [shape: f32[1,32], index: 15, kind: input, shape index: {}]
  %s16 = inlined_call_operand.hbm [shape: f32[16,32], index: 16, kind: output, shape index: {}]
  %s17 = sld [smem:[#allocation0]]
  $region121: #{tpu_custom_call.1} parent=0
    _
  %s19 = ssub.s32 1, %s17
  %s20 = scalar_select 0, %s19, %s17
  $region1: #{tpu_custom_call.1} parent=0
    #allocation2 [shape = 'u8[8192]{0}', space=vmem, size = 0x2000, scoped, tag = 'input window, operand 0']
    #allocation3 [shape = 's32[2]{0}', space=sflag, size = 0x8, scoped, tag = 'scoped memory for tpu_custom_call.1']
    #allocation4 [shape = 's32[2]{0}', space=sflag, size = 0x8, scoped, tag = 'scoped memory for tpu_custom_call.1']
    #allocation5 [shape = 'u8[8192]{0}', space=vmem, size = 0x2000, scoped, tag = 'input window, operand 1']
    #allocation6 [shape = 's32[2]{0}', space=sflag, size = 0x8, scoped, tag = 'scoped memory for tpu_custom_call.1']
    #allocation7 [shape = 'u8[16384]{0}', space=vmem, size = 0x4000, scoped, tag = 'input window, operand 2, single buffered']
    #allocation8 [shape = 'u8[16384]{0}', space=vmem, size = 0x4000, scoped, tag = 'input window, operand 4, single buffered']
    #allocation9 [shape = 's32[1]{0}', space=sflag, size = 0x4, scoped, tag = 'scoped memory for tpu_custom_call.1']
    #allocation10 [shape = 'u8[16384]{0}', space=vmem, size = 0x4000, scoped, tag = 'input window, operand 6, single buffered']
    #allocation11 [shape = 'u8[16384]{0}', space=vmem, size = 0x4000, scoped, tag = 'input window, operand 8, single buffered']
    #allocation12 [shape = 's32[1]{0}', space=sflag, size = 0x4, scoped, tag = 'scoped memory for tpu_custom_call.1']
    #allocation13 [shape = 'u8[8192]{0}', space=vmem, size = 0x2000, scoped, tag = 'output window, operand 0']
    %21 = vsyncpa [#allocation3], 0
    %s22 = scalar_lea.sflag [#allocation3], 1
    %23 = vsyncpa %s22, 0
    %24 = vsyncpa [#allocation6], 0
    %s25 = scalar_lea.sflag [#allocation6], 1
    %26 = vsyncpa %s25, 0
    %27 = vsyncpa [#allocation9], 0
    %28 = vsyncpa [#allocation12], 0
    %29 = vsyncpa [#allocation4], 0
    %s30 = scalar_lea.sflag [#allocation4], 1
    %31 = vsyncpa %s30, 0
    loop: start=0, step=1, limit=4
    $region2: #{tpu_custom_call.1} parent=1 // loop_pre_header
      _
    $region3: #{tpu_custom_call.1} parent=1 // loop_header
      %s33 = sphi 0, %s37
      %p34 = scmp.ge.s32.totalorder %s33, 4
      %s43 = sphi 0, %s45
      %s46 = sphi 0, %s43
      %s47 = sphi 0, %s46
      %s63 = sphi 0, %s47
      %s69 = sphi 0, %s71
      %s72 = sphi 0, %s69
      %s73 = sphi 0, %s72
      %s89 = sphi 0, %s73
      %s93 = sphi 0, %s93
      %s95 = sphi 0, %s93
      %s96 = sphi 0, %s95
      %s110 = sphi 0, %s96
      %s114 = sphi 0, %s114
      %s116 = sphi 0, %s114
      %s117 = sphi 0, %s116
      %s131 = sphi 0, %s117
      %s135 = sphi 0, %s135
      %s137 = sphi 0, %s135
      %s138 = sphi 0, %s137
      %s152 = sphi 0, %s138
      %s156 = sphi 0, %s156
      %s158 = sphi 0, %s156
      %s159 = sphi 0, %s158
      %s173 = sphi 0, %s159
      %s177 = sphi 0, %s177
      %s179 = sphi 0, %s177
      %s180 = sphi 0, %s179
      %s194 = sphi 0, %s180
      %s198 = sphi 0, %s198
      %s200 = sphi 0, %s198
      %s201 = sphi 0, %s200
      %s215 = sphi 0, %s201
      %s219 = sphi 0, %s219
      %s221 = sphi 0, %s219
      %s222 = sphi 0, %s221
      %s236 = sphi 0, %s222
      %s240 = sphi 0, %s240
      %s242 = sphi 0, %s240
      %s243 = sphi 0, %s242
      %s257 = sphi 0, %s243
      %s261 = sphi 0, %s261
      %s263 = sphi 0, %s261
      %s264 = sphi 0, %s263
      %s278 = sphi 0, %s264
      %s282 = sphi 0, %s282
      %s284 = sphi 0, %s282
      %s285 = sphi 0, %s284
      %s299 = sphi 0, %s285
      %s303 = sphi 0, %s303
      %s305 = sphi 0, %s303
      %s306 = sphi 0, %s305
      %s320 = sphi 0, %s306
      %s324 = sphi 0, %s324
      %s326 = sphi 0, %s324
      %s327 = sphi 0, %s326
      %s341 = sphi 0, %s327
      %s345 = sphi 0, %s345
      %s347 = sphi 0, %s345
      %s348 = sphi 0, %s347
      %s362 = sphi 0, %s348
      %s366 = sphi 0, %s366
      %s368 = sphi 0, %s366
      %s369 = sphi 0, %s368
      %s383 = sphi 0, %s369
      %s389 = sphi 0, %s391
      %s392 = sphi 0, %s389
      %s393 = sphi 0, %s392
      %s409 = sphi 0, %s393
    $region4: #{tpu_custom_call.1} parent=1 // loop_header_branch
      %36 = sbr.rel (%p34) target = $region8
    $region5: #{tpu_custom_call.1} parent=1 // loop_body
      %s38 = ssub.s32 %s33, 1
      %s39 = ssub.s32 %s33, 2
      %s40 = sadd.s32 %s33, 1
      %s41 = ssub.s32 %s33, %s40
      %p42 = scmp.eq.s32.totalorder %s41, 0
      %s44 = sadd.s32 %s43, 1
      %s45 = scalar_select %p42, %s43, %s44
      %p48 = pneg %p42
      %p49 = scmp.eq.s32.totalorder %s33, 1
      %p50 = por %p48, %p49
      %p51 = scmp.ne.s32.totalorder %s43, %s46
      %p52 = scmp.eq.s32.totalorder %s33, 0
      %p53 = por %p51, %p52
      %p54 = scmp.ne.s32.totalorder %s43, %s46
      %p55 = scmp.eq.s32.totalorder %s38, 1
      %p56 = por %p54, %p55
      %p57 = scmp.ne.s32.totalorder %s46, %s47
      %p58 = scmp.eq.s32.totalorder %s38, 0
      %p59 = por %p57, %p58
      %p60 = scmp.ne.s32.totalorder %s46, %s47
      %p61 = scmp.eq.s32.totalorder %s39, 1
      %p62 = por %p60, %p61
      %p64 = scmp.ne.s32.totalorder %s47, %s63
      %p65 = scmp.eq.s32.totalorder %s39, 0
      %p66 = por %p64, %p65
      %s67 = ssub.s32 %s33, %s40
      %p68 = scmp.eq.s32.totalorder %s67, 0
      %s70 = sadd.s32 %s69, 1
      %s71 = scalar_select %p68, %s69, %s70
      %p74 = pneg %p68
      %p75 = scmp.eq.s32.totalorder %s33, 1
      %p76 = por %p74, %p75
      %p77 = scmp.ne.s32.totalorder %s69, %s72
      %p78 = scmp.eq.s32.totalorder %s33, 0
      %p79 = por %p77, %p78
      %p80 = scmp.ne.s32.totalorder %s69, %s72
      %p81 = scmp.eq.s32.totalorder %s38, 1
      %p82 = por %p80, %p81
      %p83 = scmp.ne.s32.totalorder %s72, %s73
      %p84 = scmp.eq.s32.totalorder %s38, 0
      %p85 = por %p83, %p84
      %p86 = scmp.ne.s32.totalorder %s72, %s73
      %p87 = scmp.eq.s32.totalorder %s39, 1
      %p88 = por %p86, %p87
      %p90 = scmp.ne.s32.totalorder %s73, %s89
      %p91 = scmp.eq.s32.totalorder %s39, 0
      %p92 = por %p90, %p91
      %s94 = sadd.s32 %s93, 1
      %p97 = scmp.eq.s32.totalorder %s33, 1
      %p98 = scmp.ne.s32.totalorder %s93, %s95
      %p99 = scmp.eq.s32.totalorder %s33, 0
      %p100 = por %p98, %p99
      %p101 = scmp.ne.s32.totalorder %s93, %s95
      %p102 = scmp.eq.s32.totalorder %s38, 1
      %p103 = por %p101, %p102
      %p104 = scmp.ne.s32.totalorder %s95, %s96
      %p105 = scmp.eq.s32.totalorder %s38, 0
      %p106 = por %p104, %p105
      %p107 = scmp.ne.s32.totalorder %s95, %s96
      %p108 = scmp.eq.s32.totalorder %s39, 1
      %p109 = por %p107, %p108
      %p111 = scmp.ne.s32.totalorder %s96, %s110
      %p112 = scmp.eq.s32.totalorder %s39, 0
      %p113 = por %p111, %p112
      %s115 = sadd.s32 %s114, 1
      %p118 = scmp.eq.s32.totalorder %s33, 1
      %p119 = scmp.ne.s32.totalorder %s114, %s116
      %p120 = scmp.eq.s32.totalorder %s33, 0
      %p121 = por %p119, %p120
      %p122 = scmp.ne.s32.totalorder %s114, %s116
      %p123 = scmp.eq.s32.totalorder %s38, 1
      %p124 = por %p122, %p123
      %p125 = scmp.ne.s32.totalorder %s116, %s117
      %p126 = scmp.eq.s32.totalorder %s38, 0
      %p127 = por %p125, %p126
      %p128 = scmp.ne.s32.totalorder %s116, %s117
      %p129 = scmp.eq.s32.totalorder %s39, 1
      %p130 = por %p128, %p129
      %p132 = scmp.ne.s32.totalorder %s117, %s131
      %p133 = scmp.eq.s32.totalorder %s39, 0
      %p134 = por %p132, %p133
      %s136 = sadd.s32 %s135, 1
      %p139 = scmp.eq.s32.totalorder %s33, 1
      %p140 = scmp.ne.s32.totalorder %s135, %s137
      %p141 = scmp.eq.s32.totalorder %s33, 0
      %p142 = por %p140, %p141
      %p143 = scmp.ne.s32.totalorder %s135, %s137
      %p144 = scmp.eq.s32.totalorder %s38, 1
      %p145 = por %p143, %p144
      %p146 = scmp.ne.s32.totalorder %s137, %s138
      %p147 = scmp.eq.s32.totalorder %s38, 0
      %p148 = por %p146, %p147
      %p149 = scmp.ne.s32.totalorder %s137, %s138
      %p150 = scmp.eq.s32.totalorder %s39, 1
      %p151 = por %p149, %p150
      %p153 = scmp.ne.s32.totalorder %s138, %s152
      %p154 = scmp.eq.s32.totalorder %s39, 0
      %p155 = por %p153, %p154
      %s157 = sadd.s32 %s156, 1
      %p160 = scmp.eq.s32.totalorder %s33, 1
      %p161 = scmp.ne.s32.totalorder %s156, %s158
      %p162 = scmp.eq.s32.totalorder %s33, 0
      %p163 = por %p161, %p162
      %p164 = scmp.ne.s32.totalorder %s156, %s158
      %p165 = scmp.eq.s32.totalorder %s38, 1
      %p166 = por %p164, %p165
      %p167 = scmp.ne.s32.totalorder %s158, %s159
      %p168 = scmp.eq.s32.totalorder %s38, 0
      %p169 = por %p167, %p168
      %p170 = scmp.ne.s32.totalorder %s158, %s159
      %p171 = scmp.eq.s32.totalorder %s39, 1
      %p172 = por %p170, %p171
      %p174 = scmp.ne.s32.totalorder %s159, %s173
      %p175 = scmp.eq.s32.totalorder %s39, 0
      %p176 = por %p174, %p175
      %s178 = sadd.s32 %s177, 1
      %p181 = scmp.eq.s32.totalorder %s33, 1
      %p182 = scmp.ne.s32.totalorder %s177, %s179
      %p183 = scmp.eq.s32.totalorder %s33, 0
      %p184 = por %p182, %p183
      %p185 = scmp.ne.s32.totalorder %s177, %s179
      %p186 = scmp.eq.s32.totalorder %s38, 1
      %p187 = por %p185, %p186
      %p188 = scmp.ne.s32.totalorder %s179, %s180
      %p189 = scmp.eq.s32.totalorder %s38, 0
      %p190 = por %p188, %p189
      %p191 = scmp.ne.s32.totalorder %s179, %s180
      %p192 = scmp.eq.s32.totalorder %s39, 1
      %p193 = por %p191, %p192
      %p195 = scmp.ne.s32.totalorder %s180, %s194
      %p196 = scmp.eq.s32.totalorder %s39, 0
      %p197 = por %p195, %p196
      %s199 = sadd.s32 %s198, 1
      %p202 = scmp.eq.s32.totalorder %s33, 1
      %p203 = scmp.ne.s32.totalorder %s198, %s200
      %p204 = scmp.eq.s32.totalorder %s33, 0
      %p205 = por %p203, %p204
      %p206 = scmp.ne.s32.totalorder %s198, %s200
      %p207 = scmp.eq.s32.totalorder %s38, 1
      %p208 = por %p206, %p207
      %p209 = scmp.ne.s32.totalorder %s200, %s201
      %p210 = scmp.eq.s32.totalorder %s38, 0
      %p211 = por %p209, %p210
      %p212 = scmp.ne.s32.totalorder %s200, %s201
      %p213 = scmp.eq.s32.totalorder %s39, 1
      %p214 = por %p212, %p213
      %p216 = scmp.ne.s32.totalorder %s201, %s215
      %p217 = scmp.eq.s32.totalorder %s39, 0
      %p218 = por %p216, %p217
      %s220 = sadd.s32 %s219, 1
      %p223 = scmp.eq.s32.totalorder %s33, 1
      %p224 = scmp.ne.s32.totalorder %s219, %s221
      %p225 = scmp.eq.s32.totalorder %s33, 0
      %p226 = por %p224, %p225
      %p227 = scmp.ne.s32.totalorder %s219, %s221
      %p228 = scmp.eq.s32.totalorder %s38, 1
      %p229 = por %p227, %p228
      %p230 = scmp.ne.s32.totalorder %s221, %s222
      %p231 = scmp.eq.s32.totalorder %s38, 0
      %p232 = por %p230, %p231
      %p233 = scmp.ne.s32.totalorder %s221, %s222
      %p234 = scmp.eq.s32.totalorder %s39, 1
      %p235 = por %p233, %p234
      %p237 = scmp.ne.s32.totalorder %s222, %s236
      %p238 = scmp.eq.s32.totalorder %s39, 0
      %p239 = por %p237, %p238
      %s241 = sadd.s32 %s240, 1
      %p244 = scmp.eq.s32.totalorder %s33, 1
      %p245 = scmp.ne.s32.totalorder %s240, %s242
      %p246 = scmp.eq.s32.totalorder %s33, 0
      %p247 = por %p245, %p246
      %p248 = scmp.ne.s32.totalorder %s240, %s242
      %p249 = scmp.eq.s32.totalorder %s38, 1
      %p250 = por %p248, %p249
      %p251 = scmp.ne.s32.totalorder %s242, %s243
      %p252 = scmp.eq.s32.totalorder %s38, 0
      %p253 = por %p251, %p252
      %p254 = scmp.ne.s32.totalorder %s242, %s243
      %p255 = scmp.eq.s32.totalorder %s39, 1
      %p256 = por %p254, %p255
      %p258 = scmp.ne.s32.totalorder %s243, %s257
      %p259 = scmp.eq.s32.totalorder %s39, 0
      %p260 = por %p258, %p259
      %s262 = sadd.s32 %s261, 1
      %p265 = scmp.eq.s32.totalorder %s33, 1
      %p266 = scmp.ne.s32.totalorder %s261, %s263
      %p267 = scmp.eq.s32.totalorder %s33, 0
      %p268 = por %p266, %p267
      %p269 = scmp.ne.s32.totalorder %s261, %s263
      %p270 = scmp.eq.s32.totalorder %s38, 1
      %p271 = por %p269, %p270
      %p272 = scmp.ne.s32.totalorder %s263, %s264
      %p273 = scmp.eq.s32.totalorder %s38, 0
      %p274 = por %p272, %p273
      %p275 = scmp.ne.s32.totalorder %s263, %s264
      %p276 = scmp.eq.s32.totalorder %s39, 1
      %p277 = por %p275, %p276
      %p279 = scmp.ne.s32.totalorder %s264, %s278
      %p280 = scmp.eq.s32.totalorder %s39, 0
      %p281 = por %p279, %p280
      %s283 = sadd.s32 %s282, 1
      %p286 = scmp.eq.s32.totalorder %s33, 1
      %p287 = scmp.ne.s32.totalorder %s282, %s284
      %p288 = scmp.eq.s32.totalorder %s33, 0
      %p289 = por %p287, %p288
      %p290 = scmp.ne.s32.totalorder %s282, %s284
      %p291 = scmp.eq.s32.totalorder %s38, 1
      %p292 = por %p290, %p291
      %p293 = scmp.ne.s32.totalorder %s284, %s285
      %p294 = scmp.eq.s32.totalorder %s38, 0
      %p295 = por %p293, %p294
      %p296 = scmp.ne.s32.totalorder %s284, %s285
      %p297 = scmp.eq.s32.totalorder %s39, 1
      %p298 = por %p296, %p297
      %p300 = scmp.ne.s32.totalorder %s285, %s299
      %p301 = scmp.eq.s32.totalorder %s39, 0
      %p302 = por %p300, %p301
      %s304 = sadd.s32 %s303, 1
      %p307 = scmp.eq.s32.totalorder %s33, 1
      %p308 = scmp.ne.s32.totalorder %s303, %s305
      %p309 = scmp.eq.s32.totalorder %s33, 0
      %p310 = por %p308, %p309
      %p311 = scmp.ne.s32.totalorder %s303, %s305
      %p312 = scmp.eq.s32.totalorder %s38, 1
      %p313 = por %p311, %p312
      %p314 = scmp.ne.s32.totalorder %s305, %s306
      %p315 = scmp.eq.s32.totalorder %s38, 0
      %p316 = por %p314, %p315
      %p317 = scmp.ne.s32.totalorder %s305, %s306
      %p318 = scmp.eq.s32.totalorder %s39, 1
      %p319 = por %p317, %p318
      %p321 = scmp.ne.s32.totalorder %s306, %s320
      %p322 = scmp.eq.s32.totalorder %s39, 0
      %p323 = por %p321, %p322
      %s325 = sadd.s32 %s324, 1
      %p328 = scmp.eq.s32.totalorder %s33, 1
      %p329 = scmp.ne.s32.totalorder %s324, %s326
      %p330 = scmp.eq.s32.totalorder %s33, 0
      %p331 = por %p329, %p330
      %p332 = scmp.ne.s32.totalorder %s324, %s326
      %p333 = scmp.eq.s32.totalorder %s38, 1
      %p334 = por %p332, %p333
      %p335 = scmp.ne.s32.totalorder %s326, %s327
      %p336 = scmp.eq.s32.totalorder %s38, 0
      %p337 = por %p335, %p336
      %p338 = scmp.ne.s32.totalorder %s326, %s327
      %p339 = scmp.eq.s32.totalorder %s39, 1
      %p340 = por %p338, %p339
      %p342 = scmp.ne.s32.totalorder %s327, %s341
      %p343 = scmp.eq.s32.totalorder %s39, 0
      %p344 = por %p342, %p343
      %s346 = sadd.s32 %s345, 1
      %p349 = scmp.eq.s32.totalorder %s33, 1
      %p350 = scmp.ne.s32.totalorder %s345, %s347
      %p351 = scmp.eq.s32.totalorder %s33, 0
      %p352 = por %p350, %p351
      %p353 = scmp.ne.s32.totalorder %s345, %s347
      %p354 = scmp.eq.s32.totalorder %s38, 1
      %p355 = por %p353, %p354
      %p356 = scmp.ne.s32.totalorder %s347, %s348
      %p357 = scmp.eq.s32.totalorder %s38, 0
      %p358 = por %p356, %p357
      %p359 = scmp.ne.s32.totalorder %s347, %s348
      %p360 = scmp.eq.s32.totalorder %s39, 1
      %p361 = por %p359, %p360
      %p363 = scmp.ne.s32.totalorder %s348, %s362
      %p364 = scmp.eq.s32.totalorder %s39, 0
      %p365 = por %p363, %p364
      %s367 = sadd.s32 %s366, 1
      %p370 = scmp.eq.s32.totalorder %s33, 1
      %p371 = scmp.ne.s32.totalorder %s366, %s368
      %p372 = scmp.eq.s32.totalorder %s33, 0
      %p373 = por %p371, %p372
      %p374 = scmp.ne.s32.totalorder %s366, %s368
      %p375 = scmp.eq.s32.totalorder %s38, 1
      %p376 = por %p374, %p375
      %p377 = scmp.ne.s32.totalorder %s368, %s369
      %p378 = scmp.eq.s32.totalorder %s38, 0
      %p379 = por %p377, %p378
      %p380 = scmp.ne.s32.totalorder %s368, %s369
      %p381 = scmp.eq.s32.totalorder %s39, 1
      %p382 = por %p380, %p381
      %p384 = scmp.ne.s32.totalorder %s369, %s383
      %p385 = scmp.eq.s32.totalorder %s39, 0
      %p386 = por %p384, %p385
      %s387 = ssub.s32 %s33, %s40
      %p388 = scmp.eq.s32.totalorder %s387, 0
      %s390 = sadd.s32 %s389, 1
      %s391 = scalar_select %p388, %s389, %s390
      %p394 = pneg %p388
      %p395 = scmp.eq.s32.totalorder %s33, 1
      %p396 = por %p394, %p395
      %p397 = scmp.ne.s32.totalorder %s389, %s392
      %p398 = scmp.eq.s32.totalorder %s33, 0
      %p399 = por %p397, %p398
      %p400 = scmp.ne.s32.totalorder %s389, %s392
      %p401 = scmp.eq.s32.totalorder %s38, 1
      %p402 = por %p400, %p401
      %p403 = scmp.ne.s32.totalorder %s392, %s393
      %p404 = scmp.eq.s32.totalorder %s38, 0
      %p405 = por %p403, %p404
      %p406 = scmp.ne.s32.totalorder %s392, %s393
      %p407 = scmp.eq.s32.totalorder %s39, 1
      %p408 = por %p406, %p407
      %p410 = scmp.ne.s32.totalorder %s393, %s409
      %p411 = scmp.eq.s32.totalorder %s39, 0
      %p412 = por %p410, %p411
      %p413 = scmp.le.s32.totalorder 1, %s33
      %p414 = scmp.lt.s32.totalorder %s33, 3
      %p415 = pnand %p413, %p414
      %p416 = pneg %p415
      // Predicated region
      $region9: #{tpu_custom_call.1} parent=5 // pred_check
        _
      $region10: #{tpu_custom_call.1} parent=5 // pred_check_branch
        %418 = sbr.rel (%p415) target = $region12
      $region11: #{tpu_custom_call.1} parent=5 // pred_region
        %s419 = ssub.s32 %s33, 1
        // Predicated region
        $region13: #{tpu_custom_call.1} parent=11 // pred_check
          %p420 = pneg %p106
        $region14: #{tpu_custom_call.1} parent=11 // pred_check_branch
          %422 = sbr.rel (%p420) target = $region16
        $region15: #{tpu_custom_call.1} parent=11 // pred_region
          %s424 = ssub.s32 512, 512
          %425 = vsyncadd [#allocation6], %s424
          %s426 = sshll.u32 [#allocation7], 4
          %s427 = int_to_ptr.vmem [resolvable:$true] %s426
          %432 = dma.hbm_to_vmem [thread:$0]  %s2, 512, %s427, [#allocation6], 128, 128, 8
        $region16: #{tpu_custom_call.1} parent=11 // pred_fallthru
          _
        // Predicated region
        $region17: #{tpu_custom_call.1} parent=11 // pred_check
          %p433 = pneg %p127
        $region18: #{tpu_custom_call.1} parent=11 // pred_check_branch
          %435 = sbr.rel (%p433) target = $region20
        $region19: #{tpu_custom_call.1} parent=11 // pred_region
          _
        $region20: #{tpu_custom_call.1} parent=11 // pred_fallthru
          _
        // Predicated region
        $region21: #{tpu_custom_call.1} parent=11 // pred_check
          %p436 = pneg %p148
        $region22: #{tpu_custom_call.1} parent=11 // pred_check_branch
          %438 = sbr.rel (%p436) target = $region24
        $region23: #{tpu_custom_call.1} parent=11 // pred_region
          %s440 = ssub.s32 512, 512
          %441 = vsyncadd [#allocation9], %s440
          %s442 = sshll.u32 [#allocation8], 4
          %s443 = int_to_ptr.vmem [resolvable:$true] %s442
          %448 = dma.hbm_to_vmem [thread:$0]  %s4, 512, %s443, [#allocation9], 128, 128, 8
        $region24: #{tpu_custom_call.1} parent=11 // pred_fallthru
          _
        // Predicated region
        $region25: #{tpu_custom_call.1} parent=11 // pred_check
          %p449 = pneg %p169
        $region26: #{tpu_custom_call.1} parent=11 // pred_check_branch
          %451 = sbr.rel (%p449) target = $region28
        $region27: #{tpu_custom_call.1} parent=11 // pred_region
          _
        $region28: #{tpu_custom_call.1} parent=11 // pred_fallthru
          _
        // Predicated region
        $region29: #{tpu_custom_call.1} parent=11 // pred_check
          %p452 = pneg %p190
        $region30: #{tpu_custom_call.1} parent=11 // pred_check_branch
          %454 = sbr.rel (%p452) target = $region32
        $region31: #{tpu_custom_call.1} parent=11 // pred_region
          %s456 = ssub.s32 512, 512
          %457 = vsyncadd [#allocation9], %s456
          %s458 = sshll.u32 [#allocation10], 4
          %s459 = int_to_ptr.vmem [resolvable:$true] %s458
          %464 = dma.hbm_to_vmem [thread:$0]  %s6, 512, %s459, [#allocation9], 128, 128, 8
        $region32: #{tpu_custom_call.1} parent=11 // pred_fallthru
          _
        // Predicated region
        $region33: #{tpu_custom_call.1} parent=11 // pred_check
          %p465 = pneg %p211
        $region34: #{tpu_custom_call.1} parent=11 // pred_check_branch
          %467 = sbr.rel (%p465) target = $region36
        $region35: #{tpu_custom_call.1} parent=11 // pred_region
          _
        $region36: #{tpu_custom_call.1} parent=11 // pred_fallthru
          _
        // Predicated region
        $region37: #{tpu_custom_call.1} parent=11 // pred_check
          %p468 = pneg %p232
        $region38: #{tpu_custom_call.1} parent=11 // pred_check_branch
          %470 = sbr.rel (%p468) target = $region40
        $region39: #{tpu_custom_call.1} parent=11 // pred_region
          %s472 = ssub.s32 512, 512
          %473 = vsyncadd [#allocation12], %s472
          %s474 = sshll.u32 [#allocation11], 4
          %s475 = int_to_ptr.vmem [resolvable:$true] %s474
          %480 = dma.hbm_to_vmem [thread:$0]  %s8, 512, %s475, [#allocation12], 128, 128, 8
        $region40: #{tpu_custom_call.1} parent=11 // pred_fallthru
          _
        // Predicated region
        $region41: #{tpu_custom_call.1} parent=11 // pred_check
          %p481 = pneg %p253
        $region42: #{tpu_custom_call.1} parent=11 // pred_check_branch
          %483 = sbr.rel (%p481) target = $region44
        $region43: #{tpu_custom_call.1} parent=11 // pred_region
          _
        $region44: #{tpu_custom_call.1} parent=11 // pred_fallthru
          _
        // Predicated region
        $region45: #{tpu_custom_call.1} parent=11 // pred_check
          %p484 = pneg %p274
        $region46: #{tpu_custom_call.1} parent=11 // pred_check_branch
          %486 = sbr.rel (%p484) target = $region48
        $region47: #{tpu_custom_call.1} parent=11 // pred_region
          _
        $region48: #{tpu_custom_call.1} parent=11 // pred_fallthru
          _
        // Predicated region
        $region49: #{tpu_custom_call.1} parent=11 // pred_check
          %p487 = pneg %p295
        $region50: #{tpu_custom_call.1} parent=11 // pred_check_branch
          %489 = sbr.rel (%p487) target = $region52
        $region51: #{tpu_custom_call.1} parent=11 // pred_region
          _
        $region52: #{tpu_custom_call.1} parent=11 // pred_fallthru
          _
        // Predicated region
        $region53: #{tpu_custom_call.1} parent=11 // pred_check
          %p490 = pneg %p316
        $region54: #{tpu_custom_call.1} parent=11 // pred_check_branch
          %492 = sbr.rel (%p490) target = $region56
        $region55: #{tpu_custom_call.1} parent=11 // pred_region
          _
        $region56: #{tpu_custom_call.1} parent=11 // pred_fallthru
          _
        // Predicated region
        $region57: #{tpu_custom_call.1} parent=11 // pred_check
          %p493 = pneg %p337
        $region58: #{tpu_custom_call.1} parent=11 // pred_check_branch
          %495 = sbr.rel (%p493) target = $region60
        $region59: #{tpu_custom_call.1} parent=11 // pred_region
          _
        $region60: #{tpu_custom_call.1} parent=11 // pred_fallthru
          _
        // Predicated region
        $region61: #{tpu_custom_call.1} parent=11 // pred_check
          %p496 = pneg %p358
        $region62: #{tpu_custom_call.1} parent=11 // pred_check_branch
          %498 = sbr.rel (%p496) target = $region64
        $region63: #{tpu_custom_call.1} parent=11 // pred_region
          _
        $region64: #{tpu_custom_call.1} parent=11 // pred_fallthru
          _
        // Predicated region
        $region65: #{tpu_custom_call.1} parent=11 // pred_check
          %p499 = pneg %p379
        $region66: #{tpu_custom_call.1} parent=11 // pred_check_branch
          %501 = sbr.rel (%p499) target = $region68
        $region67: #{tpu_custom_call.1} parent=11 // pred_region
          _
        $region68: #{tpu_custom_call.1} parent=11 // pred_fallthru
          _
      $region12: #{tpu_custom_call.1} parent=5 // pred_fallthru
        _
      %p502 = scmp.lt.s32.totalorder %s33, 2
      // Predicated region
      $region69: #{tpu_custom_call.1} parent=5 // pred_check
        %p503 = pneg %p502
      $region70: #{tpu_custom_call.1} parent=5 // pred_check_branch
        %505 = sbr.rel (%p503) target = $region72
      $region71: #{tpu_custom_call.1} parent=5 // pred_region
        // Predicated region
        $region73: #{tpu_custom_call.1} parent=71 // pred_check
          %p506 = pneg %p53
        $region74: #{tpu_custom_call.1} parent=71 // pred_check_branch
          %508 = sbr.rel (%p506) target = $region76
        $region75: #{tpu_custom_call.1} parent=71 // pred_region
          %s509 = sand.u32 %s43, 1
          %s510 = scalar_lea.sflag [#allocation3], %s509
          %s511 = sand.u32 %s43, 1
          %s512 = smul.addr %s511, 8
          %s513 = scalar_lea.vmem [#allocation2], %s512
          %s515 = ssub.s32 128, 128
          %516 = vsyncadd %s510, %s515
          %s517 = smul.addr %s33, 128
          %s518 = scalar_lea.hbm %s0, %s517
          %s520 = sshll.u32 %s513, 4
          %s521 = int_to_ptr.vmem [resolvable:$true] %s520
          %523 = dma.hbm_to_vmem [thread:$0]  %s518, 128, %s521, %s510
        $region76: #{tpu_custom_call.1} parent=71 // pred_fallthru
          _
        // Predicated region
        $region77: #{tpu_custom_call.1} parent=71 // pred_check
          %p524 = pneg %p79
        $region78: #{tpu_custom_call.1} parent=71 // pred_check_branch
          %526 = sbr.rel (%p524) target = $region80
        $region79: #{tpu_custom_call.1} parent=71 // pred_region
          %s527 = sand.u32 %s33, 1
          %s528 = scalar_lea.sflag [#allocation6], %s527
          %s529 = sand.u32 %s69, 1
          %s530 = smul.addr %s529, 8
          %s531 = scalar_lea.vmem [#allocation5], %s530
          %s533 = ssub.s32 128, 128
          %534 = vsyncadd %s528, %s533
          %s535 = smul.addr %s33, 128
          %s536 = scalar_lea.hbm %s1, %s535
          %s538 = sshll.u32 %s531, 4
          %s539 = int_to_ptr.vmem [resolvable:$true] %s538
          %541 = dma.hbm_to_vmem [thread:$0]  %s536, 128, %s539, %s528
        $region80: #{tpu_custom_call.1} parent=71 // pred_fallthru
          _
      $region72: #{tpu_custom_call.1} parent=5 // pred_fallthru
        _
      %p542 = scmp.le.s32.totalorder 1, %s33
      %p543 = scmp.lt.s32.totalorder %s33, 3
      %p544 = pnand %p542, %p543
      %p545 = pneg %p544
      // Predicated region
      $region81: #{tpu_custom_call.1} parent=5 // pred_check
        _
      $region82: #{tpu_custom_call.1} parent=5 // pred_check_branch
        %547 = sbr.rel (%p544) target = $region84
      $region83: #{tpu_custom_call.1} parent=5 // pred_region
        %s548 = ssub.s32 %s33, 1
        %s549 = sand.u32 %s46, 1
        %s550 = scalar_lea.sflag [#allocation3], %s549
        %s551 = sand.u32 %s46, 1
        %s552 = smul.addr %s551, 8
        %s553 = scalar_lea.vmem [#allocation2], %s552
        // Predicated region
        $region85: #{tpu_custom_call.1} parent=83 // pred_check
          %p554 = pneg %p59
        $region86: #{tpu_custom_call.1} parent=83 // pred_check_branch
          %556 = sbr.rel (%p554) target = $region88
        $region87: #{tpu_custom_call.1} parent=83 // pred_region
          %557 = dma.done %s550, 128
        $region88: #{tpu_custom_call.1} parent=83 // pred_fallthru
          _
        %s558 = sand.u32 %s38, 1
        %s559 = scalar_lea.sflag [#allocation6], %s558
        %s560 = sand.u32 %s72, 1
        %s561 = smul.addr %s560, 8
        %s562 = scalar_lea.vmem [#allocation5], %s561
        // Predicated region
        $region89: #{tpu_custom_call.1} parent=83 // pred_check
          %p563 = pneg %p85
        $region90: #{tpu_custom_call.1} parent=83 // pred_check_branch
          %565 = sbr.rel (%p563) target = $region92
        $region91: #{tpu_custom_call.1} parent=83 // pred_region
          %566 = dma.done %s559, 128
        $region92: #{tpu_custom_call.1} parent=83 // pred_fallthru
          _
        // Predicated region
        $region93: #{tpu_custom_call.1} parent=83 // pred_check
          %p567 = pneg %p106
        $region94: #{tpu_custom_call.1} parent=83 // pred_check_branch
          %569 = sbr.rel (%p567) target = $region96
        $region95: #{tpu_custom_call.1} parent=83 // pred_region
          %570 = dma.done [#allocation6], 512
        $region96: #{tpu_custom_call.1} parent=83 // pred_fallthru
          _
        // Predicated region
        $region97: #{tpu_custom_call.1} parent=83 // pred_check
          %p571 = pneg %p148
        $region98: #{tpu_custom_call.1} parent=83 // pred_check_branch
          %573 = sbr.rel (%p571) target = $region100
        $region99: #{tpu_custom_call.1} parent=83 // pred_region
          %574 = dma.done [#allocation9], 512
        $region100: #{tpu_custom_call.1} parent=83 // pred_fallthru
          _
        // Predicated region
        $region101: #{tpu_custom_call.1} parent=83 // pred_check
          %p575 = pneg %p190
        $region102: #{tpu_custom_call.1} parent=83 // pred_check_branch
          %577 = sbr.rel (%p575) target = $region104
        $region103: #{tpu_custom_call.1} parent=83 // pred_region
          %578 = dma.done [#allocation9], 512
        $region104: #{tpu_custom_call.1} parent=83 // pred_fallthru
          _
        // Predicated region
        $region105: #{tpu_custom_call.1} parent=83 // pred_check
          %p579 = pneg %p232
        $region106: #{tpu_custom_call.1} parent=83 // pred_check_branch
          %581 = sbr.rel (%p579) target = $region108
        $region107: #{tpu_custom_call.1} parent=83 // pred_region
          %582 = dma.done [#allocation12], 512
        $region108: #{tpu_custom_call.1} parent=83 // pred_fallthru
          _
        %s583 = sand.u32 %s46, 1
        %s584 = scalar_lea.sflag [#allocation3], %s583
        %s585 = sand.u32 %s46, 1
        %s586 = smul.addr %s585, 8
        %s587 = scalar_lea.vmem [#allocation2], %s586
        %p588 = pneg %p59
        %p589 = pneg %p56
        %s590 = sand.u32 %s38, 1
        %s591 = scalar_lea.sflag [#allocation6], %s590
        %s592 = sand.u32 %s72, 1
        %s593 = smul.addr %s592, 8
        %s594 = scalar_lea.vmem [#allocation5], %s593
        %p595 = pneg %p85
        %p596 = pneg %p82
        %p597 = pneg %p106
        %p598 = pneg %p103
        %p599 = pneg %p127
        %p600 = pneg %p124
        %p601 = pneg %p148
        %p602 = pneg %p145
        %p603 = pneg %p169
        %p604 = pneg %p166
        %p605 = pneg %p190
        %p606 = pneg %p187
        %p607 = pneg %p211
        %p608 = pneg %p208
        %p609 = pneg %p232
        %p610 = pneg %p229
        %p611 = pneg %p253
        %p612 = pneg %p250
        %p613 = pneg %p274
        %p614 = pneg %p271
        %p615 = pneg %p295
        %p616 = pneg %p292
        %p617 = pneg %p316
        %p618 = pneg %p313
        %p619 = pneg %p337
        %p620 = pneg %p334
        %p621 = pneg %p358
        %p622 = pneg %p355
        %p623 = pneg %p379
        %p624 = pneg %p376
        %p625 = pneg %p405
        %p626 = pneg %p402
        %s627 = sand.u32 %s392, 1
        %s628 = scalar_lea.sflag [#allocation4], %s627
        %s629 = sand.u32 %s392, 1
        %s630 = smul.addr %s629, 8
        %s631 = scalar_lea.vmem [#allocation13], %s630
        %v632 = vld [vmem:[%s553] sm:$0xff]
        %v633 = vld [vmem:[%s562] sm:$0xff]
        %v634 = vld [vmem:[#allocation7] sm:$0xff]
        %v635 = vld [vmem:[#allocation7 + $0x8] sm:$0xff]
        %v636 = vld [vmem:[#allocation7 + $0x10] sm:$0xff]
        %v637 = vld [vmem:[#allocation7 + $0x18] sm:$0xff]
        %v638 = vld [vmem:[%s3] sm:$0x1]
        %v640 = vlaneseq
        %v641 = vshrl.u32 %v640, 7
        %v642 = vsub.s32 0, %v641
        %v643 = vrot.slane %v638, %v642
        %vm645 = vcmask 261120
        %v647 = vsel %vm645, %v632, 0
        %649 = vmatprep.subr.mxu0 0.0
        %650 = vmatpush1.msra.mxu0 0.0
        %651 = vmatprep.subr.mxu0 0.0
        %652 = vmatpush1.msra.mxu0 0.0
        %653 = vmatprep.subr.mxu0 0.0
        %654 = vmatpush1.msra.mxu0 0.0
        %655 = vmatprep.subr.mxu0 0.0
        %656 = vmatpush1.msra.mxu0 0.0
        %657 = vmatprep.subr.mxu0 0.0
        %658 = vmatpush1.msra.mxu0 0.0
        %659 = vmatprep.subr.mxu0 0.0
        %660 = vmatpush1.msra.mxu0 0.0
        %661 = vmatprep.subr.mxu0 0.0
        %662 = vmatpush1.msra.mxu0 0.0
        %663 = vmatprep.subr.mxu0 0.0
        %664 = vmatpush1.msra.mxu0 0.0
        %665 = vmatprep.subr.mxu0 0.0
        %666 = vmatpush1.msra.mxu0 0.0
        %667 = vmatprep.subr.mxu0 0.0
        %668 = vmatpush1.msra.mxu0 0.0
        %669 = vmatprep.subr.mxu0 0.0
        %670 = vmatpush1.msra.mxu0 0.0
        %671 = vmatprep.subr.mxu0 0.0
        %672 = vmatpush1.msra.mxu0 0.0
        %673 = vmatprep.subr.mxu0 0.0
        %674 = vmatpush1.msra.mxu0 %v637
        %675 = vmatprep.subr.mxu0 0.0
        %676 = vmatpush1.msra.mxu0 %v636
        %677 = vmatprep.subr.mxu0 0.0
        %678 = vmatpush1.msra.mxu0 %v635
        %679 = vmatprep.subr.mxu0 0.0
        %680 = vmatpush1.msra.mxu0 %v634
        %681 = vmatprep.subr.mxu0 0.0
        %682 = vmatpush2.msra.mxu0 0.0
        %683 = vmatprep.subr.mxu0 0.0
        %684 = vmatpush2.msra.mxu0 0.0
        %685 = vmatprep.subr.mxu0 0.0
        %686 = vmatpush2.msra.mxu0 0.0
        %687 = vmatprep.subr.mxu0 0.0
        %688 = vmatpush2.msra.mxu0 0.0
        %689 = vmatprep.subr.mxu0 0.0
        %690 = vmatpush2.msra.mxu0 0.0
        %691 = vmatprep.subr.mxu0 0.0
        %692 = vmatpush2.msra.mxu0 0.0
        %693 = vmatprep.subr.mxu0 0.0
        %694 = vmatpush2.msra.mxu0 0.0
        %695 = vmatprep.subr.mxu0 0.0
        %696 = vmatpush2.msra.mxu0 0.0
        %697 = vmatprep.subr.mxu0 0.0
        %698 = vmatpush2.msra.mxu0 0.0
        %699 = vmatprep.subr.mxu0 0.0
        %700 = vmatpush2.msra.mxu0 0.0
        %701 = vmatprep.subr.mxu0 0.0
        %702 = vmatpush2.msra.mxu0 0.0
        %703 = vmatprep.subr.mxu0 0.0
        %704 = vmatpush2.msra.mxu0 0.0
        %705 = vmatprep.subr.mxu0 0.0
        %706 = vmatpush2.msra.mxu0 0.0
        %707 = vmatprep.subr.mxu0 0.0
        %708 = vmatpush2.msra.mxu0 0.0
        %709 = vmatprep.subr.mxu0 0.0
        %710 = vmatpush2.msra.mxu0 0.0
        %711 = vmatprep.subr.mxu0 0.0
        %712 = vmatpush2.msra.mxu0 0.0
        %713 = vmatprep.mubr.f32.mxu0 0.0
        %714 = vmatmul.mubr.f32.gmra.mxu0 %v647
        %v715 = vpop.f32.mrf.mxu0
        %v716 = vadd.f32 %v643, %v715
        %v717 = vpop.f32.mrf.mxu0
        %718 = vdwg.mxu0
        %720 = vrot.lane.b32.xlu0 %v716, 124
        %v721 = vpop.permute.xlu0 %720
        %723 = vrot.lane.b32.xlu0 %v716, 120
        %v724 = vpop.permute.xlu0 %723
        %726 = vrot.lane.b32.xlu0 %v716, 116
        %v727 = vpop.permute.xlu0 %726
        %729 = vrot.lane.b32.xlu0 %v716, 112
        %v730 = vpop.permute.xlu0 %729
        %732 = vrot.lane.b32.xlu0 %v716, 108
        %v733 = vpop.permute.xlu0 %732
        %735 = vrot.lane.b32.xlu0 %v716, 104
        %v736 = vpop.permute.xlu0 %735
        %738 = vrot.lane.b32.xlu0 %v716, 100
        %v739 = vpop.permute.xlu0 %738
        %v741 = vcombine.low %v716, %v724
        %v742 = vcombine.high %v716, %v724
        %v744 = vunpack.c.l.s4 1983009808
        %v745 = vunpack.c.0.s8 %v744
        %v746 = vlaneseq
        %v747 = vshrl.u32 %v746, 7
        %v748 = vsub.s32 %v745, %v747
        %v749 = vrot.slane %v741, %v748
        %v751 = vunpack.c.l.s4 1983009808
        %v752 = vunpack.c.0.s8 %v751
        %v753 = vlaneseq
        %v754 = vshrl.u32 %v753, 7
        %v755 = vsub.s32 %v752, %v754
        %v756 = vrot.slane %v742, %v755
        %v757 = vcombine.low %v721, %v727
        %v758 = vcombine.high %v721, %v727
        %v760 = vunpack.c.l.s4 1983009808
        %v761 = vunpack.c.0.s8 %v760
        %v762 = vlaneseq
        %v763 = vshrl.u32 %v762, 7
        %v764 = vsub.s32 %v761, %v763
        %v765 = vrot.slane %v757, %v764
        %v767 = vunpack.c.l.s4 1983009808
        %v768 = vunpack.c.0.s8 %v767
        %v769 = vlaneseq
        %v770 = vshrl.u32 %v769, 7
        %v771 = vsub.s32 %v768, %v770
        %v772 = vrot.slane %v758, %v771
        %v773 = vcombine.low %v730, %v736
        %v774 = vcombine.high %v730, %v736
        %v776 = vunpack.c.l.s4 1983009808
        %v777 = vunpack.c.0.s8 %v776
        %v778 = vlaneseq
        %v779 = vshrl.u32 %v778, 7
        %v780 = vsub.s32 %v777, %v779
        %v781 = vrot.slane %v773, %v780
        %v783 = vunpack.c.l.s4 1983009808
        %v784 = vunpack.c.0.s8 %v783
        %v785 = vlaneseq
        %v786 = vshrl.u32 %v785, 7
        %v787 = vsub.s32 %v784, %v786
        %v788 = vrot.slane %v774, %v787
        %v789 = vcombine.low %v733, %v739
        %v790 = vcombine.high %v733, %v739
        %v792 = vunpack.c.l.s4 1983009808
        %v793 = vunpack.c.0.s8 %v792
        %v794 = vlaneseq
        %v795 = vshrl.u32 %v794, 7
        %v796 = vsub.s32 %v793, %v795
        %v797 = vrot.slane %v789, %v796
        %v799 = vunpack.c.l.s4 1983009808
        %v800 = vunpack.c.0.s8 %v799
        %v801 = vlaneseq
        %v802 = vshrl.u32 %v801, 7
        %v803 = vsub.s32 %v800, %v802
        %v804 = vrot.slane %v790, %v803
        %v805 = vcombine.low %v749, %v765
        %v806 = vcombine.high %v749, %v765
        %v808 = vunpack.c.l.s4 1934713408
        %v809 = vunpack.c.0.s8 %v808
        %v810 = vlaneseq
        %v811 = vshrl.u32 %v810, 7
        %v812 = vsub.s32 %v809, %v811
        %v813 = vrot.slane %v805, %v812
        %v815 = vunpack.c.l.s4 1934713408
        %v816 = vunpack.c.0.s8 %v815
        %v817 = vlaneseq
        %v818 = vshrl.u32 %v817, 7
        %v819 = vsub.s32 %v816, %v818
        %v820 = vrot.slane %v806, %v819
        %v821 = vcombine.low %v756, %v772
        %v822 = vcombine.high %v756, %v772
        %v824 = vunpack.c.l.s4 1934713408
        %v825 = vunpack.c.0.s8 %v824
        %v826 = vlaneseq
        %v827 = vshrl.u32 %v826, 7
        %v828 = vsub.s32 %v825, %v827
        %v829 = vrot.slane %v821, %v828
        %v831 = vunpack.c.l.s4 1934713408
        %v832 = vunpack.c.0.s8 %v831
        %v833 = vlaneseq
        %v834 = vshrl.u32 %v833, 7
        %v835 = vsub.s32 %v832, %v834
        %v836 = vrot.slane %v822, %v835
        %v837 = vcombine.low %v781, %v797
        %v838 = vcombine.high %v781, %v797
        %v840 = vunpack.c.l.s4 1934713408
        %v841 = vunpack.c.0.s8 %v840
        %v842 = vlaneseq
        %v843 = vshrl.u32 %v842, 7
        %v844 = vsub.s32 %v841, %v843
        %v845 = vrot.slane %v837, %v844
        %v847 = vunpack.c.l.s4 1934713408
        %v848 = vunpack.c.0.s8 %v847
        %v849 = vlaneseq
        %v850 = vshrl.u32 %v849, 7
        %v851 = vsub.s32 %v848, %v850
        %v852 = vrot.slane %v838, %v851
        %v853 = vcombine.low %v788, %v804
        %v854 = vcombine.high %v788, %v804
        %v856 = vunpack.c.l.s4 1934713408
        %v857 = vunpack.c.0.s8 %v856
        %v858 = vlaneseq
        %v859 = vshrl.u32 %v858, 7
        %v860 = vsub.s32 %v857, %v859
        %v861 = vrot.slane %v853, %v860
        %v863 = vunpack.c.l.s4 1934713408
        %v864 = vunpack.c.0.s8 %v863
        %v865 = vlaneseq
        %v866 = vshrl.u32 %v865, 7
        %v867 = vsub.s32 %v864, %v866
        %v868 = vrot.slane %v854, %v867
        %v869 = vcombine.low %v813, %v845
        %v870 = vcombine.high %v813, %v845
        %v871 = vcombine.low %v820, %v852
        %v872 = vcombine.high %v820, %v852
        %v873 = vcombine.low %v829, %v861
        %v874 = vcombine.high %v829, %v861
        %v875 = vcombine.low %v836, %v868
        %v876 = vcombine.high %v836, %v868
        %v877 = vcombine.low %v869, %v871
        %v878 = vcombine.high %v869, %v871
        %v880 = vunpack.c.l.s4 1983009808
        %v881 = vunpack.c.0.s8 %v880
        %v882 = vlaneseq
        %v883 = vshrl.u32 %v882, 7
        %v884 = vsub.s32 %v881, %v883
        %v885 = vrot.slane %v877, %v884
        %v887 = vunpack.c.l.s4 1983009808
        %v888 = vunpack.c.0.s8 %v887
        %v889 = vlaneseq
        %v890 = vshrl.u32 %v889, 7
        %v891 = vsub.s32 %v888, %v890
        %v892 = vrot.slane %v878, %v891
        %v893 = vcombine.low %v870, %v872
        %v894 = vcombine.high %v870, %v872
        %v896 = vunpack.c.l.s4 1983009808
        %v897 = vunpack.c.0.s8 %v896
        %v898 = vlaneseq
        %v899 = vshrl.u32 %v898, 7
        %v900 = vsub.s32 %v897, %v899
        %v901 = vrot.slane %v893, %v900
        %v903 = vunpack.c.l.s4 1983009808
        %v904 = vunpack.c.0.s8 %v903
        %v905 = vlaneseq
        %v906 = vshrl.u32 %v905, 7
        %v907 = vsub.s32 %v904, %v906
        %v908 = vrot.slane %v894, %v907
        %v909 = vcombine.low %v873, %v875
        %v910 = vcombine.high %v873, %v875
        %v912 = vunpack.c.l.s4 1983009808
        %v913 = vunpack.c.0.s8 %v912
        %v914 = vlaneseq
        %v915 = vshrl.u32 %v914, 7
        %v916 = vsub.s32 %v913, %v915
        %v917 = vrot.slane %v909, %v916
        %v919 = vunpack.c.l.s4 1983009808
        %v920 = vunpack.c.0.s8 %v919
        %v921 = vlaneseq
        %v922 = vshrl.u32 %v921, 7
        %v923 = vsub.s32 %v920, %v922
        %v924 = vrot.slane %v910, %v923
        %v925 = vcombine.low %v874, %v876
        %v926 = vcombine.high %v874, %v876
        %v928 = vunpack.c.l.s4 1983009808
        %v929 = vunpack.c.0.s8 %v928
        %v930 = vlaneseq
        %v931 = vshrl.u32 %v930, 7
        %v932 = vsub.s32 %v929, %v931
        %v933 = vrot.slane %v925, %v932
        %v935 = vunpack.c.l.s4 1983009808
        %v936 = vunpack.c.0.s8 %v935
        %v937 = vlaneseq
        %v938 = vshrl.u32 %v937, 7
        %v939 = vsub.s32 %v936, %v938
        %v940 = vrot.slane %v926, %v939
        %v941 = vcombine.low %v885, %v901
        %v942 = vcombine.high %v885, %v901
        %v944 = vunpack.c.l.s4 1934713408
        %v945 = vunpack.c.0.s8 %v944
        %v946 = vlaneseq
        %v947 = vshrl.u32 %v946, 7
        %v948 = vsub.s32 %v945, %v947
        %v949 = vrot.slane %v941, %v948
        %v951 = vunpack.c.l.s4 1934713408
        %v952 = vunpack.c.0.s8 %v951
        %v953 = vlaneseq
        %v954 = vshrl.u32 %v953, 7
        %v955 = vsub.s32 %v952, %v954
        %v956 = vrot.slane %v942, %v955
        %v957 = vcombine.low %v892, %v908
        %v958 = vcombine.high %v892, %v908
        %v960 = vunpack.c.l.s4 1934713408
        %v961 = vunpack.c.0.s8 %v960
        %v962 = vlaneseq
        %v963 = vshrl.u32 %v962, 7
        %v964 = vsub.s32 %v961, %v963
        %v965 = vrot.slane %v957, %v964
        %v967 = vunpack.c.l.s4 1934713408
        %v968 = vunpack.c.0.s8 %v967
        %v969 = vlaneseq
        %v970 = vshrl.u32 %v969, 7
        %v971 = vsub.s32 %v968, %v970
        %v972 = vrot.slane %v958, %v971
        %v973 = vcombine.low %v917, %v933
        %v974 = vcombine.high %v917, %v933
        %v976 = vunpack.c.l.s4 1934713408
        %v977 = vunpack.c.0.s8 %v976
        %v978 = vlaneseq
        %v979 = vshrl.u32 %v978, 7
        %v980 = vsub.s32 %v977, %v979
        %v981 = vrot.slane %v973, %v980
        %v983 = vunpack.c.l.s4 1934713408
        %v984 = vunpack.c.0.s8 %v983
        %v985 = vlaneseq
        %v986 = vshrl.u32 %v985, 7
        %v987 = vsub.s32 %v984, %v986
        %v988 = vrot.slane %v974, %v987
        %v989 = vcombine.low %v924, %v940
        %v990 = vcombine.high %v924, %v940
        %v992 = vunpack.c.l.s4 1934713408
        %v993 = vunpack.c.0.s8 %v992
        %v994 = vlaneseq
        %v995 = vshrl.u32 %v994, 7
        %v996 = vsub.s32 %v993, %v995
        %v997 = vrot.slane %v989, %v996
        %v999 = vunpack.c.l.s4 1934713408
        %v1000 = vunpack.c.0.s8 %v999
        %v1001 = vlaneseq
        %v1002 = vshrl.u32 %v1001, 7
        %v1003 = vsub.s32 %v1000, %v1002
        %v1004 = vrot.slane %v990, %v1003
        %v1005 = vcombine.low %v949, %v981
        %v1006 = vcombine.high %v949, %v981
        %v1007 = vcombine.low %v956, %v988
        %v1008 = vcombine.high %v956, %v988
        %v1009 = vcombine.low %v965, %v997
        %v1010 = vcombine.high %v965, %v997
        %v1011 = vcombine.low %v972, %v1004
        %v1012 = vcombine.high %v972, %v1004
        %1013 = vrot.lane.b32.xlu0 %v716, 96
        %v1014 = vpop.permute.xlu0 %1013
        %1015 = vrot.lane.b32.xlu0 %v721, 96
        %v1016 = vpop.permute.xlu0 %1015
        %1017 = vrot.lane.b32.xlu0 %v724, 96
        %v1018 = vpop.permute.xlu0 %1017
        %1019 = vrot.lane.b32.xlu0 %v727, 96
        %v1020 = vpop.permute.xlu0 %1019
        %1021 = vrot.lane.b32.xlu0 %v730, 96
        %v1022 = vpop.permute.xlu0 %1021
        %1023 = vrot.lane.b32.xlu0 %v733, 96
        %v1024 = vpop.permute.xlu0 %1023
        %1025 = vrot.lane.b32.xlu0 %v736, 96
        %v1026 = vpop.permute.xlu0 %1025
        %1027 = vrot.lane.b32.xlu0 %v739, 96
        %v1028 = vpop.permute.xlu0 %1027
        %v1037 = vcombine.low %v1014, %v1018
        %v1038 = vcombine.high %v1014, %v1018
        %v1040 = vunpack.c.l.s4 1983009808
        %v1041 = vunpack.c.0.s8 %v1040
        %v1042 = vlaneseq
        %v1043 = vshrl.u32 %v1042, 7
        %v1044 = vsub.s32 %v1041, %v1043
        %v1045 = vrot.slane %v1037, %v1044
        %v1047 = vunpack.c.l.s4 1983009808
        %v1048 = vunpack.c.0.s8 %v1047
        %v1049 = vlaneseq
        %v1050 = vshrl.u32 %v1049, 7
        %v1051 = vsub.s32 %v1048, %v1050
        %v1052 = vrot.slane %v1038, %v1051
        %v1053 = vcombine.low %v1016, %v1020
        %v1054 = vcombine.high %v1016, %v1020
        %v1056 = vunpack.c.l.s4 1983009808
        %v1057 = vunpack.c.0.s8 %v1056
        %v1058 = vlaneseq
        %v1059 = vshrl.u32 %v1058, 7
        %v1060 = vsub.s32 %v1057, %v1059
        %v1061 = vrot.slane %v1053, %v1060
        %v1063 = vunpack.c.l.s4 1983009808
        %v1064 = vunpack.c.0.s8 %v1063
        %v1065 = vlaneseq
        %v1066 = vshrl.u32 %v1065, 7
        %v1067 = vsub.s32 %v1064, %v1066
        %v1068 = vrot.slane %v1054, %v1067
        %v1069 = vcombine.low %v1022, %v1026
        %v1070 = vcombine.high %v1022, %v1026
        %v1072 = vunpack.c.l.s4 1983009808
        %v1073 = vunpack.c.0.s8 %v1072
        %v1074 = vlaneseq
        %v1075 = vshrl.u32 %v1074, 7
        %v1076 = vsub.s32 %v1073, %v1075
        %v1077 = vrot.slane %v1069, %v1076
        %v1079 = vunpack.c.l.s4 1983009808
        %v1080 = vunpack.c.0.s8 %v1079
        %v1081 = vlaneseq
        %v1082 = vshrl.u32 %v1081, 7
        %v1083 = vsub.s32 %v1080, %v1082
        %v1084 = vrot.slane %v1070, %v1083
        %v1085 = vcombine.low %v1024, %v1028
        %v1086 = vcombine.high %v1024, %v1028
        %v1088 = vunpack.c.l.s4 1983009808
        %v1089 = vunpack.c.0.s8 %v1088
        %v1090 = vlaneseq
        %v1091 = vshrl.u32 %v1090, 7
        %v1092 = vsub.s32 %v1089, %v1091
        %v1093 = vrot.slane %v1085, %v1092
        %v1095 = vunpack.c.l.s4 1983009808
        %v1096 = vunpack.c.0.s8 %v1095
        %v1097 = vlaneseq
        %v1098 = vshrl.u32 %v1097, 7
        %v1099 = vsub.s32 %v1096, %v1098
        %v1100 = vrot.slane %v1086, %v1099
        %v1101 = vcombine.low %v1045, %v1061
        %v1102 = vcombine.high %v1045, %v1061
        %v1104 = vunpack.c.l.s4 1934713408
        %v1105 = vunpack.c.0.s8 %v1104
        %v1106 = vlaneseq
        %v1107 = vshrl.u32 %v1106, 7
        %v1108 = vsub.s32 %v1105, %v1107
        %v1109 = vrot.slane %v1101, %v1108
        %v1111 = vunpack.c.l.s4 1934713408
        %v1112 = vunpack.c.0.s8 %v1111
        %v1113 = vlaneseq
        %v1114 = vshrl.u32 %v1113, 7
        %v1115 = vsub.s32 %v1112, %v1114
        %v1116 = vrot.slane %v1102, %v1115
        %v1117 = vcombine.low %v1052, %v1068
        %v1118 = vcombine.high %v1052, %v1068
        %v1120 = vunpack.c.l.s4 1934713408
        %v1121 = vunpack.c.0.s8 %v1120
        %v1122 = vlaneseq
        %v1123 = vshrl.u32 %v1122, 7
        %v1124 = vsub.s32 %v1121, %v1123
        %v1125 = vrot.slane %v1117, %v1124
        %v1127 = vunpack.c.l.s4 1934713408
        %v1128 = vunpack.c.0.s8 %v1127
        %v1129 = vlaneseq
        %v1130 = vshrl.u32 %v1129, 7
        %v1131 = vsub.s32 %v1128, %v1130
        %v1132 = vrot.slane %v1118, %v1131
        %v1133 = vcombine.low %v1077, %v1093
        %v1134 = vcombine.high %v1077, %v1093
        %v1136 = vunpack.c.l.s4 1934713408
        %v1137 = vunpack.c.0.s8 %v1136
        %v1138 = vlaneseq
        %v1139 = vshrl.u32 %v1138, 7
        %v1140 = vsub.s32 %v1137, %v1139
        %v1141 = vrot.slane %v1133, %v1140
        %v1143 = vunpack.c.l.s4 1934713408
        %v1144 = vunpack.c.0.s8 %v1143
        %v1145 = vlaneseq
        %v1146 = vshrl.u32 %v1145, 7
        %v1147 = vsub.s32 %v1144, %v1146
        %v1148 = vrot.slane %v1134, %v1147
        %v1149 = vcombine.low %v1084, %v1100
        %v1150 = vcombine.high %v1084, %v1100
        %v1152 = vunpack.c.l.s4 1934713408
        %v1153 = vunpack.c.0.s8 %v1152
        %v1154 = vlaneseq
        %v1155 = vshrl.u32 %v1154, 7
        %v1156 = vsub.s32 %v1153, %v1155
        %v1157 = vrot.slane %v1149, %v1156
        %v1159 = vunpack.c.l.s4 1934713408
        %v1160 = vunpack.c.0.s8 %v1159
        %v1161 = vlaneseq
        %v1162 = vshrl.u32 %v1161, 7
        %v1163 = vsub.s32 %v1160, %v1162
        %v1164 = vrot.slane %v1150, %v1163
        %v1165 = vcombine.low %v1109, %v1141
        %v1166 = vcombine.high %v1109, %v1141
        %v1167 = vcombine.low %v1116, %v1148
        %v1168 = vcombine.high %v1116, %v1148
        %v1169 = vcombine.low %v1125, %v1157
        %v1170 = vcombine.high %v1125, %v1157
        %v1171 = vcombine.low %v1132, %v1164
        %v1172 = vcombine.high %v1132, %v1164
        %v1173 = vcombine.low %v1165, %v1167
        %v1174 = vcombine.high %v1165, %v1167
        %v1176 = vunpack.c.l.s4 1983009808
        %v1177 = vunpack.c.0.s8 %v1176
        %v1178 = vlaneseq
        %v1179 = vshrl.u32 %v1178, 7
        %v1180 = vsub.s32 %v1177, %v1179
        %v1181 = vrot.slane %v1173, %v1180
        %v1183 = vunpack.c.l.s4 1983009808
        %v1184 = vunpack.c.0.s8 %v1183
        %v1185 = vlaneseq
        %v1186 = vshrl.u32 %v1185, 7
        %v1187 = vsub.s32 %v1184, %v1186
        %v1188 = vrot.slane %v1174, %v1187
        %v1189 = vcombine.low %v1166, %v1168
        %v1190 = vcombine.high %v1166, %v1168
        %v1192 = vunpack.c.l.s4 1983009808
        %v1193 = vunpack.c.0.s8 %v1192
        %v1194 = vlaneseq
        %v1195 = vshrl.u32 %v1194, 7
        %v1196 = vsub.s32 %v1193, %v1195
        %v1197 = vrot.slane %v1189, %v1196
        %v1199 = vunpack.c.l.s4 1983009808
        %v1200 = vunpack.c.0.s8 %v1199
        %v1201 = vlaneseq
        %v1202 = vshrl.u32 %v1201, 7
        %v1203 = vsub.s32 %v1200, %v1202
        %v1204 = vrot.slane %v1190, %v1203
        %v1205 = vcombine.low %v1169, %v1171
        %v1206 = vcombine.high %v1169, %v1171
        %v1208 = vunpack.c.l.s4 1983009808
        %v1209 = vunpack.c.0.s8 %v1208
        %v1210 = vlaneseq
        %v1211 = vshrl.u32 %v1210, 7
        %v1212 = vsub.s32 %v1209, %v1211
        %v1213 = vrot.slane %v1205, %v1212
        %v1215 = vunpack.c.l.s4 1983009808
        %v1216 = vunpack.c.0.s8 %v1215
        %v1217 = vlaneseq
        %v1218 = vshrl.u32 %v1217, 7
        %v1219 = vsub.s32 %v1216, %v1218
        %v1220 = vrot.slane %v1206, %v1219
        %v1221 = vcombine.low %v1170, %v1172
        %v1222 = vcombine.high %v1170, %v1172
        %v1224 = vunpack.c.l.s4 1983009808
        %v1225 = vunpack.c.0.s8 %v1224
        %v1226 = vlaneseq
        %v1227 = vshrl.u32 %v1226, 7
        %v1228 = vsub.s32 %v1225, %v1227
        %v1229 = vrot.slane %v1221, %v1228
        %v1231 = vunpack.c.l.s4 1983009808
        %v1232 = vunpack.c.0.s8 %v1231
        %v1233 = vlaneseq
        %v1234 = vshrl.u32 %v1233, 7
        %v1235 = vsub.s32 %v1232, %v1234
        %v1236 = vrot.slane %v1222, %v1235
        %v1237 = vcombine.low %v1181, %v1197
        %v1238 = vcombine.high %v1181, %v1197
        %v1240 = vunpack.c.l.s4 1934713408
        %v1241 = vunpack.c.0.s8 %v1240
        %v1242 = vlaneseq
        %v1243 = vshrl.u32 %v1242, 7
        %v1244 = vsub.s32 %v1241, %v1243
        %v1245 = vrot.slane %v1237, %v1244
        %v1247 = vunpack.c.l.s4 1934713408
        %v1248 = vunpack.c.0.s8 %v1247
        %v1249 = vlaneseq
        %v1250 = vshrl.u32 %v1249, 7
        %v1251 = vsub.s32 %v1248, %v1250
        %v1252 = vrot.slane %v1238, %v1251
        %v1253 = vcombine.low %v1188, %v1204
        %v1254 = vcombine.high %v1188, %v1204
        %v1256 = vunpack.c.l.s4 1934713408
        %v1257 = vunpack.c.0.s8 %v1256
        %v1258 = vlaneseq
        %v1259 = vshrl.u32 %v1258, 7
        %v1260 = vsub.s32 %v1257, %v1259
        %v1261 = vrot.slane %v1253, %v1260
        %v1263 = vunpack.c.l.s4 1934713408
        %v1264 = vunpack.c.0.s8 %v1263
        %v1265 = vlaneseq
        %v1266 = vshrl.u32 %v1265, 7
        %v1267 = vsub.s32 %v1264, %v1266
        %v1268 = vrot.slane %v1254, %v1267
        %v1269 = vcombine.low %v1213, %v1229
        %v1270 = vcombine.high %v1213, %v1229
        %v1272 = vunpack.c.l.s4 1934713408
        %v1273 = vunpack.c.0.s8 %v1272
        %v1274 = vlaneseq
        %v1275 = vshrl.u32 %v1274, 7
        %v1276 = vsub.s32 %v1273, %v1275
        %v1277 = vrot.slane %v1269, %v1276
        %v1279 = vunpack.c.l.s4 1934713408
        %v1280 = vunpack.c.0.s8 %v1279
        %v1281 = vlaneseq
        %v1282 = vshrl.u32 %v1281, 7
        %v1283 = vsub.s32 %v1280, %v1282
        %v1284 = vrot.slane %v1270, %v1283
        %v1285 = vcombine.low %v1220, %v1236
        %v1286 = vcombine.high %v1220, %v1236
        %v1288 = vunpack.c.l.s4 1934713408
        %v1289 = vunpack.c.0.s8 %v1288
        %v1290 = vlaneseq
        %v1291 = vshrl.u32 %v1290, 7
        %v1292 = vsub.s32 %v1289, %v1291
        %v1293 = vrot.slane %v1285, %v1292
        %v1295 = vunpack.c.l.s4 1934713408
        %v1296 = vunpack.c.0.s8 %v1295
        %v1297 = vlaneseq
        %v1298 = vshrl.u32 %v1297, 7
        %v1299 = vsub.s32 %v1296, %v1298
        %v1300 = vrot.slane %v1286, %v1299
        %v1301 = vcombine.low %v1245, %v1277
        %v1302 = vcombine.high %v1245, %v1277
        %v1303 = vcombine.low %v1252, %v1284
        %v1304 = vcombine.high %v1252, %v1284
        %v1305 = vcombine.low %v1261, %v1293
        %v1306 = vcombine.high %v1261, %v1293
        %v1307 = vcombine.low %v1268, %v1300
        %v1308 = vcombine.high %v1268, %v1300
        %1309 = vrot.lane.b32.xlu0 %v716, 64
        %v1310 = vpop.permute.xlu0 %1309
        %1311 = vrot.lane.b32.xlu0 %v721, 64
        %v1312 = vpop.permute.xlu0 %1311
        %1313 = vrot.lane.b32.xlu0 %v724, 64
        %v1314 = vpop.permute.xlu0 %1313
        %1315 = vrot.lane.b32.xlu0 %v727, 64
        %v1316 = vpop.permute.xlu0 %1315
        %1317 = vrot.lane.b32.xlu0 %v730, 64
        %v1318 = vpop.permute.xlu0 %1317
        %1319 = vrot.lane.b32.xlu0 %v733, 64
        %v1320 = vpop.permute.xlu0 %1319
        %1321 = vrot.lane.b32.xlu0 %v736, 64
        %v1322 = vpop.permute.xlu0 %1321
        %1323 = vrot.lane.b32.xlu0 %v739, 64
        %v1324 = vpop.permute.xlu0 %1323
        %v1333 = vcombine.low %v1310, %v1314
        %v1334 = vcombine.high %v1310, %v1314
        %v1336 = vunpack.c.l.s4 1983009808
        %v1337 = vunpack.c.0.s8 %v1336
        %v1338 = vlaneseq
        %v1339 = vshrl.u32 %v1338, 7
        %v1340 = vsub.s32 %v1337, %v1339
        %v1341 = vrot.slane %v1333, %v1340
        %v1343 = vunpack.c.l.s4 1983009808
        %v1344 = vunpack.c.0.s8 %v1343
        %v1345 = vlaneseq
        %v1346 = vshrl.u32 %v1345, 7
        %v1347 = vsub.s32 %v1344, %v1346
        %v1348 = vrot.slane %v1334, %v1347
        %v1349 = vcombine.low %v1312, %v1316
        %v1350 = vcombine.high %v1312, %v1316
        %v1352 = vunpack.c.l.s4 1983009808
        %v1353 = vunpack.c.0.s8 %v1352
        %v1354 = vlaneseq
        %v1355 = vshrl.u32 %v1354, 7
        %v1356 = vsub.s32 %v1353, %v1355
        %v1357 = vrot.slane %v1349, %v1356
        %v1359 = vunpack.c.l.s4 1983009808
        %v1360 = vunpack.c.0.s8 %v1359
        %v1361 = vlaneseq
        %v1362 = vshrl.u32 %v1361, 7
        %v1363 = vsub.s32 %v1360, %v1362
        %v1364 = vrot.slane %v1350, %v1363
        %v1365 = vcombine.low %v1318, %v1322
        %v1366 = vcombine.high %v1318, %v1322
        %v1368 = vunpack.c.l.s4 1983009808
        %v1369 = vunpack.c.0.s8 %v1368
        %v1370 = vlaneseq
        %v1371 = vshrl.u32 %v1370, 7
        %v1372 = vsub.s32 %v1369, %v1371
        %v1373 = vrot.slane %v1365, %v1372
        %v1375 = vunpack.c.l.s4 1983009808
        %v1376 = vunpack.c.0.s8 %v1375
        %v1377 = vlaneseq
        %v1378 = vshrl.u32 %v1377, 7
        %v1379 = vsub.s32 %v1376, %v1378
        %v1380 = vrot.slane %v1366, %v1379
        %v1381 = vcombine.low %v1320, %v1324
        %v1382 = vcombine.high %v1320, %v1324
        %v1384 = vunpack.c.l.s4 1983009808
        %v1385 = vunpack.c.0.s8 %v1384
        %v1386 = vlaneseq
        %v1387 = vshrl.u32 %v1386, 7
        %v1388 = vsub.s32 %v1385, %v1387
        %v1389 = vrot.slane %v1381, %v1388
        %v1391 = vunpack.c.l.s4 1983009808
        %v1392 = vunpack.c.0.s8 %v1391
        %v1393 = vlaneseq
        %v1394 = vshrl.u32 %v1393, 7
        %v1395 = vsub.s32 %v1392, %v1394
        %v1396 = vrot.slane %v1382, %v1395
        %v1397 = vcombine.low %v1341, %v1357
        %v1398 = vcombine.high %v1341, %v1357
        %v1400 = vunpack.c.l.s4 1934713408
        %v1401 = vunpack.c.0.s8 %v1400
        %v1402 = vlaneseq
        %v1403 = vshrl.u32 %v1402, 7
        %v1404 = vsub.s32 %v1401, %v1403
        %v1405 = vrot.slane %v1397, %v1404
        %v1407 = vunpack.c.l.s4 1934713408
        %v1408 = vunpack.c.0.s8 %v1407
        %v1409 = vlaneseq
        %v1410 = vshrl.u32 %v1409, 7
        %v1411 = vsub.s32 %v1408, %v1410
        %v1412 = vrot.slane %v1398, %v1411
        %v1413 = vcombine.low %v1348, %v1364
        %v1414 = vcombine.high %v1348, %v1364
        %v1416 = vunpack.c.l.s4 1934713408
        %v1417 = vunpack.c.0.s8 %v1416
        %v1418 = vlaneseq
        %v1419 = vshrl.u32 %v1418, 7
        %v1420 = vsub.s32 %v1417, %v1419
        %v1421 = vrot.slane %v1413, %v1420
        %v1423 = vunpack.c.l.s4 1934713408
        %v1424 = vunpack.c.0.s8 %v1423
        %v1425 = vlaneseq
        %v1426 = vshrl.u32 %v1425, 7
        %v1427 = vsub.s32 %v1424, %v1426
        %v1428 = vrot.slane %v1414, %v1427
        %v1429 = vcombine.low %v1373, %v1389
        %v1430 = vcombine.high %v1373, %v1389
        %v1432 = vunpack.c.l.s4 1934713408
        %v1433 = vunpack.c.0.s8 %v1432
        %v1434 = vlaneseq
        %v1435 = vshrl.u32 %v1434, 7
        %v1436 = vsub.s32 %v1433, %v1435
        %v1437 = vrot.slane %v1429, %v1436
        %v1439 = vunpack.c.l.s4 1934713408
        %v1440 = vunpack.c.0.s8 %v1439
        %v1441 = vlaneseq
        %v1442 = vshrl.u32 %v1441, 7
        %v1443 = vsub.s32 %v1440, %v1442
        %v1444 = vrot.slane %v1430, %v1443
        %v1445 = vcombine.low %v1380, %v1396
        %v1446 = vcombine.high %v1380, %v1396
        %v1448 = vunpack.c.l.s4 1934713408
        %v1449 = vunpack.c.0.s8 %v1448
        %v1450 = vlaneseq
        %v1451 = vshrl.u32 %v1450, 7
        %v1452 = vsub.s32 %v1449, %v1451
        %v1453 = vrot.slane %v1445, %v1452
        %v1455 = vunpack.c.l.s4 1934713408
        %v1456 = vunpack.c.0.s8 %v1455
        %v1457 = vlaneseq
        %v1458 = vshrl.u32 %v1457, 7
        %v1459 = vsub.s32 %v1456, %v1458
        %v1460 = vrot.slane %v1446, %v1459
        %v1461 = vcombine.low %v1405, %v1437
        %v1462 = vcombine.high %v1405, %v1437
        %v1463 = vcombine.low %v1412, %v1444
        %v1464 = vcombine.high %v1412, %v1444
        %v1465 = vcombine.low %v1421, %v1453
        %v1466 = vcombine.high %v1421, %v1453
        %v1467 = vcombine.low %v1428, %v1460
        %v1468 = vcombine.high %v1428, %v1460
        %v1469 = vcombine.low %v1461, %v1463
        %v1470 = vcombine.high %v1461, %v1463
        %v1472 = vunpack.c.l.s4 1983009808
        %v1473 = vunpack.c.0.s8 %v1472
        %v1474 = vlaneseq
        %v1475 = vshrl.u32 %v1474, 7
        %v1476 = vsub.s32 %v1473, %v1475
        %v1477 = vrot.slane %v1469, %v1476
        %v1479 = vunpack.c.l.s4 1983009808
        %v1480 = vunpack.c.0.s8 %v1479
        %v1481 = vlaneseq
        %v1482 = vshrl.u32 %v1481, 7
        %v1483 = vsub.s32 %v1480, %v1482
        %v1484 = vrot.slane %v1470, %v1483
        %v1485 = vcombine.low %v1462, %v1464
        %v1486 = vcombine.high %v1462, %v1464
        %v1488 = vunpack.c.l.s4 1983009808
        %v1489 = vunpack.c.0.s8 %v1488
        %v1490 = vlaneseq
        %v1491 = vshrl.u32 %v1490, 7
        %v1492 = vsub.s32 %v1489, %v1491
        %v1493 = vrot.slane %v1485, %v1492
        %v1495 = vunpack.c.l.s4 1983009808
        %v1496 = vunpack.c.0.s8 %v1495
        %v1497 = vlaneseq
        %v1498 = vshrl.u32 %v1497, 7
        %v1499 = vsub.s32 %v1496, %v1498
        %v1500 = vrot.slane %v1486, %v1499
        %v1501 = vcombine.low %v1465, %v1467
        %v1502 = vcombine.high %v1465, %v1467
        %v1504 = vunpack.c.l.s4 1983009808
        %v1505 = vunpack.c.0.s8 %v1504
        %v1506 = vlaneseq
        %v1507 = vshrl.u32 %v1506, 7
        %v1508 = vsub.s32 %v1505, %v1507
        %v1509 = vrot.slane %v1501, %v1508
        %v1511 = vunpack.c.l.s4 1983009808
        %v1512 = vunpack.c.0.s8 %v1511
        %v1513 = vlaneseq
        %v1514 = vshrl.u32 %v1513, 7
        %v1515 = vsub.s32 %v1512, %v1514
        %v1516 = vrot.slane %v1502, %v1515
        %v1517 = vcombine.low %v1466, %v1468
        %v1518 = vcombine.high %v1466, %v1468
        %v1520 = vunpack.c.l.s4 1983009808
        %v1521 = vunpack.c.0.s8 %v1520
        %v1522 = vlaneseq
        %v1523 = vshrl.u32 %v1522, 7
        %v1524 = vsub.s32 %v1521, %v1523
        %v1525 = vrot.slane %v1517, %v1524
        %v1527 = vunpack.c.l.s4 1983009808
        %v1528 = vunpack.c.0.s8 %v1527
        %v1529 = vlaneseq
        %v1530 = vshrl.u32 %v1529, 7
        %v1531 = vsub.s32 %v1528, %v1530
        %v1532 = vrot.slane %v1518, %v1531
        %v1533 = vcombine.low %v1477, %v1493
        %v1534 = vcombine.high %v1477, %v1493
        %v1536 = vunpack.c.l.s4 1934713408
        %v1537 = vunpack.c.0.s8 %v1536
        %v1538 = vlaneseq
        %v1539 = vshrl.u32 %v1538, 7
        %v1540 = vsub.s32 %v1537, %v1539
        %v1541 = vrot.slane %v1533, %v1540
        %v1543 = vunpack.c.l.s4 1934713408
        %v1544 = vunpack.c.0.s8 %v1543
        %v1545 = vlaneseq
        %v1546 = vshrl.u32 %v1545, 7
        %v1547 = vsub.s32 %v1544, %v1546
        %v1548 = vrot.slane %v1534, %v1547
        %v1549 = vcombine.low %v1484, %v1500
        %v1550 = vcombine.high %v1484, %v1500
        %v1552 = vunpack.c.l.s4 1934713408
        %v1553 = vunpack.c.0.s8 %v1552
        %v1554 = vlaneseq
        %v1555 = vshrl.u32 %v1554, 7
        %v1556 = vsub.s32 %v1553, %v1555
        %v1557 = vrot.slane %v1549, %v1556
        %v1559 = vunpack.c.l.s4 1934713408
        %v1560 = vunpack.c.0.s8 %v1559
        %v1561 = vlaneseq
        %v1562 = vshrl.u32 %v1561, 7
        %v1563 = vsub.s32 %v1560, %v1562
        %v1564 = vrot.slane %v1550, %v1563
        %v1565 = vcombine.low %v1509, %v1525
        %v1566 = vcombine.high %v1509, %v1525
        %v1568 = vunpack.c.l.s4 1934713408
        %v1569 = vunpack.c.0.s8 %v1568
        %v1570 = vlaneseq
        %v1571 = vshrl.u32 %v1570, 7
        %v1572 = vsub.s32 %v1569, %v1571
        %v1573 = vrot.slane %v1565, %v1572
        %v1575 = vunpack.c.l.s4 1934713408
        %v1576 = vunpack.c.0.s8 %v1575
        %v1577 = vlaneseq
        %v1578 = vshrl.u32 %v1577, 7
        %v1579 = vsub.s32 %v1576, %v1578
        %v1580 = vrot.slane %v1566, %v1579
        %v1581 = vcombine.low %v1516, %v1532
        %v1582 = vcombine.high %v1516, %v1532
        %v1584 = vunpack.c.l.s4 1934713408
        %v1585 = vunpack.c.0.s8 %v1584
        %v1586 = vlaneseq
        %v1587 = vshrl.u32 %v1586, 7
        %v1588 = vsub.s32 %v1585, %v1587
        %v1589 = vrot.slane %v1581, %v1588
        %v1591 = vunpack.c.l.s4 1934713408
        %v1592 = vunpack.c.0.s8 %v1591
        %v1593 = vlaneseq
        %v1594 = vshrl.u32 %v1593, 7
        %v1595 = vsub.s32 %v1592, %v1594
        %v1596 = vrot.slane %v1582, %v1595
        %v1597 = vcombine.low %v1541, %v1573
        %v1598 = vcombine.high %v1541, %v1573
        %v1599 = vcombine.low %v1548, %v1580
        %v1600 = vcombine.high %v1548, %v1580
        %v1601 = vcombine.low %v1557, %v1589
        %v1602 = vcombine.high %v1557, %v1589
        %v1603 = vcombine.low %v1564, %v1596
        %v1604 = vcombine.high %v1564, %v1596
        %vm1605 = vcmask 31744
        %v1607 = vsel %vm1605, %v1005, 0
        %v1610 = vsel %vm1605, %v1301, 0
        %1612 = vmatprep.subr.mxu0 0.0
        %1613 = vmatpush1.xpose.msra.mxu0 0.0
        %1614 = vmatprep.subr.mxu0 0.0
        %1615 = vmatpush1.xpose.msra.mxu0 0.0
        %1616 = vmatprep.subr.mxu0 0.0
        %1617 = vmatpush1.xpose.msra.mxu0 0.0
        %1618 = vmatprep.subr.mxu0 0.0
        %1619 = vmatpush1.xpose.msra.mxu0 0.0
        %1620 = vmatprep.subr.mxu0 0.0
        %1621 = vmatpush1.xpose.msra.mxu0 0.0
        %1622 = vmatprep.subr.mxu0 0.0
        %1623 = vmatpush1.xpose.msra.mxu0 0.0
        %1624 = vmatprep.subr.mxu0 0.0
        %1625 = vmatpush1.xpose.msra.mxu0 0.0
        %1626 = vmatprep.subr.mxu0 0.0
        %1627 = vmatpush1.xpose.msra.mxu0 0.0
        %1628 = vmatprep.subr.mxu0 0.0
        %1629 = vmatpush1.xpose.msra.mxu0 0.0
        %1630 = vmatprep.subr.mxu0 0.0
        %1631 = vmatpush1.xpose.msra.mxu0 0.0
        %1632 = vmatprep.subr.mxu0 0.0
        %1633 = vmatpush1.xpose.msra.mxu0 0.0
        %1634 = vmatprep.subr.mxu0 0.0
        %1635 = vmatpush1.xpose.msra.mxu0 0.0
        %1636 = vmatprep.subr.mxu0 0.0
        %1637 = vmatpush1.xpose.msra.mxu0 0.0
        %1638 = vmatprep.subr.mxu0 0.0
        %1639 = vmatpush1.xpose.msra.mxu0 0.0
        %1640 = vmatprep.subr.mxu0 0.0
        %1641 = vmatpush1.xpose.msra.mxu0 0.0
        %1642 = vmatprep.subr.mxu0 0.0
        %1643 = vmatpush1.xpose.msra.mxu0 %v1610
        %1644 = vmatprep.subr.mxu0 0.0
        %1645 = vmatpush2.xpose.msra.mxu0 0.0
        %1646 = vmatprep.subr.mxu0 0.0
        %1647 = vmatpush2.xpose.msra.mxu0 0.0
        %1648 = vmatprep.subr.mxu0 0.0
        %1649 = vmatpush2.xpose.msra.mxu0 0.0
        %1650 = vmatprep.subr.mxu0 0.0
        %1651 = vmatpush2.xpose.msra.mxu0 0.0
        %1652 = vmatprep.subr.mxu0 0.0
        %1653 = vmatpush2.xpose.msra.mxu0 0.0
        %1654 = vmatprep.subr.mxu0 0.0
        %1655 = vmatpush2.xpose.msra.mxu0 0.0
        %1656 = vmatprep.subr.mxu0 0.0
        %1657 = vmatpush2.xpose.msra.mxu0 0.0
        %1658 = vmatprep.subr.mxu0 0.0
        %1659 = vmatpush2.xpose.msra.mxu0 0.0
        %1660 = vmatprep.subr.mxu0 0.0
        %1661 = vmatpush2.xpose.msra.mxu0 0.0
        %1662 = vmatprep.subr.mxu0 0.0
        %1663 = vmatpush2.xpose.msra.mxu0 0.0
        %1664 = vmatprep.subr.mxu0 0.0
        %1665 = vmatpush2.xpose.msra.mxu0 0.0
        %1666 = vmatprep.subr.mxu0 0.0
        %1667 = vmatpush2.xpose.msra.mxu0 0.0
        %1668 = vmatprep.subr.mxu0 0.0
        %1669 = vmatpush2.xpose.msra.mxu0 0.0
        %1670 = vmatprep.subr.mxu0 0.0
        %1671 = vmatpush2.xpose.msra.mxu0 0.0
        %1672 = vmatprep.subr.mxu0 0.0
        %1673 = vmatpush2.xpose.msra.mxu0 0.0
        %1674 = vmatprep.subr.mxu0 0.0
        %1675 = vmatpush2.xpose.msra.mxu0 0.0
        %1676 = vmatprep.mubr.f32.mxu0 0.0
        %1677 = vmatmul.mubr.f32.gmra.mxu0 %v1607
        %v1678 = vpop.f32.mrf.mxu0
        %v1679 = vadd.f32 0.0, %v1678
        %v1680 = vpop.f32.mrf.mxu0
        %1681 = vdwg.mxu0
        %v1683 = vsel %vm1605, %v1006, 0
        %v1686 = vsel %vm1605, %v1302, 0
        %1688 = vmatprep.subr.mxu0 0.0
        %1689 = vmatpush1.xpose.msra.mxu0 0.0
        %1690 = vmatprep.subr.mxu0 0.0
        %1691 = vmatpush1.xpose.msra.mxu0 0.0
        %1692 = vmatprep.subr.mxu0 0.0
        %1693 = vmatpush1.xpose.msra.mxu0 0.0
        %1694 = vmatprep.subr.mxu0 0.0
        %1695 = vmatpush1.xpose.msra.mxu0 0.0
        %1696 = vmatprep.subr.mxu0 0.0
        %1697 = vmatpush1.xpose.msra.mxu0 0.0
        %1698 = vmatprep.subr.mxu0 0.0
        %1699 = vmatpush1.xpose.msra.mxu0 0.0
        %1700 = vmatprep.subr.mxu0 0.0
        %1701 = vmatpush1.xpose.msra.mxu0 0.0
        %1702 = vmatprep.subr.mxu0 0.0
        %1703 = vmatpush1.xpose.msra.mxu0 0.0
        %1704 = vmatprep.subr.mxu0 0.0
        %1705 = vmatpush1.xpose.msra.mxu0 0.0
        %1706 = vmatprep.subr.mxu0 0.0
        %1707 = vmatpush1.xpose.msra.mxu0 0.0
        %1708 = vmatprep.subr.mxu0 0.0
        %1709 = vmatpush1.xpose.msra.mxu0 0.0
        %1710 = vmatprep.subr.mxu0 0.0
        %1711 = vmatpush1.xpose.msra.mxu0 0.0
        %1712 = vmatprep.subr.mxu0 0.0
        %1713 = vmatpush1.xpose.msra.mxu0 0.0
        %1714 = vmatprep.subr.mxu0 0.0
        %1715 = vmatpush1.xpose.msra.mxu0 0.0
        %1716 = vmatprep.subr.mxu0 0.0
        %1717 = vmatpush1.xpose.msra.mxu0 0.0
        %1718 = vmatprep.subr.mxu0 0.0
        %1719 = vmatpush1.xpose.msra.mxu0 %v1686
        %1720 = vmatprep.subr.mxu0 0.0
        %1721 = vmatpush2.xpose.msra.mxu0 0.0
        %1722 = vmatprep.subr.mxu0 0.0
        %1723 = vmatpush2.xpose.msra.mxu0 0.0
        %1724 = vmatprep.subr.mxu0 0.0
        %1725 = vmatpush2.xpose.msra.mxu0 0.0
        %1726 = vmatprep.subr.mxu0 0.0
        %1727 = vmatpush2.xpose.msra.mxu0 0.0
        %1728 = vmatprep.subr.mxu0 0.0
        %1729 = vmatpush2.xpose.msra.mxu0 0.0
        %1730 = vmatprep.subr.mxu0 0.0
        %1731 = vmatpush2.xpose.msra.mxu0 0.0
        %1732 = vmatprep.subr.mxu0 0.0
        %1733 = vmatpush2.xpose.msra.mxu0 0.0
        %1734 = vmatprep.subr.mxu0 0.0
        %1735 = vmatpush2.xpose.msra.mxu0 0.0
        %1736 = vmatprep.subr.mxu0 0.0
        %1737 = vmatpush2.xpose.msra.mxu0 0.0
        %1738 = vmatprep.subr.mxu0 0.0
        %1739 = vmatpush2.xpose.msra.mxu0 0.0
        %1740 = vmatprep.subr.mxu0 0.0
        %1741 = vmatpush2.xpose.msra.mxu0 0.0
        %1742 = vmatprep.subr.mxu0 0.0
        %1743 = vmatpush2.xpose.msra.mxu0 0.0
        %1744 = vmatprep.subr.mxu0 0.0
        %1745 = vmatpush2.xpose.msra.mxu0 0.0
        %1746 = vmatprep.subr.mxu0 0.0
        %1747 = vmatpush2.xpose.msra.mxu0 0.0
        %1748 = vmatprep.subr.mxu0 0.0
        %1749 = vmatpush2.xpose.msra.mxu0 0.0
        %1750 = vmatprep.subr.mxu0 0.0
        %1751 = vmatpush2.xpose.msra.mxu0 0.0
        %1752 = vmatprep.mubr.f32.mxu0 0.0
        %1753 = vmatmul.mubr.f32.gmra.mxu0 %v1683
        %v1754 = vpop.f32.mrf.mxu0
        %v1755 = vadd.f32 0.0, %v1754
        %v1756 = vpop.f32.mrf.mxu0
        %1757 = vdwg.mxu0
        %v1759 = vsel %vm1605, %v1007, 0
        %v1762 = vsel %vm1605, %v1303, 0
        %1764 = vmatprep.subr.mxu0 0.0
        %1765 = vmatpush1.xpose.msra.mxu0 0.0
        %1766 = vmatprep.subr.mxu0 0.0
        %1767 = vmatpush1.xpose.msra.mxu0 0.0
        %1768 = vmatprep.subr.mxu0 0.0
        %1769 = vmatpush1.xpose.msra.mxu0 0.0
        %1770 = vmatprep.subr.mxu0 0.0
        %1771 = vmatpush1.xpose.msra.mxu0 0.0
        %1772 = vmatprep.subr.mxu0 0.0
        %1773 = vmatpush1.xpose.msra.mxu0 0.0
        %1774 = vmatprep.subr.mxu0 0.0
        %1775 = vmatpush1.xpose.msra.mxu0 0.0
        %1776 = vmatprep.subr.mxu0 0.0
        %1777 = vmatpush1.xpose.msra.mxu0 0.0
        %1778 = vmatprep.subr.mxu0 0.0
        %1779 = vmatpush1.xpose.msra.mxu0 0.0
        %1780 = vmatprep.subr.mxu0 0.0
        %1781 = vmatpush1.xpose.msra.mxu0 0.0
        %1782 = vmatprep.subr.mxu0 0.0
        %1783 = vmatpush1.xpose.msra.mxu0 0.0
        %1784 = vmatprep.subr.mxu0 0.0
        %1785 = vmatpush1.xpose.msra.mxu0 0.0
        %1786 = vmatprep.subr.mxu0 0.0
        %1787 = vmatpush1.xpose.msra.mxu0 0.0
        %1788 = vmatprep.subr.mxu0 0.0
        %1789 = vmatpush1.xpose.msra.mxu0 0.0
        %1790 = vmatprep.subr.mxu0 0.0
        %1791 = vmatpush1.xpose.msra.mxu0 0.0
        %1792 = vmatprep.subr.mxu0 0.0
        %1793 = vmatpush1.xpose.msra.mxu0 0.0
        %1794 = vmatprep.subr.mxu0 0.0
        %1795 = vmatpush1.xpose.msra.mxu0 %v1762
        %1796 = vmatprep.subr.mxu0 0.0
        %1797 = vmatpush2.xpose.msra.mxu0 0.0
        %1798 = vmatprep.subr.mxu0 0.0
        %1799 = vmatpush2.xpose.msra.mxu0 0.0
        %1800 = vmatprep.subr.mxu0 0.0
        %1801 = vmatpush2.xpose.msra.mxu0 0.0
        %1802 = vmatprep.subr.mxu0 0.0
        %1803 = vmatpush2.xpose.msra.mxu0 0.0
        %1804 = vmatprep.subr.mxu0 0.0
        %1805 = vmatpush2.xpose.msra.mxu0 0.0
        %1806 = vmatprep.subr.mxu0 0.0
        %1807 = vmatpush2.xpose.msra.mxu0 0.0
        %1808 = vmatprep.subr.mxu0 0.0
        %1809 = vmatpush2.xpose.msra.mxu0 0.0
        %1810 = vmatprep.subr.mxu0 0.0
        %1811 = vmatpush2.xpose.msra.mxu0 0.0
        %1812 = vmatprep.subr.mxu0 0.0
        %1813 = vmatpush2.xpose.msra.mxu0 0.0
        %1814 = vmatprep.subr.mxu0 0.0
        %1815 = vmatpush2.xpose.msra.mxu0 0.0
        %1816 = vmatprep.subr.mxu0 0.0
        %1817 = vmatpush2.xpose.msra.mxu0 0.0
        %1818 = vmatprep.subr.mxu0 0.0
        %1819 = vmatpush2.xpose.msra.mxu0 0.0
        %1820 = vmatprep.subr.mxu0 0.0
        %1821 = vmatpush2.xpose.msra.mxu0 0.0
        %1822 = vmatprep.subr.mxu0 0.0
        %1823 = vmatpush2.xpose.msra.mxu0 0.0
        %1824 = vmatprep.subr.mxu0 0.0
        %1825 = vmatpush2.xpose.msra.mxu0 0.0
        %1826 = vmatprep.subr.mxu0 0.0
        %1827 = vmatpush2.xpose.msra.mxu0 0.0
        %1828 = vmatprep.mubr.f32.mxu0 0.0
        %1829 = vmatmul.mubr.f32.gmra.mxu0 %v1759
        %v1830 = vpop.f32.mrf.mxu0
        %v1831 = vadd.f32 0.0, %v1830
        %v1832 = vpop.f32.mrf.mxu0
        %1833 = vdwg.mxu0
        %v1835 = vsel %vm1605, %v1008, 0
        %v1838 = vsel %vm1605, %v1304, 0
        %1840 = vmatprep.subr.mxu0 0.0
        %1841 = vmatpush1.xpose.msra.mxu0 0.0
        %1842 = vmatprep.subr.mxu0 0.0
        %1843 = vmatpush1.xpose.msra.mxu0 0.0
        %1844 = vmatprep.subr.mxu0 0.0
        %1845 = vmatpush1.xpose.msra.mxu0 0.0
        %1846 = vmatprep.subr.mxu0 0.0
        %1847 = vmatpush1.xpose.msra.mxu0 0.0
        %1848 = vmatprep.subr.mxu0 0.0
        %1849 = vmatpush1.xpose.msra.mxu0 0.0
        %1850 = vmatprep.subr.mxu0 0.0
        %1851 = vmatpush1.xpose.msra.mxu0 0.0
        %1852 = vmatprep.subr.mxu0 0.0
        %1853 = vmatpush1.xpose.msra.mxu0 0.0
        %1854 = vmatprep.subr.mxu0 0.0
        %1855 = vmatpush1.xpose.msra.mxu0 0.0
        %1856 = vmatprep.subr.mxu0 0.0
        %1857 = vmatpush1.xpose.msra.mxu0 0.0
        %1858 = vmatprep.subr.mxu0 0.0
        %1859 = vmatpush1.xpose.msra.mxu0 0.0
        %1860 = vmatprep.subr.mxu0 0.0
        %1861 = vmatpush1.xpose.msra.mxu0 0.0
        %1862 = vmatprep.subr.mxu0 0.0
        %1863 = vmatpush1.xpose.msra.mxu0 0.0
        %1864 = vmatprep.subr.mxu0 0.0
        %1865 = vmatpush1.xpose.msra.mxu0 0.0
        %1866 = vmatprep.subr.mxu0 0.0
        %1867 = vmatpush1.xpose.msra.mxu0 0.0
        %1868 = vmatprep.subr.mxu0 0.0
        %1869 = vmatpush1.xpose.msra.mxu0 0.0
        %1870 = vmatprep.subr.mxu0 0.0
        %1871 = vmatpush1.xpose.msra.mxu0 %v1838
        %1872 = vmatprep.subr.mxu0 0.0
        %1873 = vmatpush2.xpose.msra.mxu0 0.0
        %1874 = vmatprep.subr.mxu0 0.0
        %1875 = vmatpush2.xpose.msra.mxu0 0.0
        %1876 = vmatprep.subr.mxu0 0.0
        %1877 = vmatpush2.xpose.msra.mxu0 0.0
        %1878 = vmatprep.subr.mxu0 0.0
        %1879 = vmatpush2.xpose.msra.mxu0 0.0
        %1880 = vmatprep.subr.mxu0 0.0
        %1881 = vmatpush2.xpose.msra.mxu0 0.0
        %1882 = vmatprep.subr.mxu0 0.0
        %1883 = vmatpush2.xpose.msra.mxu0 0.0
        %1884 = vmatprep.subr.mxu0 0.0
        %1885 = vmatpush2.xpose.msra.mxu0 0.0
        %1886 = vmatprep.subr.mxu0 0.0
        %1887 = vmatpush2.xpose.msra.mxu0 0.0
        %1888 = vmatprep.subr.mxu0 0.0
        %1889 = vmatpush2.xpose.msra.mxu0 0.0
        %1890 = vmatprep.subr.mxu0 0.0
        %1891 = vmatpush2.xpose.msra.mxu0 0.0
        %1892 = vmatprep.subr.mxu0 0.0
        %1893 = vmatpush2.xpose.msra.mxu0 0.0
        %1894 = vmatprep.subr.mxu0 0.0
        %1895 = vmatpush2.xpose.msra.mxu0 0.0
        %1896 = vmatprep.subr.mxu0 0.0
        %1897 = vmatpush2.xpose.msra.mxu0 0.0
        %1898 = vmatprep.subr.mxu0 0.0
        %1899 = vmatpush2.xpose.msra.mxu0 0.0
        %1900 = vmatprep.subr.mxu0 0.0
        %1901 = vmatpush2.xpose.msra.mxu0 0.0
        %1902 = vmatprep.subr.mxu0 0.0
        %1903 = vmatpush2.xpose.msra.mxu0 0.0
        %1904 = vmatprep.mubr.f32.mxu0 0.0
        %1905 = vmatmul.mubr.f32.gmra.mxu0 %v1835
        %v1906 = vpop.f32.mrf.mxu0
        %v1907 = vadd.f32 0.0, %v1906
        %v1908 = vpop.f32.mrf.mxu0
        %1909 = vdwg.mxu0
        %v1911 = vsel %vm1605, %v1009, 0
        %v1914 = vsel %vm1605, %v1305, 0
        %1916 = vmatprep.subr.mxu0 0.0
        %1917 = vmatpush1.xpose.msra.mxu0 0.0
        %1918 = vmatprep.subr.mxu0 0.0
        %1919 = vmatpush1.xpose.msra.mxu0 0.0
        %1920 = vmatprep.subr.mxu0 0.0
        %1921 = vmatpush1.xpose.msra.mxu0 0.0
        %1922 = vmatprep.subr.mxu0 0.0
        %1923 = vmatpush1.xpose.msra.mxu0 0.0
        %1924 = vmatprep.subr.mxu0 0.0
        %1925 = vmatpush1.xpose.msra.mxu0 0.0
        %1926 = vmatprep.subr.mxu0 0.0
        %1927 = vmatpush1.xpose.msra.mxu0 0.0
        %1928 = vmatprep.subr.mxu0 0.0
        %1929 = vmatpush1.xpose.msra.mxu0 0.0
        %1930 = vmatprep.subr.mxu0 0.0
        %1931 = vmatpush1.xpose.msra.mxu0 0.0
        %1932 = vmatprep.subr.mxu0 0.0
        %1933 = vmatpush1.xpose.msra.mxu0 0.0
        %1934 = vmatprep.subr.mxu0 0.0
        %1935 = vmatpush1.xpose.msra.mxu0 0.0
        %1936 = vmatprep.subr.mxu0 0.0
        %1937 = vmatpush1.xpose.msra.mxu0 0.0
        %1938 = vmatprep.subr.mxu0 0.0
        %1939 = vmatpush1.xpose.msra.mxu0 0.0
        %1940 = vmatprep.subr.mxu0 0.0
        %1941 = vmatpush1.xpose.msra.mxu0 0.0
        %1942 = vmatprep.subr.mxu0 0.0
        %1943 = vmatpush1.xpose.msra.mxu0 0.0
        %1944 = vmatprep.subr.mxu0 0.0
        %1945 = vmatpush1.xpose.msra.mxu0 0.0
        %1946 = vmatprep.subr.mxu0 0.0
        %1947 = vmatpush1.xpose.msra.mxu0 %v1914
        %1948 = vmatprep.subr.mxu0 0.0
        %1949 = vmatpush2.xpose.msra.mxu0 0.0
        %1950 = vmatprep.subr.mxu0 0.0
        %1951 = vmatpush2.xpose.msra.mxu0 0.0
        %1952 = vmatprep.subr.mxu0 0.0
        %1953 = vmatpush2.xpose.msra.mxu0 0.0
        %1954 = vmatprep.subr.mxu0 0.0
        %1955 = vmatpush2.xpose.msra.mxu0 0.0
        %1956 = vmatprep.subr.mxu0 0.0
        %1957 = vmatpush2.xpose.msra.mxu0 0.0
        %1958 = vmatprep.subr.mxu0 0.0
        %1959 = vmatpush2.xpose.msra.mxu0 0.0
        %1960 = vmatprep.subr.mxu0 0.0
        %1961 = vmatpush2.xpose.msra.mxu0 0.0
        %1962 = vmatprep.subr.mxu0 0.0
        %1963 = vmatpush2.xpose.msra.mxu0 0.0
        %1964 = vmatprep.subr.mxu0 0.0
        %1965 = vmatpush2.xpose.msra.mxu0 0.0
        %1966 = vmatprep.subr.mxu0 0.0
        %1967 = vmatpush2.xpose.msra.mxu0 0.0
        %1968 = vmatprep.subr.mxu0 0.0
        %1969 = vmatpush2.xpose.msra.mxu0 0.0
        %1970 = vmatprep.subr.mxu0 0.0
        %1971 = vmatpush2.xpose.msra.mxu0 0.0
        %1972 = vmatprep.subr.mxu0 0.0
        %1973 = vmatpush2.xpose.msra.mxu0 0.0
        %1974 = vmatprep.subr.mxu0 0.0
        %1975 = vmatpush2.xpose.msra.mxu0 0.0
        %1976 = vmatprep.subr.mxu0 0.0
        %1977 = vmatpush2.xpose.msra.mxu0 0.0
        %1978 = vmatprep.subr.mxu0 0.0
        %1979 = vmatpush2.xpose.msra.mxu0 0.0
        %1980 = vmatprep.mubr.f32.mxu0 0.0
        %1981 = vmatmul.mubr.f32.gmra.mxu0 %v1911
        %v1982 = vpop.f32.mrf.mxu0
        %v1983 = vadd.f32 0.0, %v1982
        %v1984 = vpop.f32.mrf.mxu0
        %1985 = vdwg.mxu0
        %v1987 = vsel %vm1605, %v1010, 0
        %v1990 = vsel %vm1605, %v1306, 0
        %1992 = vmatprep.subr.mxu0 0.0
        %1993 = vmatpush1.xpose.msra.mxu0 0.0
        %1994 = vmatprep.subr.mxu0 0.0
        %1995 = vmatpush1.xpose.msra.mxu0 0.0
        %1996 = vmatprep.subr.mxu0 0.0
        %1997 = vmatpush1.xpose.msra.mxu0 0.0
        %1998 = vmatprep.subr.mxu0 0.0
        %1999 = vmatpush1.xpose.msra.mxu0 0.0
        %2000 = vmatprep.subr.mxu0 0.0
        %2001 = vmatpush1.xpose.msra.mxu0 0.0
        %2002 = vmatprep.subr.mxu0 0.0
        %2003 = vmatpush1.xpose.msra.mxu0 0.0
        %2004 = vmatprep.subr.mxu0 0.0
        %2005 = vmatpush1.xpose.msra.mxu0 0.0
        %2006 = vmatprep.subr.mxu0 0.0
        %2007 = vmatpush1.xpose.msra.mxu0 0.0
        %2008 = vmatprep.subr.mxu0 0.0
        %2009 = vmatpush1.xpose.msra.mxu0 0.0
        %2010 = vmatprep.subr.mxu0 0.0
        %2011 = vmatpush1.xpose.msra.mxu0 0.0
        %2012 = vmatprep.subr.mxu0 0.0
        %2013 = vmatpush1.xpose.msra.mxu0 0.0
        %2014 = vmatprep.subr.mxu0 0.0
        %2015 = vmatpush1.xpose.msra.mxu0 0.0
        %2016 = vmatprep.subr.mxu0 0.0
        %2017 = vmatpush1.xpose.msra.mxu0 0.0
        %2018 = vmatprep.subr.mxu0 0.0
        %2019 = vmatpush1.xpose.msra.mxu0 0.0
        %2020 = vmatprep.subr.mxu0 0.0
        %2021 = vmatpush1.xpose.msra.mxu0 0.0
        %2022 = vmatprep.subr.mxu0 0.0
        %2023 = vmatpush1.xpose.msra.mxu0 %v1990
        %2024 = vmatprep.subr.mxu0 0.0
        %2025 = vmatpush2.xpose.msra.mxu0 0.0
        %2026 = vmatprep.subr.mxu0 0.0
        %2027 = vmatpush2.xpose.msra.mxu0 0.0
        %2028 = vmatprep.subr.mxu0 0.0
        %2029 = vmatpush2.xpose.msra.mxu0 0.0
        %2030 = vmatprep.subr.mxu0 0.0
        %2031 = vmatpush2.xpose.msra.mxu0 0.0
        %2032 = vmatprep.subr.mxu0 0.0
        %2033 = vmatpush2.xpose.msra.mxu0 0.0
        %2034 = vmatprep.subr.mxu0 0.0
        %2035 = vmatpush2.xpose.msra.mxu0 0.0
        %2036 = vmatprep.subr.mxu0 0.0
        %2037 = vmatpush2.xpose.msra.mxu0 0.0
        %2038 = vmatprep.subr.mxu0 0.0
        %2039 = vmatpush2.xpose.msra.mxu0 0.0
        %2040 = vmatprep.subr.mxu0 0.0
        %2041 = vmatpush2.xpose.msra.mxu0 0.0
        %2042 = vmatprep.subr.mxu0 0.0
        %2043 = vmatpush2.xpose.msra.mxu0 0.0
        %2044 = vmatprep.subr.mxu0 0.0
        %2045 = vmatpush2.xpose.msra.mxu0 0.0
        %2046 = vmatprep.subr.mxu0 0.0
        %2047 = vmatpush2.xpose.msra.mxu0 0.0
        %2048 = vmatprep.subr.mxu0 0.0
        %2049 = vmatpush2.xpose.msra.mxu0 0.0
        %2050 = vmatprep.subr.mxu0 0.0
        %2051 = vmatpush2.xpose.msra.mxu0 0.0
        %2052 = vmatprep.subr.mxu0 0.0
        %2053 = vmatpush2.xpose.msra.mxu0 0.0
        %2054 = vmatprep.subr.mxu0 0.0
        %2055 = vmatpush2.xpose.msra.mxu0 0.0
        %2056 = vmatprep.mubr.f32.mxu0 0.0
        %2057 = vmatmul.mubr.f32.gmra.mxu0 %v1987
        %v2058 = vpop.f32.mrf.mxu0
        %v2059 = vadd.f32 0.0, %v2058
        %v2060 = vpop.f32.mrf.mxu0
        %2061 = vdwg.mxu0
        %v2063 = vsel %vm1605, %v1011, 0
        %v2066 = vsel %vm1605, %v1307, 0
        %2068 = vmatprep.subr.mxu0 0.0
        %2069 = vmatpush1.xpose.msra.mxu0 0.0
        %2070 = vmatprep.subr.mxu0 0.0
        %2071 = vmatpush1.xpose.msra.mxu0 0.0
        %2072 = vmatprep.subr.mxu0 0.0
        %2073 = vmatpush1.xpose.msra.mxu0 0.0
        %2074 = vmatprep.subr.mxu0 0.0
        %2075 = vmatpush1.xpose.msra.mxu0 0.0
        %2076 = vmatprep.subr.mxu0 0.0
        %2077 = vmatpush1.xpose.msra.mxu0 0.0
        %2078 = vmatprep.subr.mxu0 0.0
        %2079 = vmatpush1.xpose.msra.mxu0 0.0
        %2080 = vmatprep.subr.mxu0 0.0
        %2081 = vmatpush1.xpose.msra.mxu0 0.0
        %2082 = vmatprep.subr.mxu0 0.0
        %2083 = vmatpush1.xpose.msra.mxu0 0.0
        %2084 = vmatprep.subr.mxu0 0.0
        %2085 = vmatpush1.xpose.msra.mxu0 0.0
        %2086 = vmatprep.subr.mxu0 0.0
        %2087 = vmatpush1.xpose.msra.mxu0 0.0
        %2088 = vmatprep.subr.mxu0 0.0
        %2089 = vmatpush1.xpose.msra.mxu0 0.0
        %2090 = vmatprep.subr.mxu0 0.0
        %2091 = vmatpush1.xpose.msra.mxu0 0.0
        %2092 = vmatprep.subr.mxu0 0.0
        %2093 = vmatpush1.xpose.msra.mxu0 0.0
        %2094 = vmatprep.subr.mxu0 0.0
        %2095 = vmatpush1.xpose.msra.mxu0 0.0
        %2096 = vmatprep.subr.mxu0 0.0
        %2097 = vmatpush1.xpose.msra.mxu0 0.0
        %2098 = vmatprep.subr.mxu0 0.0
        %2099 = vmatpush1.xpose.msra.mxu0 %v2066
        %2100 = vmatprep.subr.mxu0 0.0
        %2101 = vmatpush2.xpose.msra.mxu0 0.0
        %2102 = vmatprep.subr.mxu0 0.0
        %2103 = vmatpush2.xpose.msra.mxu0 0.0
        %2104 = vmatprep.subr.mxu0 0.0
        %2105 = vmatpush2.xpose.msra.mxu0 0.0
        %2106 = vmatprep.subr.mxu0 0.0
        %2107 = vmatpush2.xpose.msra.mxu0 0.0
        %2108 = vmatprep.subr.mxu0 0.0
        %2109 = vmatpush2.xpose.msra.mxu0 0.0
        %2110 = vmatprep.subr.mxu0 0.0
        %2111 = vmatpush2.xpose.msra.mxu0 0.0
        %2112 = vmatprep.subr.mxu0 0.0
        %2113 = vmatpush2.xpose.msra.mxu0 0.0
        %2114 = vmatprep.subr.mxu0 0.0
        %2115 = vmatpush2.xpose.msra.mxu0 0.0
        %2116 = vmatprep.subr.mxu0 0.0
        %2117 = vmatpush2.xpose.msra.mxu0 0.0
        %2118 = vmatprep.subr.mxu0 0.0
        %2119 = vmatpush2.xpose.msra.mxu0 0.0
        %2120 = vmatprep.subr.mxu0 0.0
        %2121 = vmatpush2.xpose.msra.mxu0 0.0
        %2122 = vmatprep.subr.mxu0 0.0
        %2123 = vmatpush2.xpose.msra.mxu0 0.0
        %2124 = vmatprep.subr.mxu0 0.0
        %2125 = vmatpush2.xpose.msra.mxu0 0.0
        %2126 = vmatprep.subr.mxu0 0.0
        %2127 = vmatpush2.xpose.msra.mxu0 0.0
        %2128 = vmatprep.subr.mxu0 0.0
        %2129 = vmatpush2.xpose.msra.mxu0 0.0
        %2130 = vmatprep.subr.mxu0 0.0
        %2131 = vmatpush2.xpose.msra.mxu0 0.0
        %2132 = vmatprep.mubr.f32.mxu0 0.0
        %2133 = vmatmul.mubr.f32.gmra.mxu0 %v2063
        %v2134 = vpop.f32.mrf.mxu0
        %v2135 = vadd.f32 0.0, %v2134
        %v2136 = vpop.f32.mrf.mxu0
        %2137 = vdwg.mxu0
        %v2139 = vsel %vm1605, %v1012, 0
        %v2142 = vsel %vm1605, %v1308, 0
        %2144 = vmatprep.subr.mxu0 0.0
        %2145 = vmatpush1.xpose.msra.mxu0 0.0
        %2146 = vmatprep.subr.mxu0 0.0
        %2147 = vmatpush1.xpose.msra.mxu0 0.0
        %2148 = vmatprep.subr.mxu0 0.0
        %2149 = vmatpush1.xpose.msra.mxu0 0.0
        %2150 = vmatprep.subr.mxu0 0.0
        %2151 = vmatpush1.xpose.msra.mxu0 0.0
        %2152 = vmatprep.subr.mxu0 0.0
        %2153 = vmatpush1.xpose.msra.mxu0 0.0
        %2154 = vmatprep.subr.mxu0 0.0
        %2155 = vmatpush1.xpose.msra.mxu0 0.0
        %2156 = vmatprep.subr.mxu0 0.0
        %2157 = vmatpush1.xpose.msra.mxu0 0.0
        %2158 = vmatprep.subr.mxu0 0.0
        %2159 = vmatpush1.xpose.msra.mxu0 0.0
        %2160 = vmatprep.subr.mxu0 0.0
        %2161 = vmatpush1.xpose.msra.mxu0 0.0
        %2162 = vmatprep.subr.mxu0 0.0
        %2163 = vmatpush1.xpose.msra.mxu0 0.0
        %2164 = vmatprep.subr.mxu0 0.0
        %2165 = vmatpush1.xpose.msra.mxu0 0.0
        %2166 = vmatprep.subr.mxu0 0.0
        %2167 = vmatpush1.xpose.msra.mxu0 0.0
        %2168 = vmatprep.subr.mxu0 0.0
        %2169 = vmatpush1.xpose.msra.mxu0 0.0
        %2170 = vmatprep.subr.mxu0 0.0
        %2171 = vmatpush1.xpose.msra.mxu0 0.0
        %2172 = vmatprep.subr.mxu0 0.0
        %2173 = vmatpush1.xpose.msra.mxu0 0.0
        %2174 = vmatprep.subr.mxu0 0.0
        %2175 = vmatpush1.xpose.msra.mxu0 %v2142
        %2176 = vmatprep.subr.mxu0 0.0
        %2177 = vmatpush2.xpose.msra.mxu0 0.0
        %2178 = vmatprep.subr.mxu0 0.0
        %2179 = vmatpush2.xpose.msra.mxu0 0.0
        %2180 = vmatprep.subr.mxu0 0.0
        %2181 = vmatpush2.xpose.msra.mxu0 0.0
        %2182 = vmatprep.subr.mxu0 0.0
        %2183 = vmatpush2.xpose.msra.mxu0 0.0
        %2184 = vmatprep.subr.mxu0 0.0
        %2185 = vmatpush2.xpose.msra.mxu0 0.0
        %2186 = vmatprep.subr.mxu0 0.0
        %2187 = vmatpush2.xpose.msra.mxu0 0.0
        %2188 = vmatprep.subr.mxu0 0.0
        %2189 = vmatpush2.xpose.msra.mxu0 0.0
        %2190 = vmatprep.subr.mxu0 0.0
        %2191 = vmatpush2.xpose.msra.mxu0 0.0
        %2192 = vmatprep.subr.mxu0 0.0
        %2193 = vmatpush2.xpose.msra.mxu0 0.0
        %2194 = vmatprep.subr.mxu0 0.0
        %2195 = vmatpush2.xpose.msra.mxu0 0.0
        %2196 = vmatprep.subr.mxu0 0.0
        %2197 = vmatpush2.xpose.msra.mxu0 0.0
        %2198 = vmatprep.subr.mxu0 0.0
        %2199 = vmatpush2.xpose.msra.mxu0 0.0
        %2200 = vmatprep.subr.mxu0 0.0
        %2201 = vmatpush2.xpose.msra.mxu0 0.0
        %2202 = vmatprep.subr.mxu0 0.0
        %2203 = vmatpush2.xpose.msra.mxu0 0.0
        %2204 = vmatprep.subr.mxu0 0.0
        %2205 = vmatpush2.xpose.msra.mxu0 0.0
        %2206 = vmatprep.subr.mxu0 0.0
        %2207 = vmatpush2.xpose.msra.mxu0 0.0
        %2208 = vmatprep.mubr.f32.mxu0 0.0
        %2209 = vmatmul.mubr.f32.gmra.mxu0 %v2139
        %v2210 = vpop.f32.mrf.mxu0
        %v2211 = vadd.f32 0.0, %v2210
        %v2212 = vpop.f32.mrf.mxu0
        %2213 = vdwg.mxu0
        %v2214 = vmul.f32 %v1679, 2.0
        %v2215 = vmul.f32 %v1755, 2.0
        %v2216 = vmul.f32 %v1831, 2.0
        %v2217 = vmul.f32 %v1907, 2.0
        %v2218 = vmul.f32 %v1983, 2.0
        %v2219 = vmul.f32 %v2059, 2.0
        %v2220 = vmul.f32 %v2135, 2.0
        %v2221 = vmul.f32 %v2211, 2.0
        %vm2222 = vcmask 64512
        %v2223 = vsel %vm2222, %v2214, -inf
        %2224 = vmax.xlane.f32.xlu0 %v2223
        %v2225 = vpop.xlane.xlu0 %2224
        %v2226 = vsel %vm2222, %v2215, -inf
        %2227 = vmax.xlane.f32.xlu0 %v2226
        %v2228 = vpop.xlane.xlu0 %2227
        %v2229 = vsel %vm2222, %v2216, -inf
        %2230 = vmax.xlane.f32.xlu0 %v2229
        %v2231 = vpop.xlane.xlu0 %2230
        %v2232 = vsel %vm2222, %v2217, -inf
        %2233 = vmax.xlane.f32.xlu0 %v2232
        %v2234 = vpop.xlane.xlu0 %2233
        %v2235 = vsel %vm2222, %v2218, -inf
        %2236 = vmax.xlane.f32.xlu0 %v2235
        %v2237 = vpop.xlane.xlu0 %2236
        %v2238 = vsel %vm2222, %v2219, -inf
        %2239 = vmax.xlane.f32.xlu0 %v2238
        %v2240 = vpop.xlane.xlu0 %2239
        %v2241 = vsel %vm2222, %v2220, -inf
        %2242 = vmax.xlane.f32.xlu0 %v2241
        %v2243 = vpop.xlane.xlu0 %2242
        %v2244 = vsel %vm2222, %v2221, -inf
        %2245 = vmax.xlane.f32.xlu0 %v2244
        %v2246 = vpop.xlane.xlu0 %2245
        %v2247 = vsub.f32 %v2214, %v2225
        %v2248 = vsub.f32 %v2215, %v2228
        %v2249 = vsub.f32 %v2216, %v2231
        %v2250 = vsub.f32 %v2217, %v2234
        %v2251 = vsub.f32 %v2218, %v2237
        %v2252 = vsub.f32 %v2219, %v2240
        %v2253 = vsub.f32 %v2220, %v2243
        %v2254 = vsub.f32 %v2221, %v2246
        %v2255 = vmul.f32 %v2247, 1.442695
        %v2256 = vpow.pop %v2255
        %v2257 = vmul.f32 %v2248, 1.442695
        %v2258 = vpow.pop %v2257
        %v2259 = vmul.f32 %v2249, 1.442695
        %v2260 = vpow.pop %v2259
        %v2261 = vmul.f32 %v2250, 1.442695
        %v2262 = vpow.pop %v2261
        %v2263 = vmul.f32 %v2251, 1.442695
        %v2264 = vpow.pop %v2263
        %v2265 = vmul.f32 %v2252, 1.442695
        %v2266 = vpow.pop %v2265
        %v2267 = vmul.f32 %v2253, 1.442695
        %v2268 = vpow.pop %v2267
        %v2269 = vmul.f32 %v2254, 1.442695
        %v2270 = vpow.pop %v2269
        %v2271 = vsel %vm2222, %v2256, 0.0
        %2272 = vadd.xlane.f32.xlu0 %v2271
        %v2273 = vpop.xlane.xlu0 %2272
        %v2274 = vsel %vm2222, %v2258, 0.0
        %2275 = vadd.xlane.f32.xlu0 %v2274
        %v2276 = vpop.xlane.xlu0 %2275
        %v2277 = vsel %vm2222, %v2260, 0.0
        %2278 = vadd.xlane.f32.xlu0 %v2277
        %v2279 = vpop.xlane.xlu0 %2278
        %v2280 = vsel %vm2222, %v2262, 0.0
        %2281 = vadd.xlane.f32.xlu0 %v2280
        %v2282 = vpop.xlane.xlu0 %2281
        %v2283 = vsel %vm2222, %v2264, 0.0
        %2284 = vadd.xlane.f32.xlu0 %v2283
        %v2285 = vpop.xlane.xlu0 %2284
        %v2286 = vsel %vm2222, %v2266, 0.0
        %2287 = vadd.xlane.f32.xlu0 %v2286
        %v2288 = vpop.xlane.xlu0 %2287
        %v2289 = vsel %vm2222, %v2268, 0.0
        %2290 = vadd.xlane.f32.xlu0 %v2289
        %v2291 = vpop.xlane.xlu0 %2290
        %v2292 = vsel %vm2222, %v2270, 0.0
        %2293 = vadd.xlane.f32.xlu0 %v2292
        %v2294 = vpop.xlane.xlu0 %2293
        %v2295 = vrcp.pop %v2273
        %v2296 = vmul.f32 %v2256, %v2295
        %v2297 = vrcp.pop %v2276
        %v2298 = vmul.f32 %v2258, %v2297
        %v2299 = vrcp.pop %v2279
        %v2300 = vmul.f32 %v2260, %v2299
        %v2301 = vrcp.pop %v2282
        %v2302 = vmul.f32 %v2262, %v2301
        %v2303 = vrcp.pop %v2285
        %v2304 = vmul.f32 %v2264, %v2303
        %v2305 = vrcp.pop %v2288
        %v2306 = vmul.f32 %v2266, %v2305
        %v2307 = vrcp.pop %v2291
        %v2308 = vmul.f32 %v2268, %v2307
        %v2309 = vrcp.pop %v2294
        %v2310 = vmul.f32 %v2270, %v2309
        %v2312 = vsel %vm2222, %v2296, 0
        %2314 = vmatprep.subr.mxu0 0.0
        %2315 = vmatpush1.msra.mxu0 0.0
        %2316 = vmatprep.subr.mxu0 0.0
        %2317 = vmatpush1.msra.mxu0 0.0
        %2318 = vmatprep.subr.mxu0 0.0
        %2319 = vmatpush1.msra.mxu0 0.0
        %2320 = vmatprep.subr.mxu0 0.0
        %2321 = vmatpush1.msra.mxu0 0.0
        %2322 = vmatprep.subr.mxu0 0.0
        %2323 = vmatpush1.msra.mxu0 0.0
        %2324 = vmatprep.subr.mxu0 0.0
        %2325 = vmatpush1.msra.mxu0 0.0
        %2326 = vmatprep.subr.mxu0 0.0
        %2327 = vmatpush1.msra.mxu0 0.0
        %2328 = vmatprep.subr.mxu0 0.0
        %2329 = vmatpush1.msra.mxu0 0.0
        %2330 = vmatprep.subr.mxu0 0.0
        %2331 = vmatpush1.msra.mxu0 0.0
        %2332 = vmatprep.subr.mxu0 0.0
        %2333 = vmatpush1.msra.mxu0 0.0
        %2334 = vmatprep.subr.mxu0 0.0
        %2335 = vmatpush1.msra.mxu0 0.0
        %2336 = vmatprep.subr.mxu0 0.0
        %2337 = vmatpush1.msra.mxu0 0.0
        %2338 = vmatprep.subr.mxu0 0.0
        %2339 = vmatpush1.msra.mxu0 0.0
        %2340 = vmatprep.subr.mxu0 0.0
        %2341 = vmatpush1.msra.mxu0 0.0
        %2342 = vmatprep.subr.mxu0 0.0
        %2343 = vmatpush1.msra.mxu0 0.0
        %2344 = vmatprep.subr.mxu0 0.0
        %2345 = vmatpush1.msra.mxu0 %v1597
        %2346 = vmatprep.subr.mxu0 0.0
        %2347 = vmatpush2.msra.mxu0 0.0
        %2348 = vmatprep.subr.mxu0 0.0
        %2349 = vmatpush2.msra.mxu0 0.0
        %2350 = vmatprep.subr.mxu0 0.0
        %2351 = vmatpush2.msra.mxu0 0.0
        %2352 = vmatprep.subr.mxu0 0.0
        %2353 = vmatpush2.msra.mxu0 0.0
        %2354 = vmatprep.subr.mxu0 0.0
        %2355 = vmatpush2.msra.mxu0 0.0
        %2356 = vmatprep.subr.mxu0 0.0
        %2357 = vmatpush2.msra.mxu0 0.0
        %2358 = vmatprep.subr.mxu0 0.0
        %2359 = vmatpush2.msra.mxu0 0.0
        %2360 = vmatprep.subr.mxu0 0.0
        %2361 = vmatpush2.msra.mxu0 0.0
        %2362 = vmatprep.subr.mxu0 0.0
        %2363 = vmatpush2.msra.mxu0 0.0
        %2364 = vmatprep.subr.mxu0 0.0
        %2365 = vmatpush2.msra.mxu0 0.0
        %2366 = vmatprep.subr.mxu0 0.0
        %2367 = vmatpush2.msra.mxu0 0.0
        %2368 = vmatprep.subr.mxu0 0.0
        %2369 = vmatpush2.msra.mxu0 0.0
        %2370 = vmatprep.subr.mxu0 0.0
        %2371 = vmatpush2.msra.mxu0 0.0
        %2372 = vmatprep.subr.mxu0 0.0
        %2373 = vmatpush2.msra.mxu0 0.0
        %2374 = vmatprep.subr.mxu0 0.0
        %2375 = vmatpush2.msra.mxu0 0.0
        %2376 = vmatprep.subr.mxu0 0.0
        %2377 = vmatpush2.msra.mxu0 0.0
        %2378 = vmatprep.mubr.f32.mxu0 0.0
        %2379 = vmatmul.mubr.f32.gmra.mxu0 %v2312
        %v2380 = vpop.f32.mrf.mxu0
        %v2381 = vadd.f32 0.0, %v2380
        %v2382 = vpop.f32.mrf.mxu0
        %2383 = vdwg.mxu0
        %v2385 = vsel %vm2222, %v2298, 0
        %2387 = vmatprep.subr.mxu0 0.0
        %2388 = vmatpush1.msra.mxu0 0.0
        %2389 = vmatprep.subr.mxu0 0.0
        %2390 = vmatpush1.msra.mxu0 0.0
        %2391 = vmatprep.subr.mxu0 0.0
        %2392 = vmatpush1.msra.mxu0 0.0
        %2393 = vmatprep.subr.mxu0 0.0
        %2394 = vmatpush1.msra.mxu0 0.0
        %2395 = vmatprep.subr.mxu0 0.0
        %2396 = vmatpush1.msra.mxu0 0.0
        %2397 = vmatprep.subr.mxu0 0.0
        %2398 = vmatpush1.msra.mxu0 0.0
        %2399 = vmatprep.subr.mxu0 0.0
        %2400 = vmatpush1.msra.mxu0 0.0
        %2401 = vmatprep.subr.mxu0 0.0
        %2402 = vmatpush1.msra.mxu0 0.0
        %2403 = vmatprep.subr.mxu0 0.0
        %2404 = vmatpush1.msra.mxu0 0.0
        %2405 = vmatprep.subr.mxu0 0.0
        %2406 = vmatpush1.msra.mxu0 0.0
        %2407 = vmatprep.subr.mxu0 0.0
        %2408 = vmatpush1.msra.mxu0 0.0
        %2409 = vmatprep.subr.mxu0 0.0
        %2410 = vmatpush1.msra.mxu0 0.0
        %2411 = vmatprep.subr.mxu0 0.0
        %2412 = vmatpush1.msra.mxu0 0.0
        %2413 = vmatprep.subr.mxu0 0.0
        %2414 = vmatpush1.msra.mxu0 0.0
        %2415 = vmatprep.subr.mxu0 0.0
        %2416 = vmatpush1.msra.mxu0 0.0
        %2417 = vmatprep.subr.mxu0 0.0
        %2418 = vmatpush1.msra.mxu0 %v1598
        %2419 = vmatprep.subr.mxu0 0.0
        %2420 = vmatpush2.msra.mxu0 0.0
        %2421 = vmatprep.subr.mxu0 0.0
        %2422 = vmatpush2.msra.mxu0 0.0
        %2423 = vmatprep.subr.mxu0 0.0
        %2424 = vmatpush2.msra.mxu0 0.0
        %2425 = vmatprep.subr.mxu0 0.0
        %2426 = vmatpush2.msra.mxu0 0.0
        %2427 = vmatprep.subr.mxu0 0.0
        %2428 = vmatpush2.msra.mxu0 0.0
        %2429 = vmatprep.subr.mxu0 0.0
        %2430 = vmatpush2.msra.mxu0 0.0
        %2431 = vmatprep.subr.mxu0 0.0
        %2432 = vmatpush2.msra.mxu0 0.0
        %2433 = vmatprep.subr.mxu0 0.0
        %2434 = vmatpush2.msra.mxu0 0.0
        %2435 = vmatprep.subr.mxu0 0.0
        %2436 = vmatpush2.msra.mxu0 0.0
        %2437 = vmatprep.subr.mxu0 0.0
        %2438 = vmatpush2.msra.mxu0 0.0
        %2439 = vmatprep.subr.mxu0 0.0
        %2440 = vmatpush2.msra.mxu0 0.0
        %2441 = vmatprep.subr.mxu0 0.0
        %2442 = vmatpush2.msra.mxu0 0.0
        %2443 = vmatprep.subr.mxu0 0.0
        %2444 = vmatpush2.msra.mxu0 0.0
        %2445 = vmatprep.subr.mxu0 0.0
        %2446 = vmatpush2.msra.mxu0 0.0
        %2447 = vmatprep.subr.mxu0 0.0
        %2448 = vmatpush2.msra.mxu0 0.0
        %2449 = vmatprep.subr.mxu0 0.0
        %2450 = vmatpush2.msra.mxu0 0.0
        %2451 = vmatprep.mubr.f32.mxu0 0.0
        %2452 = vmatmul.mubr.f32.gmra.mxu0 %v2385
        %v2453 = vpop.f32.mrf.mxu0
        %v2454 = vadd.f32 0.0, %v2453
        %v2455 = vpop.f32.mrf.mxu0
        %2456 = vdwg.mxu0
        %v2458 = vsel %vm2222, %v2300, 0
        %2460 = vmatprep.subr.mxu0 0.0
        %2461 = vmatpush1.msra.mxu0 0.0
        %2462 = vmatprep.subr.mxu0 0.0
        %2463 = vmatpush1.msra.mxu0 0.0
        %2464 = vmatprep.subr.mxu0 0.0
        %2465 = vmatpush1.msra.mxu0 0.0
        %2466 = vmatprep.subr.mxu0 0.0
        %2467 = vmatpush1.msra.mxu0 0.0
        %2468 = vmatprep.subr.mxu0 0.0
        %2469 = vmatpush1.msra.mxu0 0.0
        %2470 = vmatprep.subr.mxu0 0.0
        %2471 = vmatpush1.msra.mxu0 0.0
        %2472 = vmatprep.subr.mxu0 0.0
        %2473 = vmatpush1.msra.mxu0 0.0
        %2474 = vmatprep.subr.mxu0 0.0
        %2475 = vmatpush1.msra.mxu0 0.0
        %2476 = vmatprep.subr.mxu0 0.0
        %2477 = vmatpush1.msra.mxu0 0.0
        %2478 = vmatprep.subr.mxu0 0.0
        %2479 = vmatpush1.msra.mxu0 0.0
        %2480 = vmatprep.subr.mxu0 0.0
        %2481 = vmatpush1.msra.mxu0 0.0
        %2482 = vmatprep.subr.mxu0 0.0
        %2483 = vmatpush1.msra.mxu0 0.0
        %2484 = vmatprep.subr.mxu0 0.0
        %2485 = vmatpush1.msra.mxu0 0.0
        %2486 = vmatprep.subr.mxu0 0.0
        %2487 = vmatpush1.msra.mxu0 0.0
        %2488 = vmatprep.subr.mxu0 0.0
        %2489 = vmatpush1.msra.mxu0 0.0
        %2490 = vmatprep.subr.mxu0 0.0
        %2491 = vmatpush1.msra.mxu0 %v1599
        %2492 = vmatprep.subr.mxu0 0.0
        %2493 = vmatpush2.msra.mxu0 0.0
        %2494 = vmatprep.subr.mxu0 0.0
        %2495 = vmatpush2.msra.mxu0 0.0
        %2496 = vmatprep.subr.mxu0 0.0
        %2497 = vmatpush2.msra.mxu0 0.0
        %2498 = vmatprep.subr.mxu0 0.0
        %2499 = vmatpush2.msra.mxu0 0.0
        %2500 = vmatprep.subr.mxu0 0.0
        %2501 = vmatpush2.msra.mxu0 0.0
        %2502 = vmatprep.subr.mxu0 0.0
        %2503 = vmatpush2.msra.mxu0 0.0
        %2504 = vmatprep.subr.mxu0 0.0
        %2505 = vmatpush2.msra.mxu0 0.0
        %2506 = vmatprep.subr.mxu0 0.0
        %2507 = vmatpush2.msra.mxu0 0.0
        %2508 = vmatprep.subr.mxu0 0.0
        %2509 = vmatpush2.msra.mxu0 0.0
        %2510 = vmatprep.subr.mxu0 0.0
        %2511 = vmatpush2.msra.mxu0 0.0
        %2512 = vmatprep.subr.mxu0 0.0
        %2513 = vmatpush2.msra.mxu0 0.0
        %2514 = vmatprep.subr.mxu0 0.0
        %2515 = vmatpush2.msra.mxu0 0.0
        %2516 = vmatprep.subr.mxu0 0.0
        %2517 = vmatpush2.msra.mxu0 0.0
        %2518 = vmatprep.subr.mxu0 0.0
        %2519 = vmatpush2.msra.mxu0 0.0
        %2520 = vmatprep.subr.mxu0 0.0
        %2521 = vmatpush2.msra.mxu0 0.0
        %2522 = vmatprep.subr.mxu0 0.0
        %2523 = vmatpush2.msra.mxu0 0.0
        %2524 = vmatprep.mubr.f32.mxu0 0.0
        %2525 = vmatmul.mubr.f32.gmra.mxu0 %v2458
        %v2526 = vpop.f32.mrf.mxu0
        %v2527 = vadd.f32 0.0, %v2526
        %v2528 = vpop.f32.mrf.mxu0
        %2529 = vdwg.mxu0
        %v2531 = vsel %vm2222, %v2302, 0
        %2533 = vmatprep.subr.mxu0 0.0
        %2534 = vmatpush1.msra.mxu0 0.0
        %2535 = vmatprep.subr.mxu0 0.0
        %2536 = vmatpush1.msra.mxu0 0.0
        %2537 = vmatprep.subr.mxu0 0.0
        %2538 = vmatpush1.msra.mxu0 0.0
        %2539 = vmatprep.subr.mxu0 0.0
        %2540 = vmatpush1.msra.mxu0 0.0
        %2541 = vmatprep.subr.mxu0 0.0
        %2542 = vmatpush1.msra.mxu0 0.0
        %2543 = vmatprep.subr.mxu0 0.0
        %2544 = vmatpush1.msra.mxu0 0.0
        %2545 = vmatprep.subr.mxu0 0.0
        %2546 = vmatpush1.msra.mxu0 0.0
        %2547 = vmatprep.subr.mxu0 0.0
        %2548 = vmatpush1.msra.mxu0 0.0
        %2549 = vmatprep.subr.mxu0 0.0
        %2550 = vmatpush1.msra.mxu0 0.0
        %2551 = vmatprep.subr.mxu0 0.0
        %2552 = vmatpush1.msra.mxu0 0.0
        %2553 = vmatprep.subr.mxu0 0.0
        %2554 = vmatpush1.msra.mxu0 0.0
        %2555 = vmatprep.subr.mxu0 0.0
        %2556 = vmatpush1.msra.mxu0 0.0
        %2557 = vmatprep.subr.mxu0 0.0
        %2558 = vmatpush1.msra.mxu0 0.0
        %2559 = vmatprep.subr.mxu0 0.0
        %2560 = vmatpush1.msra.mxu0 0.0
        %2561 = vmatprep.subr.mxu0 0.0
        %2562 = vmatpush1.msra.mxu0 0.0
        %2563 = vmatprep.subr.mxu0 0.0
        %2564 = vmatpush1.msra.mxu0 %v1600
        %2565 = vmatprep.subr.mxu0 0.0
        %2566 = vmatpush2.msra.mxu0 0.0
        %2567 = vmatprep.subr.mxu0 0.0
        %2568 = vmatpush2.msra.mxu0 0.0
        %2569 = vmatprep.subr.mxu0 0.0
        %2570 = vmatpush2.msra.mxu0 0.0
        %2571 = vmatprep.subr.mxu0 0.0
        %2572 = vmatpush2.msra.mxu0 0.0
        %2573 = vmatprep.subr.mxu0 0.0
        %2574 = vmatpush2.msra.mxu0 0.0
        %2575 = vmatprep.subr.mxu0 0.0
        %2576 = vmatpush2.msra.mxu0 0.0
        %2577 = vmatprep.subr.mxu0 0.0
        %2578 = vmatpush2.msra.mxu0 0.0
        %2579 = vmatprep.subr.mxu0 0.0
        %2580 = vmatpush2.msra.mxu0 0.0
        %2581 = vmatprep.subr.mxu0 0.0
        %2582 = vmatpush2.msra.mxu0 0.0
        %2583 = vmatprep.subr.mxu0 0.0
        %2584 = vmatpush2.msra.mxu0 0.0
        %2585 = vmatprep.subr.mxu0 0.0
        %2586 = vmatpush2.msra.mxu0 0.0
        %2587 = vmatprep.subr.mxu0 0.0
        %2588 = vmatpush2.msra.mxu0 0.0
        %2589 = vmatprep.subr.mxu0 0.0
        %2590 = vmatpush2.msra.mxu0 0.0
        %2591 = vmatprep.subr.mxu0 0.0
        %2592 = vmatpush2.msra.mxu0 0.0
        %2593 = vmatprep.subr.mxu0 0.0
        %2594 = vmatpush2.msra.mxu0 0.0
        %2595 = vmatprep.subr.mxu0 0.0
        %2596 = vmatpush2.msra.mxu0 0.0
        %2597 = vmatprep.mubr.f32.mxu0 0.0
        %2598 = vmatmul.mubr.f32.gmra.mxu0 %v2531
        %v2599 = vpop.f32.mrf.mxu0
        %v2600 = vadd.f32 0.0, %v2599
        %v2601 = vpop.f32.mrf.mxu0
        %2602 = vdwg.mxu0
        %v2604 = vsel %vm2222, %v2304, 0
        %2606 = vmatprep.subr.mxu0 0.0
        %2607 = vmatpush1.msra.mxu0 0.0
        %2608 = vmatprep.subr.mxu0 0.0
        %2609 = vmatpush1.msra.mxu0 0.0
        %2610 = vmatprep.subr.mxu0 0.0
        %2611 = vmatpush1.msra.mxu0 0.0
        %2612 = vmatprep.subr.mxu0 0.0
        %2613 = vmatpush1.msra.mxu0 0.0
        %2614 = vmatprep.subr.mxu0 0.0
        %2615 = vmatpush1.msra.mxu0 0.0
        %2616 = vmatprep.subr.mxu0 0.0
        %2617 = vmatpush1.msra.mxu0 0.0
        %2618 = vmatprep.subr.mxu0 0.0
        %2619 = vmatpush1.msra.mxu0 0.0
        %2620 = vmatprep.subr.mxu0 0.0
        %2621 = vmatpush1.msra.mxu0 0.0
        %2622 = vmatprep.subr.mxu0 0.0
        %2623 = vmatpush1.msra.mxu0 0.0
        %2624 = vmatprep.subr.mxu0 0.0
        %2625 = vmatpush1.msra.mxu0 0.0
        %2626 = vmatprep.subr.mxu0 0.0
        %2627 = vmatpush1.msra.mxu0 0.0
        %2628 = vmatprep.subr.mxu0 0.0
        %2629 = vmatpush1.msra.mxu0 0.0
        %2630 = vmatprep.subr.mxu0 0.0
        %2631 = vmatpush1.msra.mxu0 0.0
        %2632 = vmatprep.subr.mxu0 0.0
        %2633 = vmatpush1.msra.mxu0 0.0
        %2634 = vmatprep.subr.mxu0 0.0
        %2635 = vmatpush1.msra.mxu0 0.0
        %2636 = vmatprep.subr.mxu0 0.0
        %2637 = vmatpush1.msra.mxu0 %v1601
        %2638 = vmatprep.subr.mxu0 0.0
        %2639 = vmatpush2.msra.mxu0 0.0
        %2640 = vmatprep.subr.mxu0 0.0
        %2641 = vmatpush2.msra.mxu0 0.0
        %2642 = vmatprep.subr.mxu0 0.0
        %2643 = vmatpush2.msra.mxu0 0.0
        %2644 = vmatprep.subr.mxu0 0.0
        %2645 = vmatpush2.msra.mxu0 0.0
        %2646 = vmatprep.subr.mxu0 0.0
        %2647 = vmatpush2.msra.mxu0 0.0
        %2648 = vmatprep.subr.mxu0 0.0
        %2649 = vmatpush2.msra.mxu0 0.0
        %2650 = vmatprep.subr.mxu0 0.0
        %2651 = vmatpush2.msra.mxu0 0.0
        %2652 = vmatprep.subr.mxu0 0.0
        %2653 = vmatpush2.msra.mxu0 0.0
        %2654 = vmatprep.subr.mxu0 0.0
        %2655 = vmatpush2.msra.mxu0 0.0
        %2656 = vmatprep.subr.mxu0 0.0
        %2657 = vmatpush2.msra.mxu0 0.0
        %2658 = vmatprep.subr.mxu0 0.0
        %2659 = vmatpush2.msra.mxu0 0.0
        %2660 = vmatprep.subr.mxu0 0.0
        %2661 = vmatpush2.msra.mxu0 0.0
        %2662 = vmatprep.subr.mxu0 0.0
        %2663 = vmatpush2.msra.mxu0 0.0
        %2664 = vmatprep.subr.mxu0 0.0
        %2665 = vmatpush2.msra.mxu0 0.0
        %2666 = vmatprep.subr.mxu0 0.0
        %2667 = vmatpush2.msra.mxu0 0.0
        %2668 = vmatprep.subr.mxu0 0.0
        %2669 = vmatpush2.msra.mxu0 0.0
        %2670 = vmatprep.mubr.f32.mxu0 0.0
        %2671 = vmatmul.mubr.f32.gmra.mxu0 %v2604
        %v2672 = vpop.f32.mrf.mxu0
        %v2673 = vadd.f32 0.0, %v2672
        %v2674 = vpop.f32.mrf.mxu0
        %2675 = vdwg.mxu0
        %v2677 = vsel %vm2222, %v2306, 0
        %2679 = vmatprep.subr.mxu0 0.0
        %2680 = vmatpush1.msra.mxu0 0.0
        %2681 = vmatprep.subr.mxu0 0.0
        %2682 = vmatpush1.msra.mxu0 0.0
        %2683 = vmatprep.subr.mxu0 0.0
        %2684 = vmatpush1.msra.mxu0 0.0
        %2685 = vmatprep.subr.mxu0 0.0
        %2686 = vmatpush1.msra.mxu0 0.0
        %2687 = vmatprep.subr.mxu0 0.0
        %2688 = vmatpush1.msra.mxu0 0.0
        %2689 = vmatprep.subr.mxu0 0.0
        %2690 = vmatpush1.msra.mxu0 0.0
        %2691 = vmatprep.subr.mxu0 0.0
        %2692 = vmatpush1.msra.mxu0 0.0
        %2693 = vmatprep.subr.mxu0 0.0
        %2694 = vmatpush1.msra.mxu0 0.0
        %2695 = vmatprep.subr.mxu0 0.0
        %2696 = vmatpush1.msra.mxu0 0.0
        %2697 = vmatprep.subr.mxu0 0.0
        %2698 = vmatpush1.msra.mxu0 0.0
        %2699 = vmatprep.subr.mxu0 0.0
        %2700 = vmatpush1.msra.mxu0 0.0
        %2701 = vmatprep.subr.mxu0 0.0
        %2702 = vmatpush1.msra.mxu0 0.0
        %2703 = vmatprep.subr.mxu0 0.0
        %2704 = vmatpush1.msra.mxu0 0.0
        %2705 = vmatprep.subr.mxu0 0.0
        %2706 = vmatpush1.msra.mxu0 0.0
        %2707 = vmatprep.subr.mxu0 0.0
        %2708 = vmatpush1.msra.mxu0 0.0
        %2709 = vmatprep.subr.mxu0 0.0
        %2710 = vmatpush1.msra.mxu0 %v1602
        %2711 = vmatprep.subr.mxu0 0.0
        %2712 = vmatpush2.msra.mxu0 0.0
        %2713 = vmatprep.subr.mxu0 0.0
        %2714 = vmatpush2.msra.mxu0 0.0
        %2715 = vmatprep.subr.mxu0 0.0
        %2716 = vmatpush2.msra.mxu0 0.0
        %2717 = vmatprep.subr.mxu0 0.0
        %2718 = vmatpush2.msra.mxu0 0.0
        %2719 = vmatprep.subr.mxu0 0.0
        %2720 = vmatpush2.msra.mxu0 0.0
        %2721 = vmatprep.subr.mxu0 0.0
        %2722 = vmatpush2.msra.mxu0 0.0
        %2723 = vmatprep.subr.mxu0 0.0
        %2724 = vmatpush2.msra.mxu0 0.0
        %2725 = vmatprep.subr.mxu0 0.0
        %2726 = vmatpush2.msra.mxu0 0.0
        %2727 = vmatprep.subr.mxu0 0.0
        %2728 = vmatpush2.msra.mxu0 0.0
        %2729 = vmatprep.subr.mxu0 0.0
        %2730 = vmatpush2.msra.mxu0 0.0
        %2731 = vmatprep.subr.mxu0 0.0
        %2732 = vmatpush2.msra.mxu0 0.0
        %2733 = vmatprep.subr.mxu0 0.0
        %2734 = vmatpush2.msra.mxu0 0.0
        %2735 = vmatprep.subr.mxu0 0.0
        %2736 = vmatpush2.msra.mxu0 0.0
        %2737 = vmatprep.subr.mxu0 0.0
        %2738 = vmatpush2.msra.mxu0 0.0
        %2739 = vmatprep.subr.mxu0 0.0
        %2740 = vmatpush2.msra.mxu0 0.0
        %2741 = vmatprep.subr.mxu0 0.0
        %2742 = vmatpush2.msra.mxu0 0.0
        %2743 = vmatprep.mubr.f32.mxu0 0.0
        %2744 = vmatmul.mubr.f32.gmra.mxu0 %v2677
        %v2745 = vpop.f32.mrf.mxu0
        %v2746 = vadd.f32 0.0, %v2745
        %v2747 = vpop.f32.mrf.mxu0
        %2748 = vdwg.mxu0
        %v2750 = vsel %vm2222, %v2308, 0
        %2752 = vmatprep.subr.mxu0 0.0
        %2753 = vmatpush1.msra.mxu0 0.0
        %2754 = vmatprep.subr.mxu0 0.0
        %2755 = vmatpush1.msra.mxu0 0.0
        %2756 = vmatprep.subr.mxu0 0.0
        %2757 = vmatpush1.msra.mxu0 0.0
        %2758 = vmatprep.subr.mxu0 0.0
        %2759 = vmatpush1.msra.mxu0 0.0
        %2760 = vmatprep.subr.mxu0 0.0
        %2761 = vmatpush1.msra.mxu0 0.0
        %2762 = vmatprep.subr.mxu0 0.0
        %2763 = vmatpush1.msra.mxu0 0.0
        %2764 = vmatprep.subr.mxu0 0.0
        %2765 = vmatpush1.msra.mxu0 0.0
        %2766 = vmatprep.subr.mxu0 0.0
        %2767 = vmatpush1.msra.mxu0 0.0
        %2768 = vmatprep.subr.mxu0 0.0
        %2769 = vmatpush1.msra.mxu0 0.0
        %2770 = vmatprep.subr.mxu0 0.0
        %2771 = vmatpush1.msra.mxu0 0.0
        %2772 = vmatprep.subr.mxu0 0.0
        %2773 = vmatpush1.msra.mxu0 0.0
        %2774 = vmatprep.subr.mxu0 0.0
        %2775 = vmatpush1.msra.mxu0 0.0
        %2776 = vmatprep.subr.mxu0 0.0
        %2777 = vmatpush1.msra.mxu0 0.0
        %2778 = vmatprep.subr.mxu0 0.0
        %2779 = vmatpush1.msra.mxu0 0.0
        %2780 = vmatprep.subr.mxu0 0.0
        %2781 = vmatpush1.msra.mxu0 0.0
        %2782 = vmatprep.subr.mxu0 0.0
        %2783 = vmatpush1.msra.mxu0 %v1603
        %2784 = vmatprep.subr.mxu0 0.0
        %2785 = vmatpush2.msra.mxu0 0.0
        %2786 = vmatprep.subr.mxu0 0.0
        %2787 = vmatpush2.msra.mxu0 0.0
        %2788 = vmatprep.subr.mxu0 0.0
        %2789 = vmatpush2.msra.mxu0 0.0
        %2790 = vmatprep.subr.mxu0 0.0
        %2791 = vmatpush2.msra.mxu0 0.0
        %2792 = vmatprep.subr.mxu0 0.0
        %2793 = vmatpush2.msra.mxu0 0.0
        %2794 = vmatprep.subr.mxu0 0.0
        %2795 = vmatpush2.msra.mxu0 0.0
        %2796 = vmatprep.subr.mxu0 0.0
        %2797 = vmatpush2.msra.mxu0 0.0
        %2798 = vmatprep.subr.mxu0 0.0
        %2799 = vmatpush2.msra.mxu0 0.0
        %2800 = vmatprep.subr.mxu0 0.0
        %2801 = vmatpush2.msra.mxu0 0.0
        %2802 = vmatprep.subr.mxu0 0.0
        %2803 = vmatpush2.msra.mxu0 0.0
        %2804 = vmatprep.subr.mxu0 0.0
        %2805 = vmatpush2.msra.mxu0 0.0
        %2806 = vmatprep.subr.mxu0 0.0
        %2807 = vmatpush2.msra.mxu0 0.0
        %2808 = vmatprep.subr.mxu0 0.0
        %2809 = vmatpush2.msra.mxu0 0.0
        %2810 = vmatprep.subr.mxu0 0.0
        %2811 = vmatpush2.msra.mxu0 0.0
        %2812 = vmatprep.subr.mxu0 0.0
        %2813 = vmatpush2.msra.mxu0 0.0
        %2814 = vmatprep.subr.mxu0 0.0
        %2815 = vmatpush2.msra.mxu0 0.0
        %2816 = vmatprep.mubr.f32.mxu0 0.0
        %2817 = vmatmul.mubr.f32.gmra.mxu0 %v2750
        %v2818 = vpop.f32.mrf.mxu0
        %v2819 = vadd.f32 0.0, %v2818
        %v2820 = vpop.f32.mrf.mxu0
        %2821 = vdwg.mxu0
        %v2823 = vsel %vm2222, %v2310, 0
        %2825 = vmatprep.subr.mxu0 0.0
        %2826 = vmatpush1.msra.mxu0 0.0
        %2827 = vmatprep.subr.mxu0 0.0
        %2828 = vmatpush1.msra.mxu0 0.0
        %2829 = vmatprep.subr.mxu0 0.0
        %2830 = vmatpush1.msra.mxu0 0.0
        %2831 = vmatprep.subr.mxu0 0.0
        %2832 = vmatpush1.msra.mxu0 0.0
        %2833 = vmatprep.subr.mxu0 0.0
        %2834 = vmatpush1.msra.mxu0 0.0
        %2835 = vmatprep.subr.mxu0 0.0
        %2836 = vmatpush1.msra.mxu0 0.0
        %2837 = vmatprep.subr.mxu0 0.0
        %2838 = vmatpush1.msra.mxu0 0.0
        %2839 = vmatprep.subr.mxu0 0.0
        %2840 = vmatpush1.msra.mxu0 0.0
        %2841 = vmatprep.subr.mxu0 0.0
        %2842 = vmatpush1.msra.mxu0 0.0
        %2843 = vmatprep.subr.mxu0 0.0
        %2844 = vmatpush1.msra.mxu0 0.0
        %2845 = vmatprep.subr.mxu0 0.0
        %2846 = vmatpush1.msra.mxu0 0.0
        %2847 = vmatprep.subr.mxu0 0.0
        %2848 = vmatpush1.msra.mxu0 0.0
        %2849 = vmatprep.subr.mxu0 0.0
        %2850 = vmatpush1.msra.mxu0 0.0
        %2851 = vmatprep.subr.mxu0 0.0
        %2852 = vmatpush1.msra.mxu0 0.0
        %2853 = vmatprep.subr.mxu0 0.0
        %2854 = vmatpush1.msra.mxu0 0.0
        %2855 = vmatprep.subr.mxu0 0.0
        %2856 = vmatpush1.msra.mxu0 %v1604
        %2857 = vmatprep.subr.mxu0 0.0
        %2858 = vmatpush2.msra.mxu0 0.0
        %2859 = vmatprep.subr.mxu0 0.0
        %2860 = vmatpush2.msra.mxu0 0.0
        %2861 = vmatprep.subr.mxu0 0.0
        %2862 = vmatpush2.msra.mxu0 0.0
        %2863 = vmatprep.subr.mxu0 0.0
        %2864 = vmatpush2.msra.mxu0 0.0
        %2865 = vmatprep.subr.mxu0 0.0
        %2866 = vmatpush2.msra.mxu0 0.0
        %2867 = vmatprep.subr.mxu0 0.0
        %2868 = vmatpush2.msra.mxu0 0.0
        %2869 = vmatprep.subr.mxu0 0.0
        %2870 = vmatpush2.msra.mxu0 0.0
        %2871 = vmatprep.subr.mxu0 0.0
        %2872 = vmatpush2.msra.mxu0 0.0
        %2873 = vmatprep.subr.mxu0 0.0
        %2874 = vmatpush2.msra.mxu0 0.0
        %2875 = vmatprep.subr.mxu0 0.0
        %2876 = vmatpush2.msra.mxu0 0.0
        %2877 = vmatprep.subr.mxu0 0.0
        %2878 = vmatpush2.msra.mxu0 0.0
        %2879 = vmatprep.subr.mxu0 0.0
        %2880 = vmatpush2.msra.mxu0 0.0
        %2881 = vmatprep.subr.mxu0 0.0
        %2882 = vmatpush2.msra.mxu0 0.0
        %2883 = vmatprep.subr.mxu0 0.0
        %2884 = vmatpush2.msra.mxu0 0.0
        %2885 = vmatprep.subr.mxu0 0.0
        %2886 = vmatpush2.msra.mxu0 0.0
        %2887 = vmatprep.subr.mxu0 0.0
        %2888 = vmatpush2.msra.mxu0 0.0
        %2889 = vmatprep.mubr.f32.mxu0 0.0
        %2890 = vmatmul.mubr.f32.gmra.mxu0 %v2823
        %v2891 = vpop.f32.mrf.mxu0
        %v2892 = vadd.f32 0.0, %v2891
        %v2893 = vpop.f32.mrf.mxu0
        %2894 = vdwg.mxu0
        %v2895 = vcombine.low %v2381, %v2527
        %v2896 = vcombine.high %v2381, %v2527
        %v2898 = vunpack.c.l.s4 1983009808
        %v2899 = vunpack.c.0.s8 %v2898
        %v2900 = vlaneseq
        %v2901 = vshrl.u32 %v2900, 7
        %v2902 = vsub.s32 %v2899, %v2901
        %v2903 = vrot.slane %v2895, %v2902
        %v2905 = vunpack.c.l.s4 1983009808
        %v2906 = vunpack.c.0.s8 %v2905
        %v2907 = vlaneseq
        %v2908 = vshrl.u32 %v2907, 7
        %v2909 = vsub.s32 %v2906, %v2908
        %v2910 = vrot.slane %v2896, %v2909
        %v2911 = vcombine.low %v2454, %v2600
        %v2912 = vcombine.high %v2454, %v2600
        %v2914 = vunpack.c.l.s4 1983009808
        %v2915 = vunpack.c.0.s8 %v2914
        %v2916 = vlaneseq
        %v2917 = vshrl.u32 %v2916, 7
        %v2918 = vsub.s32 %v2915, %v2917
        %v2919 = vrot.slane %v2911, %v2918
        %v2921 = vunpack.c.l.s4 1983009808
        %v2922 = vunpack.c.0.s8 %v2921
        %v2923 = vlaneseq
        %v2924 = vshrl.u32 %v2923, 7
        %v2925 = vsub.s32 %v2922, %v2924
        %v2926 = vrot.slane %v2912, %v2925
        %v2927 = vcombine.low %v2673, %v2819
        %v2928 = vcombine.high %v2673, %v2819
        %v2930 = vunpack.c.l.s4 1983009808
        %v2931 = vunpack.c.0.s8 %v2930
        %v2932 = vlaneseq
        %v2933 = vshrl.u32 %v2932, 7
        %v2934 = vsub.s32 %v2931, %v2933
        %v2935 = vrot.slane %v2927, %v2934
        %v2937 = vunpack.c.l.s4 1983009808
        %v2938 = vunpack.c.0.s8 %v2937
        %v2939 = vlaneseq
        %v2940 = vshrl.u32 %v2939, 7
        %v2941 = vsub.s32 %v2938, %v2940
        %v2942 = vrot.slane %v2928, %v2941
        %v2943 = vcombine.low %v2746, %v2892
        %v2944 = vcombine.high %v2746, %v2892
        %v2946 = vunpack.c.l.s4 1983009808
        %v2947 = vunpack.c.0.s8 %v2946
        %v2948 = vlaneseq
        %v2949 = vshrl.u32 %v2948, 7
        %v2950 = vsub.s32 %v2947, %v2949
        %v2951 = vrot.slane %v2943, %v2950
        %v2953 = vunpack.c.l.s4 1983009808
        %v2954 = vunpack.c.0.s8 %v2953
        %v2955 = vlaneseq
        %v2956 = vshrl.u32 %v2955, 7
        %v2957 = vsub.s32 %v2954, %v2956
        %v2958 = vrot.slane %v2944, %v2957
        %v2959 = vcombine.low %v2903, %v2919
        %v2960 = vcombine.high %v2903, %v2919
        %v2962 = vunpack.c.l.s4 1934713408
        %v2963 = vunpack.c.0.s8 %v2962
        %v2964 = vlaneseq
        %v2965 = vshrl.u32 %v2964, 7
        %v2966 = vsub.s32 %v2963, %v2965
        %v2967 = vrot.slane %v2959, %v2966
        %v2969 = vunpack.c.l.s4 1934713408
        %v2970 = vunpack.c.0.s8 %v2969
        %v2971 = vlaneseq
        %v2972 = vshrl.u32 %v2971, 7
        %v2973 = vsub.s32 %v2970, %v2972
        %v2974 = vrot.slane %v2960, %v2973
        %v2975 = vcombine.low %v2910, %v2926
        %v2976 = vcombine.high %v2910, %v2926
        %v2978 = vunpack.c.l.s4 1934713408
        %v2979 = vunpack.c.0.s8 %v2978
        %v2980 = vlaneseq
        %v2981 = vshrl.u32 %v2980, 7
        %v2982 = vsub.s32 %v2979, %v2981
        %v2983 = vrot.slane %v2975, %v2982
        %v2985 = vunpack.c.l.s4 1934713408
        %v2986 = vunpack.c.0.s8 %v2985
        %v2987 = vlaneseq
        %v2988 = vshrl.u32 %v2987, 7
        %v2989 = vsub.s32 %v2986, %v2988
        %v2990 = vrot.slane %v2976, %v2989
        %v2991 = vcombine.low %v2935, %v2951
        %v2992 = vcombine.high %v2935, %v2951
        %v2994 = vunpack.c.l.s4 1934713408
        %v2995 = vunpack.c.0.s8 %v2994
        %v2996 = vlaneseq
        %v2997 = vshrl.u32 %v2996, 7
        %v2998 = vsub.s32 %v2995, %v2997
        %v2999 = vrot.slane %v2991, %v2998
        %v3001 = vunpack.c.l.s4 1934713408
        %v3002 = vunpack.c.0.s8 %v3001
        %v3003 = vlaneseq
        %v3004 = vshrl.u32 %v3003, 7
        %v3005 = vsub.s32 %v3002, %v3004
        %v3006 = vrot.slane %v2992, %v3005
        %v3007 = vcombine.low %v2942, %v2958
        %v3008 = vcombine.high %v2942, %v2958
        %v3010 = vunpack.c.l.s4 1934713408
        %v3011 = vunpack.c.0.s8 %v3010
        %v3012 = vlaneseq
        %v3013 = vshrl.u32 %v3012, 7
        %v3014 = vsub.s32 %v3011, %v3013
        %v3015 = vrot.slane %v3007, %v3014
        %v3017 = vunpack.c.l.s4 1934713408
        %v3018 = vunpack.c.0.s8 %v3017
        %v3019 = vlaneseq
        %v3020 = vshrl.u32 %v3019, 7
        %v3021 = vsub.s32 %v3018, %v3020
        %v3022 = vrot.slane %v3008, %v3021
        %v3023 = vcombine.low %v2967, %v2999
        %v3024 = vcombine.high %v2967, %v2999
        %v3025 = vcombine.low %v2974, %v3006
        %v3026 = vcombine.high %v2974, %v3006
        %v3027 = vcombine.low %v2983, %v3015
        %v3028 = vcombine.high %v2983, %v3015
        %v3029 = vcombine.low %v2990, %v3022
        %v3030 = vcombine.high %v2990, %v3022
        %v3031 = vcombine.low %v3023, %v3025
        %v3032 = vcombine.high %v3023, %v3025
        %v3034 = vunpack.c.l.s4 1983009808
        %v3035 = vunpack.c.0.s8 %v3034
        %v3036 = vlaneseq
        %v3037 = vshrl.u32 %v3036, 7
        %v3038 = vsub.s32 %v3035, %v3037
        %v3039 = vrot.slane %v3031, %v3038
        %v3041 = vunpack.c.l.s4 1983009808
        %v3042 = vunpack.c.0.s8 %v3041
        %v3043 = vlaneseq
        %v3044 = vshrl.u32 %v3043, 7
        %v3045 = vsub.s32 %v3042, %v3044
        %v3046 = vrot.slane %v3032, %v3045
        %v3047 = vcombine.low %v3024, %v3026
        %v3048 = vcombine.high %v3024, %v3026
        %v3050 = vunpack.c.l.s4 1983009808
        %v3051 = vunpack.c.0.s8 %v3050
        %v3052 = vlaneseq
        %v3053 = vshrl.u32 %v3052, 7
        %v3054 = vsub.s32 %v3051, %v3053
        %v3055 = vrot.slane %v3047, %v3054
        %v3057 = vunpack.c.l.s4 1983009808
        %v3058 = vunpack.c.0.s8 %v3057
        %v3059 = vlaneseq
        %v3060 = vshrl.u32 %v3059, 7
        %v3061 = vsub.s32 %v3058, %v3060
        %v3062 = vrot.slane %v3048, %v3061
        %v3063 = vcombine.low %v3027, %v3029
        %v3064 = vcombine.high %v3027, %v3029
        %v3066 = vunpack.c.l.s4 1983009808
        %v3067 = vunpack.c.0.s8 %v3066
        %v3068 = vlaneseq
        %v3069 = vshrl.u32 %v3068, 7
        %v3070 = vsub.s32 %v3067, %v3069
        %v3071 = vrot.slane %v3063, %v3070
        %v3073 = vunpack.c.l.s4 1983009808
        %v3074 = vunpack.c.0.s8 %v3073
        %v3075 = vlaneseq
        %v3076 = vshrl.u32 %v3075, 7
        %v3077 = vsub.s32 %v3074, %v3076
        %v3078 = vrot.slane %v3064, %v3077
        %v3079 = vcombine.low %v3028, %v3030
        %v3080 = vcombine.high %v3028, %v3030
        %v3082 = vunpack.c.l.s4 1983009808
        %v3083 = vunpack.c.0.s8 %v3082
        %v3084 = vlaneseq
        %v3085 = vshrl.u32 %v3084, 7
        %v3086 = vsub.s32 %v3083, %v3085
        %v3087 = vrot.slane %v3079, %v3086
        %v3089 = vunpack.c.l.s4 1983009808
        %v3090 = vunpack.c.0.s8 %v3089
        %v3091 = vlaneseq
        %v3092 = vshrl.u32 %v3091, 7
        %v3093 = vsub.s32 %v3090, %v3092
        %v3094 = vrot.slane %v3080, %v3093
        %v3095 = vcombine.low %v3039, %v3055
        %v3096 = vcombine.high %v3039, %v3055
        %v3098 = vunpack.c.l.s4 1934713408
        %v3099 = vunpack.c.0.s8 %v3098
        %v3100 = vlaneseq
        %v3101 = vshrl.u32 %v3100, 7
        %v3102 = vsub.s32 %v3099, %v3101
        %v3103 = vrot.slane %v3095, %v3102
        %v3105 = vunpack.c.l.s4 1934713408
        %v3106 = vunpack.c.0.s8 %v3105
        %v3107 = vlaneseq
        %v3108 = vshrl.u32 %v3107, 7
        %v3109 = vsub.s32 %v3106, %v3108
        %v3110 = vrot.slane %v3096, %v3109
        %v3111 = vcombine.low %v3046, %v3062
        %v3112 = vcombine.high %v3046, %v3062
        %v3114 = vunpack.c.l.s4 1934713408
        %v3115 = vunpack.c.0.s8 %v3114
        %v3116 = vlaneseq
        %v3117 = vshrl.u32 %v3116, 7
        %v3118 = vsub.s32 %v3115, %v3117
        %v3119 = vrot.slane %v3111, %v3118
        %v3121 = vunpack.c.l.s4 1934713408
        %v3122 = vunpack.c.0.s8 %v3121
        %v3123 = vlaneseq
        %v3124 = vshrl.u32 %v3123, 7
        %v3125 = vsub.s32 %v3122, %v3124
        %v3126 = vrot.slane %v3112, %v3125
        %v3127 = vcombine.low %v3071, %v3087
        %v3128 = vcombine.high %v3071, %v3087
        %v3130 = vunpack.c.l.s4 1934713408
        %v3131 = vunpack.c.0.s8 %v3130
        %v3132 = vlaneseq
        %v3133 = vshrl.u32 %v3132, 7
        %v3134 = vsub.s32 %v3131, %v3133
        %v3135 = vrot.slane %v3127, %v3134
        %v3137 = vunpack.c.l.s4 1934713408
        %v3138 = vunpack.c.0.s8 %v3137
        %v3139 = vlaneseq
        %v3140 = vshrl.u32 %v3139, 7
        %v3141 = vsub.s32 %v3138, %v3140
        %v3142 = vrot.slane %v3128, %v3141
        %v3143 = vcombine.low %v3078, %v3094
        %v3144 = vcombine.high %v3078, %v3094
        %v3146 = vunpack.c.l.s4 1934713408
        %v3147 = vunpack.c.0.s8 %v3146
        %v3148 = vlaneseq
        %v3149 = vshrl.u32 %v3148, 7
        %v3150 = vsub.s32 %v3147, %v3149
        %v3151 = vrot.slane %v3143, %v3150
        %v3153 = vunpack.c.l.s4 1934713408
        %v3154 = vunpack.c.0.s8 %v3153
        %v3155 = vlaneseq
        %v3156 = vshrl.u32 %v3155, 7
        %v3157 = vsub.s32 %v3154, %v3156
        %v3158 = vrot.slane %v3144, %v3157
        %v3159 = vcombine.low %v3103, %v3135
        %v3160 = vcombine.high %v3103, %v3135
        %v3161 = vcombine.low %v3110, %v3142
        %v3162 = vcombine.high %v3110, %v3142
        %v3163 = vcombine.low %v3119, %v3151
        %v3164 = vcombine.high %v3119, %v3151
        %v3165 = vcombine.low %v3126, %v3158
        %v3166 = vcombine.high %v3126, %v3158
        %3168 = vrot.lane.b32.xlu0 %v3160, 4
        %v3169 = vpop.permute.xlu0 %3168
        %3172 = vrot.lane.b32.xlu0 %v3161, 8
        %v3173 = vpop.permute.xlu0 %3172
        %3176 = vrot.lane.b32.xlu0 %v3162, 12
        %v3177 = vpop.permute.xlu0 %3176
        %3180 = vrot.lane.b32.xlu0 %v3163, 16
        %v3181 = vpop.permute.xlu0 %3180
        %3184 = vrot.lane.b32.xlu0 %v3164, 20
        %v3185 = vpop.permute.xlu0 %3184
        %3188 = vrot.lane.b32.xlu0 %v3165, 24
        %v3189 = vpop.permute.xlu0 %3188
        %3192 = vrot.lane.b32.xlu0 %v3166, 28
        %v3193 = vpop.permute.xlu0 %3192
        %v3195 = vsel %vm1605, %v3159, %v3169
        %v3196 = vsel %vm2222, %v3195, %v3173
        %vm3197 = vcmask 97280
        %v3198 = vsel %vm3197, %v3196, %v3177
        %vm3199 = vcmask 130048
        %v3200 = vsel %vm3199, %v3198, %v3181
        %vm3201 = vcmask 162816
        %v3202 = vsel %vm3201, %v3200, %v3185
        %vm3203 = vcmask 195584
        %v3204 = vsel %vm3203, %v3202, %v3189
        %vm3205 = vcmask 228352
        %v3206 = vsel %vm3205, %v3204, %v3193
        %v3207 = vadd.f32 %v632, %v3206
        %v3208 = vld [vmem:[%s10] sm:$0x1]
        %v3209 = vld [vmem:[%s11] sm:$0x1]
        %v3210 = vsel %vm645, %v3207, 0.0
        %3211 = vadd.xlane.f32.xlu0 %v3210
        %v3212 = vpop.xlane.xlu0 %3211
        %v3213 = vrcp.pop 32.0
        %v3214 = vmul.f32 %v3212, %v3213
        %v3215 = vsub.f32 %v3207, %v3214
        %v3216 = vmul.f32 %v3215, %v3215
        %v3217 = vsel %vm645, %v3216, 0.0
        %3218 = vadd.xlane.f32.xlu0 %v3217
        %v3219 = vpop.xlane.xlu0 %3218
        %v3220 = vmul.f32 %v3219, %v3213
        %v3221 = vadd.f32 %v3220, 1e-05
        %v3222 = vrsqrt.pop %v3221
        %v3223 = vmul.f32 %v3215, %v3222
        %v3225 = vlaneseq
        %v3226 = vshrl.u32 %v3225, 7
        %v3227 = vsub.s32 0, %v3226
        %v3228 = vrot.slane %v3208, %v3227
        %v3230 = vmul.f32 %v3223, %v3228
        %v3232 = vlaneseq
        %v3233 = vshrl.u32 %v3232, 7
        %v3234 = vsub.s32 0, %v3233
        %v3235 = vrot.slane %v3209, %v3234
        %v3237 = vadd.f32 %v3230, %v3235
        %v3238 = vld [vmem:[#allocation8] sm:$0xff]
        %v3239 = vld [vmem:[#allocation8 + $0x8] sm:$0xff]
        %v3240 = vld [vmem:[#allocation8 + $0x10] sm:$0xff]
        %v3241 = vld [vmem:[#allocation8 + $0x18] sm:$0xff]
        %v3242 = vld [vmem:[%s5] sm:$0x1]
        %v3244 = vlaneseq
        %v3245 = vshrl.u32 %v3244, 7
        %v3246 = vsub.s32 0, %v3245
        %v3247 = vrot.slane %v3242, %v3246
        %v3250 = vsel %vm645, %v3237, 0
        %3252 = vmatprep.subr.mxu0 0.0
        %3253 = vmatpush1.msra.mxu0 0.0
        %3254 = vmatprep.subr.mxu0 0.0
        %3255 = vmatpush1.msra.mxu0 0.0
        %3256 = vmatprep.subr.mxu0 0.0
        %3257 = vmatpush1.msra.mxu0 0.0
        %3258 = vmatprep.subr.mxu0 0.0
        %3259 = vmatpush1.msra.mxu0 0.0
        %3260 = vmatprep.subr.mxu0 0.0
        %3261 = vmatpush1.msra.mxu0 0.0
        %3262 = vmatprep.subr.mxu0 0.0
        %3263 = vmatpush1.msra.mxu0 0.0
        %3264 = vmatprep.subr.mxu0 0.0
        %3265 = vmatpush1.msra.mxu0 0.0
        %3266 = vmatprep.subr.mxu0 0.0
        %3267 = vmatpush1.msra.mxu0 0.0
        %3268 = vmatprep.subr.mxu0 0.0
        %3269 = vmatpush1.msra.mxu0 0.0
        %3270 = vmatprep.subr.mxu0 0.0
        %3271 = vmatpush1.msra.mxu0 0.0
        %3272 = vmatprep.subr.mxu0 0.0
        %3273 = vmatpush1.msra.mxu0 0.0
        %3274 = vmatprep.subr.mxu0 0.0
        %3275 = vmatpush1.msra.mxu0 0.0
        %3276 = vmatprep.subr.mxu0 0.0
        %3277 = vmatpush1.msra.mxu0 %v3241
        %3278 = vmatprep.subr.mxu0 0.0
        %3279 = vmatpush1.msra.mxu0 %v3240
        %3280 = vmatprep.subr.mxu0 0.0
        %3281 = vmatpush1.msra.mxu0 %v3239
        %3282 = vmatprep.subr.mxu0 0.0
        %3283 = vmatpush1.msra.mxu0 %v3238
        %3284 = vmatprep.subr.mxu0 0.0
        %3285 = vmatpush2.msra.mxu0 0.0
        %3286 = vmatprep.subr.mxu0 0.0
        %3287 = vmatpush2.msra.mxu0 0.0
        %3288 = vmatprep.subr.mxu0 0.0
        %3289 = vmatpush2.msra.mxu0 0.0
        %3290 = vmatprep.subr.mxu0 0.0
        %3291 = vmatpush2.msra.mxu0 0.0
        %3292 = vmatprep.subr.mxu0 0.0
        %3293 = vmatpush2.msra.mxu0 0.0
        %3294 = vmatprep.subr.mxu0 0.0
        %3295 = vmatpush2.msra.mxu0 0.0
        %3296 = vmatprep.subr.mxu0 0.0
        %3297 = vmatpush2.msra.mxu0 0.0
        %3298 = vmatprep.subr.mxu0 0.0
        %3299 = vmatpush2.msra.mxu0 0.0
        %3300 = vmatprep.subr.mxu0 0.0
        %3301 = vmatpush2.msra.mxu0 0.0
        %3302 = vmatprep.subr.mxu0 0.0
        %3303 = vmatpush2.msra.mxu0 0.0
        %3304 = vmatprep.subr.mxu0 0.0
        %3305 = vmatpush2.msra.mxu0 0.0
        %3306 = vmatprep.subr.mxu0 0.0
        %3307 = vmatpush2.msra.mxu0 0.0
        %3308 = vmatprep.subr.mxu0 0.0
        %3309 = vmatpush2.msra.mxu0 0.0
        %3310 = vmatprep.subr.mxu0 0.0
        %3311 = vmatpush2.msra.mxu0 0.0
        %3312 = vmatprep.subr.mxu0 0.0
        %3313 = vmatpush2.msra.mxu0 0.0
        %3314 = vmatprep.subr.mxu0 0.0
        %3315 = vmatpush2.msra.mxu0 0.0
        %3316 = vmatprep.mubr.f32.mxu0 0.0
        %3317 = vmatmul.mubr.f32.gmra.mxu0 %v3250
        %v3318 = vpop.f32.mrf.mxu0
        %v3319 = vadd.f32 %v3247, %v3318
        %v3320 = vpop.f32.mrf.mxu0
        %3321 = vdwg.mxu0
        %v3322 = vld [vmem:[#allocation10] sm:$0xff]
        %v3323 = vld [vmem:[#allocation10 + $0x8] sm:$0xff]
        %v3324 = vld [vmem:[#allocation10 + $0x10] sm:$0xff]
        %v3325 = vld [vmem:[#allocation10 + $0x18] sm:$0xff]
        %v3326 = vld [vmem:[%s7] sm:$0x1]
        %v3328 = vlaneseq
        %v3329 = vshrl.u32 %v3328, 7
        %v3330 = vsub.s32 0, %v3329
        %v3331 = vrot.slane %v3326, %v3330
        %v3334 = vsel %vm645, %v633, 0
        %3336 = vmatprep.subr.mxu0 0.0
        %3337 = vmatpush1.msra.mxu0 0.0
        %3338 = vmatprep.subr.mxu0 0.0
        %3339 = vmatpush1.msra.mxu0 0.0
        %3340 = vmatprep.subr.mxu0 0.0
        %3341 = vmatpush1.msra.mxu0 0.0
        %3342 = vmatprep.subr.mxu0 0.0
        %3343 = vmatpush1.msra.mxu0 0.0
        %3344 = vmatprep.subr.mxu0 0.0
        %3345 = vmatpush1.msra.mxu0 0.0
        %3346 = vmatprep.subr.mxu0 0.0
        %3347 = vmatpush1.msra.mxu0 0.0
        %3348 = vmatprep.subr.mxu0 0.0
        %3349 = vmatpush1.msra.mxu0 0.0
        %3350 = vmatprep.subr.mxu0 0.0
        %3351 = vmatpush1.msra.mxu0 0.0
        %3352 = vmatprep.subr.mxu0 0.0
        %3353 = vmatpush1.msra.mxu0 0.0
        %3354 = vmatprep.subr.mxu0 0.0
        %3355 = vmatpush1.msra.mxu0 0.0
        %3356 = vmatprep.subr.mxu0 0.0
        %3357 = vmatpush1.msra.mxu0 0.0
        %3358 = vmatprep.subr.mxu0 0.0
        %3359 = vmatpush1.msra.mxu0 0.0
        %3360 = vmatprep.subr.mxu0 0.0
        %3361 = vmatpush1.msra.mxu0 %v3325
        %3362 = vmatprep.subr.mxu0 0.0
        %3363 = vmatpush1.msra.mxu0 %v3324
        %3364 = vmatprep.subr.mxu0 0.0
        %3365 = vmatpush1.msra.mxu0 %v3323
        %3366 = vmatprep.subr.mxu0 0.0
        %3367 = vmatpush1.msra.mxu0 %v3322
        %3368 = vmatprep.subr.mxu0 0.0
        %3369 = vmatpush2.msra.mxu0 0.0
        %3370 = vmatprep.subr.mxu0 0.0
        %3371 = vmatpush2.msra.mxu0 0.0
        %3372 = vmatprep.subr.mxu0 0.0
        %3373 = vmatpush2.msra.mxu0 0.0
        %3374 = vmatprep.subr.mxu0 0.0
        %3375 = vmatpush2.msra.mxu0 0.0
        %3376 = vmatprep.subr.mxu0 0.0
        %3377 = vmatpush2.msra.mxu0 0.0
        %3378 = vmatprep.subr.mxu0 0.0
        %3379 = vmatpush2.msra.mxu0 0.0
        %3380 = vmatprep.subr.mxu0 0.0
        %3381 = vmatpush2.msra.mxu0 0.0
        %3382 = vmatprep.subr.mxu0 0.0
        %3383 = vmatpush2.msra.mxu0 0.0
        %3384 = vmatprep.subr.mxu0 0.0
        %3385 = vmatpush2.msra.mxu0 0.0
        %3386 = vmatprep.subr.mxu0 0.0
        %3387 = vmatpush2.msra.mxu0 0.0
        %3388 = vmatprep.subr.mxu0 0.0
        %3389 = vmatpush2.msra.mxu0 0.0
        %3390 = vmatprep.subr.mxu0 0.0
        %3391 = vmatpush2.msra.mxu0 0.0
        %3392 = vmatprep.subr.mxu0 0.0
        %3393 = vmatpush2.msra.mxu0 0.0
        %3394 = vmatprep.subr.mxu0 0.0
        %3395 = vmatpush2.msra.mxu0 0.0
        %3396 = vmatprep.subr.mxu0 0.0
        %3397 = vmatpush2.msra.mxu0 0.0
        %3398 = vmatprep.subr.mxu0 0.0
        %3399 = vmatpush2.msra.mxu0 0.0
        %3400 = vmatprep.mubr.f32.mxu0 0.0
        %3401 = vmatmul.mubr.f32.gmra.mxu0 %v3334
        %v3402 = vpop.f32.mrf.mxu0
        %v3403 = vadd.f32 %v3331, %v3402
        %v3404 = vpop.f32.mrf.mxu0
        %3405 = vdwg.mxu0
        %3407 = vrot.lane.b32.xlu0 %v3319, 124
        %v3408 = vpop.permute.xlu0 %3407
        %3410 = vrot.lane.b32.xlu0 %v3319, 120
        %v3411 = vpop.permute.xlu0 %3410
        %3413 = vrot.lane.b32.xlu0 %v3319, 116
        %v3414 = vpop.permute.xlu0 %3413
        %3416 = vrot.lane.b32.xlu0 %v3319, 112
        %v3417 = vpop.permute.xlu0 %3416
        %3419 = vrot.lane.b32.xlu0 %v3319, 108
        %v3420 = vpop.permute.xlu0 %3419
        %3422 = vrot.lane.b32.xlu0 %v3319, 104
        %v3423 = vpop.permute.xlu0 %3422
        %3425 = vrot.lane.b32.xlu0 %v3319, 100
        %v3426 = vpop.permute.xlu0 %3425
        %v3428 = vcombine.low %v3319, %v3411
        %v3429 = vcombine.high %v3319, %v3411
        %v3431 = vunpack.c.l.s4 1983009808
        %v3432 = vunpack.c.0.s8 %v3431
        %v3433 = vlaneseq
        %v3434 = vshrl.u32 %v3433, 7
        %v3435 = vsub.s32 %v3432, %v3434
        %v3436 = vrot.slane %v3428, %v3435
        %v3438 = vunpack.c.l.s4 1983009808
        %v3439 = vunpack.c.0.s8 %v3438
        %v3440 = vlaneseq
        %v3441 = vshrl.u32 %v3440, 7
        %v3442 = vsub.s32 %v3439, %v3441
        %v3443 = vrot.slane %v3429, %v3442
        %v3444 = vcombine.low %v3408, %v3414
        %v3445 = vcombine.high %v3408, %v3414
        %v3447 = vunpack.c.l.s4 1983009808
        %v3448 = vunpack.c.0.s8 %v3447
        %v3449 = vlaneseq
        %v3450 = vshrl.u32 %v3449, 7
        %v3451 = vsub.s32 %v3448, %v3450
        %v3452 = vrot.slane %v3444, %v3451
        %v3454 = vunpack.c.l.s4 1983009808
        %v3455 = vunpack.c.0.s8 %v3454
        %v3456 = vlaneseq
        %v3457 = vshrl.u32 %v3456, 7
        %v3458 = vsub.s32 %v3455, %v3457
        %v3459 = vrot.slane %v3445, %v3458
        %v3460 = vcombine.low %v3417, %v3423
        %v3461 = vcombine.high %v3417, %v3423
        %v3463 = vunpack.c.l.s4 1983009808
        %v3464 = vunpack.c.0.s8 %v3463
        %v3465 = vlaneseq
        %v3466 = vshrl.u32 %v3465, 7
        %v3467 = vsub.s32 %v3464, %v3466
        %v3468 = vrot.slane %v3460, %v3467
        %v3470 = vunpack.c.l.s4 1983009808
        %v3471 = vunpack.c.0.s8 %v3470
        %v3472 = vlaneseq
        %v3473 = vshrl.u32 %v3472, 7
        %v3474 = vsub.s32 %v3471, %v3473
        %v3475 = vrot.slane %v3461, %v3474
        %v3476 = vcombine.low %v3420, %v3426
        %v3477 = vcombine.high %v3420, %v3426
        %v3479 = vunpack.c.l.s4 1983009808
        %v3480 = vunpack.c.0.s8 %v3479
        %v3481 = vlaneseq
        %v3482 = vshrl.u32 %v3481, 7
        %v3483 = vsub.s32 %v3480, %v3482
        %v3484 = vrot.slane %v3476, %v3483
        %v3486 = vunpack.c.l.s4 1983009808
        %v3487 = vunpack.c.0.s8 %v3486
        %v3488 = vlaneseq
        %v3489 = vshrl.u32 %v3488, 7
        %v3490 = vsub.s32 %v3487, %v3489
        %v3491 = vrot.slane %v3477, %v3490
        %v3492 = vcombine.low %v3436, %v3452
        %v3493 = vcombine.high %v3436, %v3452
        %v3495 = vunpack.c.l.s4 1934713408
        %v3496 = vunpack.c.0.s8 %v3495
        %v3497 = vlaneseq
        %v3498 = vshrl.u32 %v3497, 7
        %v3499 = vsub.s32 %v3496, %v3498
        %v3500 = vrot.slane %v3492, %v3499
        %v3502 = vunpack.c.l.s4 1934713408
        %v3503 = vunpack.c.0.s8 %v3502
        %v3504 = vlaneseq
        %v3505 = vshrl.u32 %v3504, 7
        %v3506 = vsub.s32 %v3503, %v3505
        %v3507 = vrot.slane %v3493, %v3506
        %v3508 = vcombine.low %v3443, %v3459
        %v3509 = vcombine.high %v3443, %v3459
        %v3511 = vunpack.c.l.s4 1934713408
        %v3512 = vunpack.c.0.s8 %v3511
        %v3513 = vlaneseq
        %v3514 = vshrl.u32 %v3513, 7
        %v3515 = vsub.s32 %v3512, %v3514
        %v3516 = vrot.slane %v3508, %v3515
        %v3518 = vunpack.c.l.s4 1934713408
        %v3519 = vunpack.c.0.s8 %v3518
        %v3520 = vlaneseq
        %v3521 = vshrl.u32 %v3520, 7
        %v3522 = vsub.s32 %v3519, %v3521
        %v3523 = vrot.slane %v3509, %v3522
        %v3524 = vcombine.low %v3468, %v3484
        %v3525 = vcombine.high %v3468, %v3484
        %v3527 = vunpack.c.l.s4 1934713408
        %v3528 = vunpack.c.0.s8 %v3527
        %v3529 = vlaneseq
        %v3530 = vshrl.u32 %v3529, 7
        %v3531 = vsub.s32 %v3528, %v3530
        %v3532 = vrot.slane %v3524, %v3531
        %v3534 = vunpack.c.l.s4 1934713408
        %v3535 = vunpack.c.0.s8 %v3534
        %v3536 = vlaneseq
        %v3537 = vshrl.u32 %v3536, 7
        %v3538 = vsub.s32 %v3535, %v3537
        %v3539 = vrot.slane %v3525, %v3538
        %v3540 = vcombine.low %v3475, %v3491
        %v3541 = vcombine.high %v3475, %v3491
        %v3543 = vunpack.c.l.s4 1934713408
        %v3544 = vunpack.c.0.s8 %v3543
        %v3545 = vlaneseq
        %v3546 = vshrl.u32 %v3545, 7
        %v3547 = vsub.s32 %v3544, %v3546
        %v3548 = vrot.slane %v3540, %v3547
        %v3550 = vunpack.c.l.s4 1934713408
        %v3551 = vunpack.c.0.s8 %v3550
        %v3552 = vlaneseq
        %v3553 = vshrl.u32 %v3552, 7
        %v3554 = vsub.s32 %v3551, %v3553
        %v3555 = vrot.slane %v3541, %v3554
        %v3556 = vcombine.low %v3500, %v3532
        %v3557 = vcombine.high %v3500, %v3532
        %v3558 = vcombine.low %v3507, %v3539
        %v3559 = vcombine.high %v3507, %v3539
        %v3560 = vcombine.low %v3516, %v3548
        %v3561 = vcombine.high %v3516, %v3548
        %v3562 = vcombine.low %v3523, %v3555
        %v3563 = vcombine.high %v3523, %v3555
        %v3564 = vcombine.low %v3556, %v3558
        %v3565 = vcombine.high %v3556, %v3558
        %v3567 = vunpack.c.l.s4 1983009808
        %v3568 = vunpack.c.0.s8 %v3567
        %v3569 = vlaneseq
        %v3570 = vshrl.u32 %v3569, 7
        %v3571 = vsub.s32 %v3568, %v3570
        %v3572 = vrot.slane %v3564, %v3571
        %v3574 = vunpack.c.l.s4 1983009808
        %v3575 = vunpack.c.0.s8 %v3574
        %v3576 = vlaneseq
        %v3577 = vshrl.u32 %v3576, 7
        %v3578 = vsub.s32 %v3575, %v3577
        %v3579 = vrot.slane %v3565, %v3578
        %v3580 = vcombine.low %v3557, %v3559
        %v3581 = vcombine.high %v3557, %v3559
        %v3583 = vunpack.c.l.s4 1983009808
        %v3584 = vunpack.c.0.s8 %v3583
        %v3585 = vlaneseq
        %v3586 = vshrl.u32 %v3585, 7
        %v3587 = vsub.s32 %v3584, %v3586
        %v3588 = vrot.slane %v3580, %v3587
        %v3590 = vunpack.c.l.s4 1983009808
        %v3591 = vunpack.c.0.s8 %v3590
        %v3592 = vlaneseq
        %v3593 = vshrl.u32 %v3592, 7
        %v3594 = vsub.s32 %v3591, %v3593
        %v3595 = vrot.slane %v3581, %v3594
        %v3596 = vcombine.low %v3560, %v3562
        %v3597 = vcombine.high %v3560, %v3562
        %v3599 = vunpack.c.l.s4 1983009808
        %v3600 = vunpack.c.0.s8 %v3599
        %v3601 = vlaneseq
        %v3602 = vshrl.u32 %v3601, 7
        %v3603 = vsub.s32 %v3600, %v3602
        %v3604 = vrot.slane %v3596, %v3603
        %v3606 = vunpack.c.l.s4 1983009808
        %v3607 = vunpack.c.0.s8 %v3606
        %v3608 = vlaneseq
        %v3609 = vshrl.u32 %v3608, 7
        %v3610 = vsub.s32 %v3607, %v3609
        %v3611 = vrot.slane %v3597, %v3610
        %v3612 = vcombine.low %v3561, %v3563
        %v3613 = vcombine.high %v3561, %v3563
        %v3615 = vunpack.c.l.s4 1983009808
        %v3616 = vunpack.c.0.s8 %v3615
        %v3617 = vlaneseq
        %v3618 = vshrl.u32 %v3617, 7
        %v3619 = vsub.s32 %v3616, %v3618
        %v3620 = vrot.slane %v3612, %v3619
        %v3622 = vunpack.c.l.s4 1983009808
        %v3623 = vunpack.c.0.s8 %v3622
        %v3624 = vlaneseq
        %v3625 = vshrl.u32 %v3624, 7
        %v3626 = vsub.s32 %v3623, %v3625
        %v3627 = vrot.slane %v3613, %v3626
        %v3628 = vcombine.low %v3572, %v3588
        %v3629 = vcombine.high %v3572, %v3588
        %v3631 = vunpack.c.l.s4 1934713408
        %v3632 = vunpack.c.0.s8 %v3631
        %v3633 = vlaneseq
        %v3634 = vshrl.u32 %v3633, 7
        %v3635 = vsub.s32 %v3632, %v3634
        %v3636 = vrot.slane %v3628, %v3635
        %v3638 = vunpack.c.l.s4 1934713408
        %v3639 = vunpack.c.0.s8 %v3638
        %v3640 = vlaneseq
        %v3641 = vshrl.u32 %v3640, 7
        %v3642 = vsub.s32 %v3639, %v3641
        %v3643 = vrot.slane %v3629, %v3642
        %v3644 = vcombine.low %v3579, %v3595
        %v3645 = vcombine.high %v3579, %v3595
        %v3647 = vunpack.c.l.s4 1934713408
        %v3648 = vunpack.c.0.s8 %v3647
        %v3649 = vlaneseq
        %v3650 = vshrl.u32 %v3649, 7
        %v3651 = vsub.s32 %v3648, %v3650
        %v3652 = vrot.slane %v3644, %v3651
        %v3654 = vunpack.c.l.s4 1934713408
        %v3655 = vunpack.c.0.s8 %v3654
        %v3656 = vlaneseq
        %v3657 = vshrl.u32 %v3656, 7
        %v3658 = vsub.s32 %v3655, %v3657
        %v3659 = vrot.slane %v3645, %v3658
        %v3660 = vcombine.low %v3604, %v3620
        %v3661 = vcombine.high %v3604, %v3620
        %v3663 = vunpack.c.l.s4 1934713408
        %v3664 = vunpack.c.0.s8 %v3663
        %v3665 = vlaneseq
        %v3666 = vshrl.u32 %v3665, 7
        %v3667 = vsub.s32 %v3664, %v3666
        %v3668 = vrot.slane %v3660, %v3667
        %v3670 = vunpack.c.l.s4 1934713408
        %v3671 = vunpack.c.0.s8 %v3670
        %v3672 = vlaneseq
        %v3673 = vshrl.u32 %v3672, 7
        %v3674 = vsub.s32 %v3671, %v3673
        %v3675 = vrot.slane %v3661, %v3674
        %v3676 = vcombine.low %v3611, %v3627
        %v3677 = vcombine.high %v3611, %v3627
        %v3679 = vunpack.c.l.s4 1934713408
        %v3680 = vunpack.c.0.s8 %v3679
        %v3681 = vlaneseq
        %v3682 = vshrl.u32 %v3681, 7
        %v3683 = vsub.s32 %v3680, %v3682
        %v3684 = vrot.slane %v3676, %v3683
        %v3686 = vunpack.c.l.s4 1934713408
        %v3687 = vunpack.c.0.s8 %v3686
        %v3688 = vlaneseq
        %v3689 = vshrl.u32 %v3688, 7
        %v3690 = vsub.s32 %v3687, %v3689
        %v3691 = vrot.slane %v3677, %v3690
        %v3692 = vcombine.low %v3636, %v3668
        %v3693 = vcombine.high %v3636, %v3668
        %v3694 = vcombine.low %v3643, %v3675
        %v3695 = vcombine.high %v3643, %v3675
        %v3696 = vcombine.low %v3652, %v3684
        %v3697 = vcombine.high %v3652, %v3684
        %v3698 = vcombine.low %v3659, %v3691
        %v3699 = vcombine.high %v3659, %v3691
        %3701 = vrot.lane.b32.xlu0 %v3403, 124
        %v3702 = vpop.permute.xlu0 %3701
        %3704 = vrot.lane.b32.xlu0 %v3403, 120
        %v3705 = vpop.permute.xlu0 %3704
        %3707 = vrot.lane.b32.xlu0 %v3403, 116
        %v3708 = vpop.permute.xlu0 %3707
        %3710 = vrot.lane.b32.xlu0 %v3403, 112
        %v3711 = vpop.permute.xlu0 %3710
        %3713 = vrot.lane.b32.xlu0 %v3403, 108
        %v3714 = vpop.permute.xlu0 %3713
        %3716 = vrot.lane.b32.xlu0 %v3403, 104
        %v3717 = vpop.permute.xlu0 %3716
        %3719 = vrot.lane.b32.xlu0 %v3403, 100
        %v3720 = vpop.permute.xlu0 %3719
        %v3722 = vcombine.low %v3403, %v3705
        %v3723 = vcombine.high %v3403, %v3705
        %v3725 = vunpack.c.l.s4 1983009808
        %v3726 = vunpack.c.0.s8 %v3725
        %v3727 = vlaneseq
        %v3728 = vshrl.u32 %v3727, 7
        %v3729 = vsub.s32 %v3726, %v3728
        %v3730 = vrot.slane %v3722, %v3729
        %v3732 = vunpack.c.l.s4 1983009808
        %v3733 = vunpack.c.0.s8 %v3732
        %v3734 = vlaneseq
        %v3735 = vshrl.u32 %v3734, 7
        %v3736 = vsub.s32 %v3733, %v3735
        %v3737 = vrot.slane %v3723, %v3736
        %v3738 = vcombine.low %v3702, %v3708
        %v3739 = vcombine.high %v3702, %v3708
        %v3741 = vunpack.c.l.s4 1983009808
        %v3742 = vunpack.c.0.s8 %v3741
        %v3743 = vlaneseq
        %v3744 = vshrl.u32 %v3743, 7
        %v3745 = vsub.s32 %v3742, %v3744
        %v3746 = vrot.slane %v3738, %v3745
        %v3748 = vunpack.c.l.s4 1983009808
        %v3749 = vunpack.c.0.s8 %v3748
        %v3750 = vlaneseq
        %v3751 = vshrl.u32 %v3750, 7
        %v3752 = vsub.s32 %v3749, %v3751
        %v3753 = vrot.slane %v3739, %v3752
        %v3754 = vcombine.low %v3711, %v3717
        %v3755 = vcombine.high %v3711, %v3717
        %v3757 = vunpack.c.l.s4 1983009808
        %v3758 = vunpack.c.0.s8 %v3757
        %v3759 = vlaneseq
        %v3760 = vshrl.u32 %v3759, 7
        %v3761 = vsub.s32 %v3758, %v3760
        %v3762 = vrot.slane %v3754, %v3761
        %v3764 = vunpack.c.l.s4 1983009808
        %v3765 = vunpack.c.0.s8 %v3764
        %v3766 = vlaneseq
        %v3767 = vshrl.u32 %v3766, 7
        %v3768 = vsub.s32 %v3765, %v3767
        %v3769 = vrot.slane %v3755, %v3768
        %v3770 = vcombine.low %v3714, %v3720
        %v3771 = vcombine.high %v3714, %v3720
        %v3773 = vunpack.c.l.s4 1983009808
        %v3774 = vunpack.c.0.s8 %v3773
        %v3775 = vlaneseq
        %v3776 = vshrl.u32 %v3775, 7
        %v3777 = vsub.s32 %v3774, %v3776
        %v3778 = vrot.slane %v3770, %v3777
        %v3780 = vunpack.c.l.s4 1983009808
        %v3781 = vunpack.c.0.s8 %v3780
        %v3782 = vlaneseq
        %v3783 = vshrl.u32 %v3782, 7
        %v3784 = vsub.s32 %v3781, %v3783
        %v3785 = vrot.slane %v3771, %v3784
        %v3786 = vcombine.low %v3730, %v3746
        %v3787 = vcombine.high %v3730, %v3746
        %v3789 = vunpack.c.l.s4 1934713408
        %v3790 = vunpack.c.0.s8 %v3789
        %v3791 = vlaneseq
        %v3792 = vshrl.u32 %v3791, 7
        %v3793 = vsub.s32 %v3790, %v3792
        %v3794 = vrot.slane %v3786, %v3793
        %v3796 = vunpack.c.l.s4 1934713408
        %v3797 = vunpack.c.0.s8 %v3796
        %v3798 = vlaneseq
        %v3799 = vshrl.u32 %v3798, 7
        %v3800 = vsub.s32 %v3797, %v3799
        %v3801 = vrot.slane %v3787, %v3800
        %v3802 = vcombine.low %v3737, %v3753
        %v3803 = vcombine.high %v3737, %v3753
        %v3805 = vunpack.c.l.s4 1934713408
        %v3806 = vunpack.c.0.s8 %v3805
        %v3807 = vlaneseq
        %v3808 = vshrl.u32 %v3807, 7
        %v3809 = vsub.s32 %v3806, %v3808
        %v3810 = vrot.slane %v3802, %v3809
        %v3812 = vunpack.c.l.s4 1934713408
        %v3813 = vunpack.c.0.s8 %v3812
        %v3814 = vlaneseq
        %v3815 = vshrl.u32 %v3814, 7
        %v3816 = vsub.s32 %v3813, %v3815
        %v3817 = vrot.slane %v3803, %v3816
        %v3818 = vcombine.low %v3762, %v3778
        %v3819 = vcombine.high %v3762, %v3778
        %v3821 = vunpack.c.l.s4 1934713408
        %v3822 = vunpack.c.0.s8 %v3821
        %v3823 = vlaneseq
        %v3824 = vshrl.u32 %v3823, 7
        %v3825 = vsub.s32 %v3822, %v3824
        %v3826 = vrot.slane %v3818, %v3825
        %v3828 = vunpack.c.l.s4 1934713408
        %v3829 = vunpack.c.0.s8 %v3828
        %v3830 = vlaneseq
        %v3831 = vshrl.u32 %v3830, 7
        %v3832 = vsub.s32 %v3829, %v3831
        %v3833 = vrot.slane %v3819, %v3832
        %v3834 = vcombine.low %v3769, %v3785
        %v3835 = vcombine.high %v3769, %v3785
        %v3837 = vunpack.c.l.s4 1934713408
        %v3838 = vunpack.c.0.s8 %v3837
        %v3839 = vlaneseq
        %v3840 = vshrl.u32 %v3839, 7
        %v3841 = vsub.s32 %v3838, %v3840
        %v3842 = vrot.slane %v3834, %v3841
        %v3844 = vunpack.c.l.s4 1934713408
        %v3845 = vunpack.c.0.s8 %v3844
        %v3846 = vlaneseq
        %v3847 = vshrl.u32 %v3846, 7
        %v3848 = vsub.s32 %v3845, %v3847
        %v3849 = vrot.slane %v3835, %v3848
        %v3850 = vcombine.low %v3794, %v3826
        %v3851 = vcombine.high %v3794, %v3826
        %v3852 = vcombine.low %v3801, %v3833
        %v3853 = vcombine.high %v3801, %v3833
        %v3854 = vcombine.low %v3810, %v3842
        %v3855 = vcombine.high %v3810, %v3842
        %v3856 = vcombine.low %v3817, %v3849
        %v3857 = vcombine.high %v3817, %v3849
        %v3858 = vcombine.low %v3850, %v3852
        %v3859 = vcombine.high %v3850, %v3852
        %v3861 = vunpack.c.l.s4 1983009808
        %v3862 = vunpack.c.0.s8 %v3861
        %v3863 = vlaneseq
        %v3864 = vshrl.u32 %v3863, 7
        %v3865 = vsub.s32 %v3862, %v3864
        %v3866 = vrot.slane %v3858, %v3865
        %v3868 = vunpack.c.l.s4 1983009808
        %v3869 = vunpack.c.0.s8 %v3868
        %v3870 = vlaneseq
        %v3871 = vshrl.u32 %v3870, 7
        %v3872 = vsub.s32 %v3869, %v3871
        %v3873 = vrot.slane %v3859, %v3872
        %v3874 = vcombine.low %v3851, %v3853
        %v3875 = vcombine.high %v3851, %v3853
        %v3877 = vunpack.c.l.s4 1983009808
        %v3878 = vunpack.c.0.s8 %v3877
        %v3879 = vlaneseq
        %v3880 = vshrl.u32 %v3879, 7
        %v3881 = vsub.s32 %v3878, %v3880
        %v3882 = vrot.slane %v3874, %v3881
        %v3884 = vunpack.c.l.s4 1983009808
        %v3885 = vunpack.c.0.s8 %v3884
        %v3886 = vlaneseq
        %v3887 = vshrl.u32 %v3886, 7
        %v3888 = vsub.s32 %v3885, %v3887
        %v3889 = vrot.slane %v3875, %v3888
        %v3890 = vcombine.low %v3854, %v3856
        %v3891 = vcombine.high %v3854, %v3856
        %v3893 = vunpack.c.l.s4 1983009808
        %v3894 = vunpack.c.0.s8 %v3893
        %v3895 = vlaneseq
        %v3896 = vshrl.u32 %v3895, 7
        %v3897 = vsub.s32 %v3894, %v3896
        %v3898 = vrot.slane %v3890, %v3897
        %v3900 = vunpack.c.l.s4 1983009808
        %v3901 = vunpack.c.0.s8 %v3900
        %v3902 = vlaneseq
        %v3903 = vshrl.u32 %v3902, 7
        %v3904 = vsub.s32 %v3901, %v3903
        %v3905 = vrot.slane %v3891, %v3904
        %v3906 = vcombine.low %v3855, %v3857
        %v3907 = vcombine.high %v3855, %v3857
        %v3909 = vunpack.c.l.s4 1983009808
        %v3910 = vunpack.c.0.s8 %v3909
        %v3911 = vlaneseq
        %v3912 = vshrl.u32 %v3911, 7
        %v3913 = vsub.s32 %v3910, %v3912
        %v3914 = vrot.slane %v3906, %v3913
        %v3916 = vunpack.c.l.s4 1983009808
        %v3917 = vunpack.c.0.s8 %v3916
        %v3918 = vlaneseq
        %v3919 = vshrl.u32 %v3918, 7
        %v3920 = vsub.s32 %v3917, %v3919
        %v3921 = vrot.slane %v3907, %v3920
        %v3922 = vcombine.low %v3866, %v3882
        %v3923 = vcombine.high %v3866, %v3882
        %v3925 = vunpack.c.l.s4 1934713408
        %v3926 = vunpack.c.0.s8 %v3925
        %v3927 = vlaneseq
        %v3928 = vshrl.u32 %v3927, 7
        %v3929 = vsub.s32 %v3926, %v3928
        %v3930 = vrot.slane %v3922, %v3929
        %v3932 = vunpack.c.l.s4 1934713408
        %v3933 = vunpack.c.0.s8 %v3932
        %v3934 = vlaneseq
        %v3935 = vshrl.u32 %v3934, 7
        %v3936 = vsub.s32 %v3933, %v3935
        %v3937 = vrot.slane %v3923, %v3936
        %v3938 = vcombine.low %v3873, %v3889
        %v3939 = vcombine.high %v3873, %v3889
        %v3941 = vunpack.c.l.s4 1934713408
        %v3942 = vunpack.c.0.s8 %v3941
        %v3943 = vlaneseq
        %v3944 = vshrl.u32 %v3943, 7
        %v3945 = vsub.s32 %v3942, %v3944
        %v3946 = vrot.slane %v3938, %v3945
        %v3948 = vunpack.c.l.s4 1934713408
        %v3949 = vunpack.c.0.s8 %v3948
        %v3950 = vlaneseq
        %v3951 = vshrl.u32 %v3950, 7
        %v3952 = vsub.s32 %v3949, %v3951
        %v3953 = vrot.slane %v3939, %v3952
        %v3954 = vcombine.low %v3898, %v3914
        %v3955 = vcombine.high %v3898, %v3914
        %v3957 = vunpack.c.l.s4 1934713408
        %v3958 = vunpack.c.0.s8 %v3957
        %v3959 = vlaneseq
        %v3960 = vshrl.u32 %v3959, 7
        %v3961 = vsub.s32 %v3958, %v3960
        %v3962 = vrot.slane %v3954, %v3961
        %v3964 = vunpack.c.l.s4 1934713408
        %v3965 = vunpack.c.0.s8 %v3964
        %v3966 = vlaneseq
        %v3967 = vshrl.u32 %v3966, 7
        %v3968 = vsub.s32 %v3965, %v3967
        %v3969 = vrot.slane %v3955, %v3968
        %v3970 = vcombine.low %v3905, %v3921
        %v3971 = vcombine.high %v3905, %v3921
        %v3973 = vunpack.c.l.s4 1934713408
        %v3974 = vunpack.c.0.s8 %v3973
        %v3975 = vlaneseq
        %v3976 = vshrl.u32 %v3975, 7
        %v3977 = vsub.s32 %v3974, %v3976
        %v3978 = vrot.slane %v3970, %v3977
        %v3980 = vunpack.c.l.s4 1934713408
        %v3981 = vunpack.c.0.s8 %v3980
        %v3982 = vlaneseq
        %v3983 = vshrl.u32 %v3982, 7
        %v3984 = vsub.s32 %v3981, %v3983
        %v3985 = vrot.slane %v3971, %v3984
        %v3986 = vcombine.low %v3930, %v3962
        %v3987 = vcombine.high %v3930, %v3962
        %v3988 = vcombine.low %v3937, %v3969
        %v3989 = vcombine.high %v3937, %v3969
        %v3990 = vcombine.low %v3946, %v3978
        %v3991 = vcombine.high %v3946, %v3978
        %v3992 = vcombine.low %v3953, %v3985
        %v3993 = vcombine.high %v3953, %v3985
        %3994 = vrot.lane.b32.xlu0 %v3403, 96
        %v3995 = vpop.permute.xlu0 %3994
        %3996 = vrot.lane.b32.xlu0 %v3702, 96
        %v3997 = vpop.permute.xlu0 %3996
        %3998 = vrot.lane.b32.xlu0 %v3705, 96
        %v3999 = vpop.permute.xlu0 %3998
        %4000 = vrot.lane.b32.xlu0 %v3708, 96
        %v4001 = vpop.permute.xlu0 %4000
        %4002 = vrot.lane.b32.xlu0 %v3711, 96
        %v4003 = vpop.permute.xlu0 %4002
        %4004 = vrot.lane.b32.xlu0 %v3714, 96
        %v4005 = vpop.permute.xlu0 %4004
        %4006 = vrot.lane.b32.xlu0 %v3717, 96
        %v4007 = vpop.permute.xlu0 %4006
        %4008 = vrot.lane.b32.xlu0 %v3720, 96
        %v4009 = vpop.permute.xlu0 %4008
        %v4018 = vcombine.low %v3995, %v3999
        %v4019 = vcombine.high %v3995, %v3999
        %v4021 = vunpack.c.l.s4 1983009808
        %v4022 = vunpack.c.0.s8 %v4021
        %v4023 = vlaneseq
        %v4024 = vshrl.u32 %v4023, 7
        %v4025 = vsub.s32 %v4022, %v4024
        %v4026 = vrot.slane %v4018, %v4025
        %v4028 = vunpack.c.l.s4 1983009808
        %v4029 = vunpack.c.0.s8 %v4028
        %v4030 = vlaneseq
        %v4031 = vshrl.u32 %v4030, 7
        %v4032 = vsub.s32 %v4029, %v4031
        %v4033 = vrot.slane %v4019, %v4032
        %v4034 = vcombine.low %v3997, %v4001
        %v4035 = vcombine.high %v3997, %v4001
        %v4037 = vunpack.c.l.s4 1983009808
        %v4038 = vunpack.c.0.s8 %v4037
        %v4039 = vlaneseq
        %v4040 = vshrl.u32 %v4039, 7
        %v4041 = vsub.s32 %v4038, %v4040
        %v4042 = vrot.slane %v4034, %v4041
        %v4044 = vunpack.c.l.s4 1983009808
        %v4045 = vunpack.c.0.s8 %v4044
        %v4046 = vlaneseq
        %v4047 = vshrl.u32 %v4046, 7
        %v4048 = vsub.s32 %v4045, %v4047
        %v4049 = vrot.slane %v4035, %v4048
        %v4050 = vcombine.low %v4003, %v4007
        %v4051 = vcombine.high %v4003, %v4007
        %v4053 = vunpack.c.l.s4 1983009808
        %v4054 = vunpack.c.0.s8 %v4053
        %v4055 = vlaneseq
        %v4056 = vshrl.u32 %v4055, 7
        %v4057 = vsub.s32 %v4054, %v4056
        %v4058 = vrot.slane %v4050, %v4057
        %v4060 = vunpack.c.l.s4 1983009808
        %v4061 = vunpack.c.0.s8 %v4060
        %v4062 = vlaneseq
        %v4063 = vshrl.u32 %v4062, 7
        %v4064 = vsub.s32 %v4061, %v4063
        %v4065 = vrot.slane %v4051, %v4064
        %v4066 = vcombine.low %v4005, %v4009
        %v4067 = vcombine.high %v4005, %v4009
        %v4069 = vunpack.c.l.s4 1983009808
        %v4070 = vunpack.c.0.s8 %v4069
        %v4071 = vlaneseq
        %v4072 = vshrl.u32 %v4071, 7
        %v4073 = vsub.s32 %v4070, %v4072
        %v4074 = vrot.slane %v4066, %v4073
        %v4076 = vunpack.c.l.s4 1983009808
        %v4077 = vunpack.c.0.s8 %v4076
        %v4078 = vlaneseq
        %v4079 = vshrl.u32 %v4078, 7
        %v4080 = vsub.s32 %v4077, %v4079
        %v4081 = vrot.slane %v4067, %v4080
        %v4082 = vcombine.low %v4026, %v4042
        %v4083 = vcombine.high %v4026, %v4042
        %v4085 = vunpack.c.l.s4 1934713408
        %v4086 = vunpack.c.0.s8 %v4085
        %v4087 = vlaneseq
        %v4088 = vshrl.u32 %v4087, 7
        %v4089 = vsub.s32 %v4086, %v4088
        %v4090 = vrot.slane %v4082, %v4089
        %v4092 = vunpack.c.l.s4 1934713408
        %v4093 = vunpack.c.0.s8 %v4092
        %v4094 = vlaneseq
        %v4095 = vshrl.u32 %v4094, 7
        %v4096 = vsub.s32 %v4093, %v4095
        %v4097 = vrot.slane %v4083, %v4096
        %v4098 = vcombine.low %v4033, %v4049
        %v4099 = vcombine.high %v4033, %v4049
        %v4101 = vunpack.c.l.s4 1934713408
        %v4102 = vunpack.c.0.s8 %v4101
        %v4103 = vlaneseq
        %v4104 = vshrl.u32 %v4103, 7
        %v4105 = vsub.s32 %v4102, %v4104
        %v4106 = vrot.slane %v4098, %v4105
        %v4108 = vunpack.c.l.s4 1934713408
        %v4109 = vunpack.c.0.s8 %v4108
        %v4110 = vlaneseq
        %v4111 = vshrl.u32 %v4110, 7
        %v4112 = vsub.s32 %v4109, %v4111
        %v4113 = vrot.slane %v4099, %v4112
        %v4114 = vcombine.low %v4058, %v4074
        %v4115 = vcombine.high %v4058, %v4074
        %v4117 = vunpack.c.l.s4 1934713408
        %v4118 = vunpack.c.0.s8 %v4117
        %v4119 = vlaneseq
        %v4120 = vshrl.u32 %v4119, 7
        %v4121 = vsub.s32 %v4118, %v4120
        %v4122 = vrot.slane %v4114, %v4121
        %v4124 = vunpack.c.l.s4 1934713408
        %v4125 = vunpack.c.0.s8 %v4124
        %v4126 = vlaneseq
        %v4127 = vshrl.u32 %v4126, 7
        %v4128 = vsub.s32 %v4125, %v4127
        %v4129 = vrot.slane %v4115, %v4128
        %v4130 = vcombine.low %v4065, %v4081
        %v4131 = vcombine.high %v4065, %v4081
        %v4133 = vunpack.c.l.s4 1934713408
        %v4134 = vunpack.c.0.s8 %v4133
        %v4135 = vlaneseq
        %v4136 = vshrl.u32 %v4135, 7
        %v4137 = vsub.s32 %v4134, %v4136
        %v4138 = vrot.slane %v4130, %v4137
        %v4140 = vunpack.c.l.s4 1934713408
        %v4141 = vunpack.c.0.s8 %v4140
        %v4142 = vlaneseq
        %v4143 = vshrl.u32 %v4142, 7
        %v4144 = vsub.s32 %v4141, %v4143
        %v4145 = vrot.slane %v4131, %v4144
        %v4146 = vcombine.low %v4090, %v4122
        %v4147 = vcombine.high %v4090, %v4122
        %v4148 = vcombine.low %v4097, %v4129
        %v4149 = vcombine.high %v4097, %v4129
        %v4150 = vcombine.low %v4106, %v4138
        %v4151 = vcombine.high %v4106, %v4138
        %v4152 = vcombine.low %v4113, %v4145
        %v4153 = vcombine.high %v4113, %v4145
        %v4154 = vcombine.low %v4146, %v4148
        %v4155 = vcombine.high %v4146, %v4148
        %v4157 = vunpack.c.l.s4 1983009808
        %v4158 = vunpack.c.0.s8 %v4157
        %v4159 = vlaneseq
        %v4160 = vshrl.u32 %v4159, 7
        %v4161 = vsub.s32 %v4158, %v4160
        %v4162 = vrot.slane %v4154, %v4161
        %v4164 = vunpack.c.l.s4 1983009808
        %v4165 = vunpack.c.0.s8 %v4164
        %v4166 = vlaneseq
        %v4167 = vshrl.u32 %v4166, 7
        %v4168 = vsub.s32 %v4165, %v4167
        %v4169 = vrot.slane %v4155, %v4168
        %v4170 = vcombine.low %v4147, %v4149
        %v4171 = vcombine.high %v4147, %v4149
        %v4173 = vunpack.c.l.s4 1983009808
        %v4174 = vunpack.c.0.s8 %v4173
        %v4175 = vlaneseq
        %v4176 = vshrl.u32 %v4175, 7
        %v4177 = vsub.s32 %v4174, %v4176
        %v4178 = vrot.slane %v4170, %v4177
        %v4180 = vunpack.c.l.s4 1983009808
        %v4181 = vunpack.c.0.s8 %v4180
        %v4182 = vlaneseq
        %v4183 = vshrl.u32 %v4182, 7
        %v4184 = vsub.s32 %v4181, %v4183
        %v4185 = vrot.slane %v4171, %v4184
        %v4186 = vcombine.low %v4150, %v4152
        %v4187 = vcombine.high %v4150, %v4152
        %v4189 = vunpack.c.l.s4 1983009808
        %v4190 = vunpack.c.0.s8 %v4189
        %v4191 = vlaneseq
        %v4192 = vshrl.u32 %v4191, 7
        %v4193 = vsub.s32 %v4190, %v4192
        %v4194 = vrot.slane %v4186, %v4193
        %v4196 = vunpack.c.l.s4 1983009808
        %v4197 = vunpack.c.0.s8 %v4196
        %v4198 = vlaneseq
        %v4199 = vshrl.u32 %v4198, 7
        %v4200 = vsub.s32 %v4197, %v4199
        %v4201 = vrot.slane %v4187, %v4200
        %v4202 = vcombine.low %v4151, %v4153
        %v4203 = vcombine.high %v4151, %v4153
        %v4205 = vunpack.c.l.s4 1983009808
        %v4206 = vunpack.c.0.s8 %v4205
        %v4207 = vlaneseq
        %v4208 = vshrl.u32 %v4207, 7
        %v4209 = vsub.s32 %v4206, %v4208
        %v4210 = vrot.slane %v4202, %v4209
        %v4212 = vunpack.c.l.s4 1983009808
        %v4213 = vunpack.c.0.s8 %v4212
        %v4214 = vlaneseq
        %v4215 = vshrl.u32 %v4214, 7
        %v4216 = vsub.s32 %v4213, %v4215
        %v4217 = vrot.slane %v4203, %v4216
        %v4218 = vcombine.low %v4162, %v4178
        %v4219 = vcombine.high %v4162, %v4178
        %v4221 = vunpack.c.l.s4 1934713408
        %v4222 = vunpack.c.0.s8 %v4221
        %v4223 = vlaneseq
        %v4224 = vshrl.u32 %v4223, 7
        %v4225 = vsub.s32 %v4222, %v4224
        %v4226 = vrot.slane %v4218, %v4225
        %v4228 = vunpack.c.l.s4 1934713408
        %v4229 = vunpack.c.0.s8 %v4228
        %v4230 = vlaneseq
        %v4231 = vshrl.u32 %v4230, 7
        %v4232 = vsub.s32 %v4229, %v4231
        %v4233 = vrot.slane %v4219, %v4232
        %v4234 = vcombine.low %v4169, %v4185
        %v4235 = vcombine.high %v4169, %v4185
        %v4237 = vunpack.c.l.s4 1934713408
        %v4238 = vunpack.c.0.s8 %v4237
        %v4239 = vlaneseq
        %v4240 = vshrl.u32 %v4239, 7
        %v4241 = vsub.s32 %v4238, %v4240
        %v4242 = vrot.slane %v4234, %v4241
        %v4244 = vunpack.c.l.s4 1934713408
        %v4245 = vunpack.c.0.s8 %v4244
        %v4246 = vlaneseq
        %v4247 = vshrl.u32 %v4246, 7
        %v4248 = vsub.s32 %v4245, %v4247
        %v4249 = vrot.slane %v4235, %v4248
        %v4250 = vcombine.low %v4194, %v4210
        %v4251 = vcombine.high %v4194, %v4210
        %v4253 = vunpack.c.l.s4 1934713408
        %v4254 = vunpack.c.0.s8 %v4253
        %v4255 = vlaneseq
        %v4256 = vshrl.u32 %v4255, 7
        %v4257 = vsub.s32 %v4254, %v4256
        %v4258 = vrot.slane %v4250, %v4257
        %v4260 = vunpack.c.l.s4 1934713408
        %v4261 = vunpack.c.0.s8 %v4260
        %v4262 = vlaneseq
        %v4263 = vshrl.u32 %v4262, 7
        %v4264 = vsub.s32 %v4261, %v4263
        %v4265 = vrot.slane %v4251, %v4264
        %v4266 = vcombine.low %v4201, %v4217
        %v4267 = vcombine.high %v4201, %v4217
        %v4269 = vunpack.c.l.s4 1934713408
        %v4270 = vunpack.c.0.s8 %v4269
        %v4271 = vlaneseq
        %v4272 = vshrl.u32 %v4271, 7
        %v4273 = vsub.s32 %v4270, %v4272
        %v4274 = vrot.slane %v4266, %v4273
        %v4276 = vunpack.c.l.s4 1934713408
        %v4277 = vunpack.c.0.s8 %v4276
        %v4278 = vlaneseq
        %v4279 = vshrl.u32 %v4278, 7
        %v4280 = vsub.s32 %v4277, %v4279
        %v4281 = vrot.slane %v4267, %v4280
        %v4282 = vcombine.low %v4226, %v4258
        %v4283 = vcombine.high %v4226, %v4258
        %v4284 = vcombine.low %v4233, %v4265
        %v4285 = vcombine.high %v4233, %v4265
        %v4286 = vcombine.low %v4242, %v4274
        %v4287 = vcombine.high %v4242, %v4274
        %v4288 = vcombine.low %v4249, %v4281
        %v4289 = vcombine.high %v4249, %v4281
        %v4291 = vsel %vm1605, %v3692, 0
        %v4294 = vsel %vm1605, %v3986, 0
        %4296 = vmatprep.subr.mxu0 0.0
        %4297 = vmatpush1.xpose.msra.mxu0 0.0
        %4298 = vmatprep.subr.mxu0 0.0
        %4299 = vmatpush1.xpose.msra.mxu0 0.0
        %4300 = vmatprep.subr.mxu0 0.0
        %4301 = vmatpush1.xpose.msra.mxu0 0.0
        %4302 = vmatprep.subr.mxu0 0.0
        %4303 = vmatpush1.xpose.msra.mxu0 0.0
        %4304 = vmatprep.subr.mxu0 0.0
        %4305 = vmatpush1.xpose.msra.mxu0 0.0
        %4306 = vmatprep.subr.mxu0 0.0
        %4307 = vmatpush1.xpose.msra.mxu0 0.0
        %4308 = vmatprep.subr.mxu0 0.0
        %4309 = vmatpush1.xpose.msra.mxu0 0.0
        %4310 = vmatprep.subr.mxu0 0.0
        %4311 = vmatpush1.xpose.msra.mxu0 0.0
        %4312 = vmatprep.subr.mxu0 0.0
        %4313 = vmatpush1.xpose.msra.mxu0 0.0
        %4314 = vmatprep.subr.mxu0 0.0
        %4315 = vmatpush1.xpose.msra.mxu0 0.0
        %4316 = vmatprep.subr.mxu0 0.0
        %4317 = vmatpush1.xpose.msra.mxu0 0.0
        %4318 = vmatprep.subr.mxu0 0.0
        %4319 = vmatpush1.xpose.msra.mxu0 0.0
        %4320 = vmatprep.subr.mxu0 0.0
        %4321 = vmatpush1.xpose.msra.mxu0 0.0
        %4322 = vmatprep.subr.mxu0 0.0
        %4323 = vmatpush1.xpose.msra.mxu0 0.0
        %4324 = vmatprep.subr.mxu0 0.0
        %4325 = vmatpush1.xpose.msra.mxu0 0.0
        %4326 = vmatprep.subr.mxu0 0.0
        %4327 = vmatpush1.xpose.msra.mxu0 %v4294
        %4328 = vmatprep.subr.mxu0 0.0
        %4329 = vmatpush2.xpose.msra.mxu0 0.0
        %4330 = vmatprep.subr.mxu0 0.0
        %4331 = vmatpush2.xpose.msra.mxu0 0.0
        %4332 = vmatprep.subr.mxu0 0.0
        %4333 = vmatpush2.xpose.msra.mxu0 0.0
        %4334 = vmatprep.subr.mxu0 0.0
        %4335 = vmatpush2.xpose.msra.mxu0 0.0
        %4336 = vmatprep.subr.mxu0 0.0
        %4337 = vmatpush2.xpose.msra.mxu0 0.0
        %4338 = vmatprep.subr.mxu0 0.0
        %4339 = vmatpush2.xpose.msra.mxu0 0.0
        %4340 = vmatprep.subr.mxu0 0.0
        %4341 = vmatpush2.xpose.msra.mxu0 0.0
        %4342 = vmatprep.subr.mxu0 0.0
        %4343 = vmatpush2.xpose.msra.mxu0 0.0
        %4344 = vmatprep.subr.mxu0 0.0
        %4345 = vmatpush2.xpose.msra.mxu0 0.0
        %4346 = vmatprep.subr.mxu0 0.0
        %4347 = vmatpush2.xpose.msra.mxu0 0.0
        %4348 = vmatprep.subr.mxu0 0.0
        %4349 = vmatpush2.xpose.msra.mxu0 0.0
        %4350 = vmatprep.subr.mxu0 0.0
        %4351 = vmatpush2.xpose.msra.mxu0 0.0
        %4352 = vmatprep.subr.mxu0 0.0
        %4353 = vmatpush2.xpose.msra.mxu0 0.0
        %4354 = vmatprep.subr.mxu0 0.0
        %4355 = vmatpush2.xpose.msra.mxu0 0.0
        %4356 = vmatprep.subr.mxu0 0.0
        %4357 = vmatpush2.xpose.msra.mxu0 0.0
        %4358 = vmatprep.subr.mxu0 0.0
        %4359 = vmatpush2.xpose.msra.mxu0 0.0
        %4360 = vmatprep.mubr.f32.mxu0 0.0
        %4361 = vmatmul.mubr.f32.gmra.mxu0 %v4291
        %v4362 = vpop.f32.mrf.mxu0
        %v4363 = vadd.f32 0.0, %v4362
        %v4364 = vpop.f32.mrf.mxu0
        %4365 = vdwg.mxu0
        %v4367 = vsel %vm1605, %v3693, 0
        %v4370 = vsel %vm1605, %v3987, 0
        %4372 = vmatprep.subr.mxu0 0.0
        %4373 = vmatpush1.xpose.msra.mxu0 0.0
        %4374 = vmatprep.subr.mxu0 0.0
        %4375 = vmatpush1.xpose.msra.mxu0 0.0
        %4376 = vmatprep.subr.mxu0 0.0
        %4377 = vmatpush1.xpose.msra.mxu0 0.0
        %4378 = vmatprep.subr.mxu0 0.0
        %4379 = vmatpush1.xpose.msra.mxu0 0.0
        %4380 = vmatprep.subr.mxu0 0.0
        %4381 = vmatpush1.xpose.msra.mxu0 0.0
        %4382 = vmatprep.subr.mxu0 0.0
        %4383 = vmatpush1.xpose.msra.mxu0 0.0
        %4384 = vmatprep.subr.mxu0 0.0
        %4385 = vmatpush1.xpose.msra.mxu0 0.0
        %4386 = vmatprep.subr.mxu0 0.0
        %4387 = vmatpush1.xpose.msra.mxu0 0.0
        %4388 = vmatprep.subr.mxu0 0.0
        %4389 = vmatpush1.xpose.msra.mxu0 0.0
        %4390 = vmatprep.subr.mxu0 0.0
        %4391 = vmatpush1.xpose.msra.mxu0 0.0
        %4392 = vmatprep.subr.mxu0 0.0
        %4393 = vmatpush1.xpose.msra.mxu0 0.0
        %4394 = vmatprep.subr.mxu0 0.0
        %4395 = vmatpush1.xpose.msra.mxu0 0.0
        %4396 = vmatprep.subr.mxu0 0.0
        %4397 = vmatpush1.xpose.msra.mxu0 0.0
        %4398 = vmatprep.subr.mxu0 0.0
        %4399 = vmatpush1.xpose.msra.mxu0 0.0
        %4400 = vmatprep.subr.mxu0 0.0
        %4401 = vmatpush1.xpose.msra.mxu0 0.0
        %4402 = vmatprep.subr.mxu0 0.0
        %4403 = vmatpush1.xpose.msra.mxu0 %v4370
        %4404 = vmatprep.subr.mxu0 0.0
        %4405 = vmatpush2.xpose.msra.mxu0 0.0
        %4406 = vmatprep.subr.mxu0 0.0
        %4407 = vmatpush2.xpose.msra.mxu0 0.0
        %4408 = vmatprep.subr.mxu0 0.0
        %4409 = vmatpush2.xpose.msra.mxu0 0.0
        %4410 = vmatprep.subr.mxu0 0.0
        %4411 = vmatpush2.xpose.msra.mxu0 0.0
        %4412 = vmatprep.subr.mxu0 0.0
        %4413 = vmatpush2.xpose.msra.mxu0 0.0
        %4414 = vmatprep.subr.mxu0 0.0
        %4415 = vmatpush2.xpose.msra.mxu0 0.0
        %4416 = vmatprep.subr.mxu0 0.0
        %4417 = vmatpush2.xpose.msra.mxu0 0.0
        %4418 = vmatprep.subr.mxu0 0.0
        %4419 = vmatpush2.xpose.msra.mxu0 0.0
        %4420 = vmatprep.subr.mxu0 0.0
        %4421 = vmatpush2.xpose.msra.mxu0 0.0
        %4422 = vmatprep.subr.mxu0 0.0
        %4423 = vmatpush2.xpose.msra.mxu0 0.0
        %4424 = vmatprep.subr.mxu0 0.0
        %4425 = vmatpush2.xpose.msra.mxu0 0.0
        %4426 = vmatprep.subr.mxu0 0.0
        %4427 = vmatpush2.xpose.msra.mxu0 0.0
        %4428 = vmatprep.subr.mxu0 0.0
        %4429 = vmatpush2.xpose.msra.mxu0 0.0
        %4430 = vmatprep.subr.mxu0 0.0
        %4431 = vmatpush2.xpose.msra.mxu0 0.0
        %4432 = vmatprep.subr.mxu0 0.0
        %4433 = vmatpush2.xpose.msra.mxu0 0.0
        %4434 = vmatprep.subr.mxu0 0.0
        %4435 = vmatpush2.xpose.msra.mxu0 0.0
        %4436 = vmatprep.mubr.f32.mxu0 0.0
        %4437 = vmatmul.mubr.f32.gmra.mxu0 %v4367
        %v4438 = vpop.f32.mrf.mxu0
        %v4439 = vadd.f32 0.0, %v4438
        %v4440 = vpop.f32.mrf.mxu0
        %4441 = vdwg.mxu0
        %v4443 = vsel %vm1605, %v3694, 0
        %v4446 = vsel %vm1605, %v3988, 0
        %4448 = vmatprep.subr.mxu0 0.0
        %4449 = vmatpush1.xpose.msra.mxu0 0.0
        %4450 = vmatprep.subr.mxu0 0.0
        %4451 = vmatpush1.xpose.msra.mxu0 0.0
        %4452 = vmatprep.subr.mxu0 0.0
        %4453 = vmatpush1.xpose.msra.mxu0 0.0
        %4454 = vmatprep.subr.mxu0 0.0
        %4455 = vmatpush1.xpose.msra.mxu0 0.0
        %4456 = vmatprep.subr.mxu0 0.0
        %4457 = vmatpush1.xpose.msra.mxu0 0.0
        %4458 = vmatprep.subr.mxu0 0.0
        %4459 = vmatpush1.xpose.msra.mxu0 0.0
        %4460 = vmatprep.subr.mxu0 0.0
        %4461 = vmatpush1.xpose.msra.mxu0 0.0
        %4462 = vmatprep.subr.mxu0 0.0
        %4463 = vmatpush1.xpose.msra.mxu0 0.0
        %4464 = vmatprep.subr.mxu0 0.0
        %4465 = vmatpush1.xpose.msra.mxu0 0.0
        %4466 = vmatprep.subr.mxu0 0.0
        %4467 = vmatpush1.xpose.msra.mxu0 0.0
        %4468 = vmatprep.subr.mxu0 0.0
        %4469 = vmatpush1.xpose.msra.mxu0 0.0
        %4470 = vmatprep.subr.mxu0 0.0
        %4471 = vmatpush1.xpose.msra.mxu0 0.0
        %4472 = vmatprep.subr.mxu0 0.0
        %4473 = vmatpush1.xpose.msra.mxu0 0.0
        %4474 = vmatprep.subr.mxu0 0.0
        %4475 = vmatpush1.xpose.msra.mxu0 0.0
        %4476 = vmatprep.subr.mxu0 0.0
        %4477 = vmatpush1.xpose.msra.mxu0 0.0
        %4478 = vmatprep.subr.mxu0 0.0
        %4479 = vmatpush1.xpose.msra.mxu0 %v4446
        %4480 = vmatprep.subr.mxu0 0.0
        %4481 = vmatpush2.xpose.msra.mxu0 0.0
        %4482 = vmatprep.subr.mxu0 0.0
        %4483 = vmatpush2.xpose.msra.mxu0 0.0
        %4484 = vmatprep.subr.mxu0 0.0
        %4485 = vmatpush2.xpose.msra.mxu0 0.0
        %4486 = vmatprep.subr.mxu0 0.0
        %4487 = vmatpush2.xpose.msra.mxu0 0.0
        %4488 = vmatprep.subr.mxu0 0.0
        %4489 = vmatpush2.xpose.msra.mxu0 0.0
        %4490 = vmatprep.subr.mxu0 0.0
        %4491 = vmatpush2.xpose.msra.mxu0 0.0
        %4492 = vmatprep.subr.mxu0 0.0
        %4493 = vmatpush2.xpose.msra.mxu0 0.0
        %4494 = vmatprep.subr.mxu0 0.0
        %4495 = vmatpush2.xpose.msra.mxu0 0.0
        %4496 = vmatprep.subr.mxu0 0.0
        %4497 = vmatpush2.xpose.msra.mxu0 0.0
        %4498 = vmatprep.subr.mxu0 0.0
        %4499 = vmatpush2.xpose.msra.mxu0 0.0
        %4500 = vmatprep.subr.mxu0 0.0
        %4501 = vmatpush2.xpose.msra.mxu0 0.0
        %4502 = vmatprep.subr.mxu0 0.0
        %4503 = vmatpush2.xpose.msra.mxu0 0.0
        %4504 = vmatprep.subr.mxu0 0.0
        %4505 = vmatpush2.xpose.msra.mxu0 0.0
        %4506 = vmatprep.subr.mxu0 0.0
        %4507 = vmatpush2.xpose.msra.mxu0 0.0
        %4508 = vmatprep.subr.mxu0 0.0
        %4509 = vmatpush2.xpose.msra.mxu0 0.0
        %4510 = vmatprep.subr.mxu0 0.0
        %4511 = vmatpush2.xpose.msra.mxu0 0.0
        %4512 = vmatprep.mubr.f32.mxu0 0.0
        %4513 = vmatmul.mubr.f32.gmra.mxu0 %v4443
        %v4514 = vpop.f32.mrf.mxu0
        %v4515 = vadd.f32 0.0, %v4514
        %v4516 = vpop.f32.mrf.mxu0
        %4517 = vdwg.mxu0
        %v4519 = vsel %vm1605, %v3695, 0
        %v4522 = vsel %vm1605, %v3989, 0
        %4524 = vmatprep.subr.mxu0 0.0
        %4525 = vmatpush1.xpose.msra.mxu0 0.0
        %4526 = vmatprep.subr.mxu0 0.0
        %4527 = vmatpush1.xpose.msra.mxu0 0.0
        %4528 = vmatprep.subr.mxu0 0.0
        %4529 = vmatpush1.xpose.msra.mxu0 0.0
        %4530 = vmatprep.subr.mxu0 0.0
        %4531 = vmatpush1.xpose.msra.mxu0 0.0
        %4532 = vmatprep.subr.mxu0 0.0
        %4533 = vmatpush1.xpose.msra.mxu0 0.0
        %4534 = vmatprep.subr.mxu0 0.0
        %4535 = vmatpush1.xpose.msra.mxu0 0.0
        %4536 = vmatprep.subr.mxu0 0.0
        %4537 = vmatpush1.xpose.msra.mxu0 0.0
        %4538 = vmatprep.subr.mxu0 0.0
        %4539 = vmatpush1.xpose.msra.mxu0 0.0
        %4540 = vmatprep.subr.mxu0 0.0
        %4541 = vmatpush1.xpose.msra.mxu0 0.0
        %4542 = vmatprep.subr.mxu0 0.0
        %4543 = vmatpush1.xpose.msra.mxu0 0.0
        %4544 = vmatprep.subr.mxu0 0.0
        %4545 = vmatpush1.xpose.msra.mxu0 0.0
        %4546 = vmatprep.subr.mxu0 0.0
        %4547 = vmatpush1.xpose.msra.mxu0 0.0
        %4548 = vmatprep.subr.mxu0 0.0
        %4549 = vmatpush1.xpose.msra.mxu0 0.0
        %4550 = vmatprep.subr.mxu0 0.0
        %4551 = vmatpush1.xpose.msra.mxu0 0.0
        %4552 = vmatprep.subr.mxu0 0.0
        %4553 = vmatpush1.xpose.msra.mxu0 0.0
        %4554 = vmatprep.subr.mxu0 0.0
        %4555 = vmatpush1.xpose.msra.mxu0 %v4522
        %4556 = vmatprep.subr.mxu0 0.0
        %4557 = vmatpush2.xpose.msra.mxu0 0.0
        %4558 = vmatprep.subr.mxu0 0.0
        %4559 = vmatpush2.xpose.msra.mxu0 0.0
        %4560 = vmatprep.subr.mxu0 0.0
        %4561 = vmatpush2.xpose.msra.mxu0 0.0
        %4562 = vmatprep.subr.mxu0 0.0
        %4563 = vmatpush2.xpose.msra.mxu0 0.0
        %4564 = vmatprep.subr.mxu0 0.0
        %4565 = vmatpush2.xpose.msra.mxu0 0.0
        %4566 = vmatprep.subr.mxu0 0.0
        %4567 = vmatpush2.xpose.msra.mxu0 0.0
        %4568 = vmatprep.subr.mxu0 0.0
        %4569 = vmatpush2.xpose.msra.mxu0 0.0
        %4570 = vmatprep.subr.mxu0 0.0
        %4571 = vmatpush2.xpose.msra.mxu0 0.0
        %4572 = vmatprep.subr.mxu0 0.0
        %4573 = vmatpush2.xpose.msra.mxu0 0.0
        %4574 = vmatprep.subr.mxu0 0.0
        %4575 = vmatpush2.xpose.msra.mxu0 0.0
        %4576 = vmatprep.subr.mxu0 0.0
        %4577 = vmatpush2.xpose.msra.mxu0 0.0
        %4578 = vmatprep.subr.mxu0 0.0
        %4579 = vmatpush2.xpose.msra.mxu0 0.0
        %4580 = vmatprep.subr.mxu0 0.0
        %4581 = vmatpush2.xpose.msra.mxu0 0.0
        %4582 = vmatprep.subr.mxu0 0.0
        %4583 = vmatpush2.xpose.msra.mxu0 0.0
        %4584 = vmatprep.subr.mxu0 0.0
        %4585 = vmatpush2.xpose.msra.mxu0 0.0
        %4586 = vmatprep.subr.mxu0 0.0
        %4587 = vmatpush2.xpose.msra.mxu0 0.0
        %4588 = vmatprep.mubr.f32.mxu0 0.0
        %4589 = vmatmul.mubr.f32.gmra.mxu0 %v4519
        %v4590 = vpop.f32.mrf.mxu0
        %v4591 = vadd.f32 0.0, %v4590
        %v4592 = vpop.f32.mrf.mxu0
        %4593 = vdwg.mxu0
        %v4595 = vsel %vm1605, %v3696, 0
        %v4598 = vsel %vm1605, %v3990, 0
        %4600 = vmatprep.subr.mxu0 0.0
        %4601 = vmatpush1.xpose.msra.mxu0 0.0
        %4602 = vmatprep.subr.mxu0 0.0
        %4603 = vmatpush1.xpose.msra.mxu0 0.0
        %4604 = vmatprep.subr.mxu0 0.0
        %4605 = vmatpush1.xpose.msra.mxu0 0.0
        %4606 = vmatprep.subr.mxu0 0.0
        %4607 = vmatpush1.xpose.msra.mxu0 0.0
        %4608 = vmatprep.subr.mxu0 0.0
        %4609 = vmatpush1.xpose.msra.mxu0 0.0
        %4610 = vmatprep.subr.mxu0 0.0
        %4611 = vmatpush1.xpose.msra.mxu0 0.0
        %4612 = vmatprep.subr.mxu0 0.0
        %4613 = vmatpush1.xpose.msra.mxu0 0.0
        %4614 = vmatprep.subr.mxu0 0.0
        %4615 = vmatpush1.xpose.msra.mxu0 0.0
        %4616 = vmatprep.subr.mxu0 0.0
        %4617 = vmatpush1.xpose.msra.mxu0 0.0
        %4618 = vmatprep.subr.mxu0 0.0
        %4619 = vmatpush1.xpose.msra.mxu0 0.0
        %4620 = vmatprep.subr.mxu0 0.0
        %4621 = vmatpush1.xpose.msra.mxu0 0.0
        %4622 = vmatprep.subr.mxu0 0.0
        %4623 = vmatpush1.xpose.msra.mxu0 0.0
        %4624 = vmatprep.subr.mxu0 0.0
        %4625 = vmatpush1.xpose.msra.mxu0 0.0
        %4626 = vmatprep.subr.mxu0 0.0
        %4627 = vmatpush1.xpose.msra.mxu0 0.0
        %4628 = vmatprep.subr.mxu0 0.0
        %4629 = vmatpush1.xpose.msra.mxu0 0.0
        %4630 = vmatprep.subr.mxu0 0.0
        %4631 = vmatpush1.xpose.msra.mxu0 %v4598
        %4632 = vmatprep.subr.mxu0 0.0
        %4633 = vmatpush2.xpose.msra.mxu0 0.0
        %4634 = vmatprep.subr.mxu0 0.0
        %4635 = vmatpush2.xpose.msra.mxu0 0.0
        %4636 = vmatprep.subr.mxu0 0.0
        %4637 = vmatpush2.xpose.msra.mxu0 0.0
        %4638 = vmatprep.subr.mxu0 0.0
        %4639 = vmatpush2.xpose.msra.mxu0 0.0
        %4640 = vmatprep.subr.mxu0 0.0
        %4641 = vmatpush2.xpose.msra.mxu0 0.0
        %4642 = vmatprep.subr.mxu0 0.0
        %4643 = vmatpush2.xpose.msra.mxu0 0.0
        %4644 = vmatprep.subr.mxu0 0.0
        %4645 = vmatpush2.xpose.msra.mxu0 0.0
        %4646 = vmatprep.subr.mxu0 0.0
        %4647 = vmatpush2.xpose.msra.mxu0 0.0
        %4648 = vmatprep.subr.mxu0 0.0
        %4649 = vmatpush2.xpose.msra.mxu0 0.0
        %4650 = vmatprep.subr.mxu0 0.0
        %4651 = vmatpush2.xpose.msra.mxu0 0.0
        %4652 = vmatprep.subr.mxu0 0.0
        %4653 = vmatpush2.xpose.msra.mxu0 0.0
        %4654 = vmatprep.subr.mxu0 0.0
        %4655 = vmatpush2.xpose.msra.mxu0 0.0
        %4656 = vmatprep.subr.mxu0 0.0
        %4657 = vmatpush2.xpose.msra.mxu0 0.0
        %4658 = vmatprep.subr.mxu0 0.0
        %4659 = vmatpush2.xpose.msra.mxu0 0.0
        %4660 = vmatprep.subr.mxu0 0.0
        %4661 = vmatpush2.xpose.msra.mxu0 0.0
        %4662 = vmatprep.subr.mxu0 0.0
        %4663 = vmatpush2.xpose.msra.mxu0 0.0
        %4664 = vmatprep.mubr.f32.mxu0 0.0
        %4665 = vmatmul.mubr.f32.gmra.mxu0 %v4595
        %v4666 = vpop.f32.mrf.mxu0
        %v4667 = vadd.f32 0.0, %v4666
        %v4668 = vpop.f32.mrf.mxu0
        %4669 = vdwg.mxu0
        %v4671 = vsel %vm1605, %v3697, 0
        %v4674 = vsel %vm1605, %v3991, 0
        %4676 = vmatprep.subr.mxu0 0.0
        %4677 = vmatpush1.xpose.msra.mxu0 0.0
        %4678 = vmatprep.subr.mxu0 0.0
        %4679 = vmatpush1.xpose.msra.mxu0 0.0
        %4680 = vmatprep.subr.mxu0 0.0
        %4681 = vmatpush1.xpose.msra.mxu0 0.0
        %4682 = vmatprep.subr.mxu0 0.0
        %4683 = vmatpush1.xpose.msra.mxu0 0.0
        %4684 = vmatprep.subr.mxu0 0.0
        %4685 = vmatpush1.xpose.msra.mxu0 0.0
        %4686 = vmatprep.subr.mxu0 0.0
        %4687 = vmatpush1.xpose.msra.mxu0 0.0
        %4688 = vmatprep.subr.mxu0 0.0
        %4689 = vmatpush1.xpose.msra.mxu0 0.0
        %4690 = vmatprep.subr.mxu0 0.0
        %4691 = vmatpush1.xpose.msra.mxu0 0.0
        %4692 = vmatprep.subr.mxu0 0.0
        %4693 = vmatpush1.xpose.msra.mxu0 0.0
        %4694 = vmatprep.subr.mxu0 0.0
        %4695 = vmatpush1.xpose.msra.mxu0 0.0
        %4696 = vmatprep.subr.mxu0 0.0
        %4697 = vmatpush1.xpose.msra.mxu0 0.0
        %4698 = vmatprep.subr.mxu0 0.0
        %4699 = vmatpush1.xpose.msra.mxu0 0.0
        %4700 = vmatprep.subr.mxu0 0.0
        %4701 = vmatpush1.xpose.msra.mxu0 0.0
        %4702 = vmatprep.subr.mxu0 0.0
        %4703 = vmatpush1.xpose.msra.mxu0 0.0
        %4704 = vmatprep.subr.mxu0 0.0
        %4705 = vmatpush1.xpose.msra.mxu0 0.0
        %4706 = vmatprep.subr.mxu0 0.0
        %4707 = vmatpush1.xpose.msra.mxu0 %v4674
        %4708 = vmatprep.subr.mxu0 0.0
        %4709 = vmatpush2.xpose.msra.mxu0 0.0
        %4710 = vmatprep.subr.mxu0 0.0
        %4711 = vmatpush2.xpose.msra.mxu0 0.0
        %4712 = vmatprep.subr.mxu0 0.0
        %4713 = vmatpush2.xpose.msra.mxu0 0.0
        %4714 = vmatprep.subr.mxu0 0.0
        %4715 = vmatpush2.xpose.msra.mxu0 0.0
        %4716 = vmatprep.subr.mxu0 0.0
        %4717 = vmatpush2.xpose.msra.mxu0 0.0
        %4718 = vmatprep.subr.mxu0 0.0
        %4719 = vmatpush2.xpose.msra.mxu0 0.0
        %4720 = vmatprep.subr.mxu0 0.0
        %4721 = vmatpush2.xpose.msra.mxu0 0.0
        %4722 = vmatprep.subr.mxu0 0.0
        %4723 = vmatpush2.xpose.msra.mxu0 0.0
        %4724 = vmatprep.subr.mxu0 0.0
        %4725 = vmatpush2.xpose.msra.mxu0 0.0
        %4726 = vmatprep.subr.mxu0 0.0
        %4727 = vmatpush2.xpose.msra.mxu0 0.0
        %4728 = vmatprep.subr.mxu0 0.0
        %4729 = vmatpush2.xpose.msra.mxu0 0.0
        %4730 = vmatprep.subr.mxu0 0.0
        %4731 = vmatpush2.xpose.msra.mxu0 0.0
        %4732 = vmatprep.subr.mxu0 0.0
        %4733 = vmatpush2.xpose.msra.mxu0 0.0
        %4734 = vmatprep.subr.mxu0 0.0
        %4735 = vmatpush2.xpose.msra.mxu0 0.0
        %4736 = vmatprep.subr.mxu0 0.0
        %4737 = vmatpush2.xpose.msra.mxu0 0.0
        %4738 = vmatprep.subr.mxu0 0.0
        %4739 = vmatpush2.xpose.msra.mxu0 0.0
        %4740 = vmatprep.mubr.f32.mxu0 0.0
        %4741 = vmatmul.mubr.f32.gmra.mxu0 %v4671
        %v4742 = vpop.f32.mrf.mxu0
        %v4743 = vadd.f32 0.0, %v4742
        %v4744 = vpop.f32.mrf.mxu0
        %4745 = vdwg.mxu0
        %v4747 = vsel %vm1605, %v3698, 0
        %v4750 = vsel %vm1605, %v3992, 0
        %4752 = vmatprep.subr.mxu0 0.0
        %4753 = vmatpush1.xpose.msra.mxu0 0.0
        %4754 = vmatprep.subr.mxu0 0.0
        %4755 = vmatpush1.xpose.msra.mxu0 0.0
        %4756 = vmatprep.subr.mxu0 0.0
        %4757 = vmatpush1.xpose.msra.mxu0 0.0
        %4758 = vmatprep.subr.mxu0 0.0
        %4759 = vmatpush1.xpose.msra.mxu0 0.0
        %4760 = vmatprep.subr.mxu0 0.0
        %4761 = vmatpush1.xpose.msra.mxu0 0.0
        %4762 = vmatprep.subr.mxu0 0.0
        %4763 = vmatpush1.xpose.msra.mxu0 0.0
        %4764 = vmatprep.subr.mxu0 0.0
        %4765 = vmatpush1.xpose.msra.mxu0 0.0
        %4766 = vmatprep.subr.mxu0 0.0
        %4767 = vmatpush1.xpose.msra.mxu0 0.0
        %4768 = vmatprep.subr.mxu0 0.0
        %4769 = vmatpush1.xpose.msra.mxu0 0.0
        %4770 = vmatprep.subr.mxu0 0.0
        %4771 = vmatpush1.xpose.msra.mxu0 0.0
        %4772 = vmatprep.subr.mxu0 0.0
        %4773 = vmatpush1.xpose.msra.mxu0 0.0
        %4774 = vmatprep.subr.mxu0 0.0
        %4775 = vmatpush1.xpose.msra.mxu0 0.0
        %4776 = vmatprep.subr.mxu0 0.0
        %4777 = vmatpush1.xpose.msra.mxu0 0.0
        %4778 = vmatprep.subr.mxu0 0.0
        %4779 = vmatpush1.xpose.msra.mxu0 0.0
        %4780 = vmatprep.subr.mxu0 0.0
        %4781 = vmatpush1.xpose.msra.mxu0 0.0
        %4782 = vmatprep.subr.mxu0 0.0
        %4783 = vmatpush1.xpose.msra.mxu0 %v4750
        %4784 = vmatprep.subr.mxu0 0.0
        %4785 = vmatpush2.xpose.msra.mxu0 0.0
        %4786 = vmatprep.subr.mxu0 0.0
        %4787 = vmatpush2.xpose.msra.mxu0 0.0
        %4788 = vmatprep.subr.mxu0 0.0
        %4789 = vmatpush2.xpose.msra.mxu0 0.0
        %4790 = vmatprep.subr.mxu0 0.0
        %4791 = vmatpush2.xpose.msra.mxu0 0.0
        %4792 = vmatprep.subr.mxu0 0.0
        %4793 = vmatpush2.xpose.msra.mxu0 0.0
        %4794 = vmatprep.subr.mxu0 0.0
        %4795 = vmatpush2.xpose.msra.mxu0 0.0
        %4796 = vmatprep.subr.mxu0 0.0
        %4797 = vmatpush2.xpose.msra.mxu0 0.0
        %4798 = vmatprep.subr.mxu0 0.0
        %4799 = vmatpush2.xpose.msra.mxu0 0.0
        %4800 = vmatprep.subr.mxu0 0.0
        %4801 = vmatpush2.xpose.msra.mxu0 0.0
        %4802 = vmatprep.subr.mxu0 0.0
        %4803 = vmatpush2.xpose.msra.mxu0 0.0
        %4804 = vmatprep.subr.mxu0 0.0
        %4805 = vmatpush2.xpose.msra.mxu0 0.0
        %4806 = vmatprep.subr.mxu0 0.0
        %4807 = vmatpush2.xpose.msra.mxu0 0.0
        %4808 = vmatprep.subr.mxu0 0.0
        %4809 = vmatpush2.xpose.msra.mxu0 0.0
        %4810 = vmatprep.subr.mxu0 0.0
        %4811 = vmatpush2.xpose.msra.mxu0 0.0
        %4812 = vmatprep.subr.mxu0 0.0
        %4813 = vmatpush2.xpose.msra.mxu0 0.0
        %4814 = vmatprep.subr.mxu0 0.0
        %4815 = vmatpush2.xpose.msra.mxu0 0.0
        %4816 = vmatprep.mubr.f32.mxu0 0.0
        %4817 = vmatmul.mubr.f32.gmra.mxu0 %v4747
        %v4818 = vpop.f32.mrf.mxu0
        %v4819 = vadd.f32 0.0, %v4818
        %v4820 = vpop.f32.mrf.mxu0
        %4821 = vdwg.mxu0
        %v4823 = vsel %vm1605, %v3699, 0
        %v4826 = vsel %vm1605, %v3993, 0
        %4828 = vmatprep.subr.mxu0 0.0
        %4829 = vmatpush1.xpose.msra.mxu0 0.0
        %4830 = vmatprep.subr.mxu0 0.0
        %4831 = vmatpush1.xpose.msra.mxu0 0.0
        %4832 = vmatprep.subr.mxu0 0.0
        %4833 = vmatpush1.xpose.msra.mxu0 0.0
        %4834 = vmatprep.subr.mxu0 0.0
        %4835 = vmatpush1.xpose.msra.mxu0 0.0
        %4836 = vmatprep.subr.mxu0 0.0
        %4837 = vmatpush1.xpose.msra.mxu0 0.0
        %4838 = vmatprep.subr.mxu0 0.0
        %4839 = vmatpush1.xpose.msra.mxu0 0.0
        %4840 = vmatprep.subr.mxu0 0.0
        %4841 = vmatpush1.xpose.msra.mxu0 0.0
        %4842 = vmatprep.subr.mxu0 0.0
        %4843 = vmatpush1.xpose.msra.mxu0 0.0
        %4844 = vmatprep.subr.mxu0 0.0
        %4845 = vmatpush1.xpose.msra.mxu0 0.0
        %4846 = vmatprep.subr.mxu0 0.0
        %4847 = vmatpush1.xpose.msra.mxu0 0.0
        %4848 = vmatprep.subr.mxu0 0.0
        %4849 = vmatpush1.xpose.msra.mxu0 0.0
        %4850 = vmatprep.subr.mxu0 0.0
        %4851 = vmatpush1.xpose.msra.mxu0 0.0
        %4852 = vmatprep.subr.mxu0 0.0
        %4853 = vmatpush1.xpose.msra.mxu0 0.0
        %4854 = vmatprep.subr.mxu0 0.0
        %4855 = vmatpush1.xpose.msra.mxu0 0.0
        %4856 = vmatprep.subr.mxu0 0.0
        %4857 = vmatpush1.xpose.msra.mxu0 0.0
        %4858 = vmatprep.subr.mxu0 0.0
        %4859 = vmatpush1.xpose.msra.mxu0 %v4826
        %4860 = vmatprep.subr.mxu0 0.0
        %4861 = vmatpush2.xpose.msra.mxu0 0.0
        %4862 = vmatprep.subr.mxu0 0.0
        %4863 = vmatpush2.xpose.msra.mxu0 0.0
        %4864 = vmatprep.subr.mxu0 0.0
        %4865 = vmatpush2.xpose.msra.mxu0 0.0
        %4866 = vmatprep.subr.mxu0 0.0
        %4867 = vmatpush2.xpose.msra.mxu0 0.0
        %4868 = vmatprep.subr.mxu0 0.0
        %4869 = vmatpush2.xpose.msra.mxu0 0.0
        %4870 = vmatprep.subr.mxu0 0.0
        %4871 = vmatpush2.xpose.msra.mxu0 0.0
        %4872 = vmatprep.subr.mxu0 0.0
        %4873 = vmatpush2.xpose.msra.mxu0 0.0
        %4874 = vmatprep.subr.mxu0 0.0
        %4875 = vmatpush2.xpose.msra.mxu0 0.0
        %4876 = vmatprep.subr.mxu0 0.0
        %4877 = vmatpush2.xpose.msra.mxu0 0.0
        %4878 = vmatprep.subr.mxu0 0.0
        %4879 = vmatpush2.xpose.msra.mxu0 0.0
        %4880 = vmatprep.subr.mxu0 0.0
        %4881 = vmatpush2.xpose.msra.mxu0 0.0
        %4882 = vmatprep.subr.mxu0 0.0
        %4883 = vmatpush2.xpose.msra.mxu0 0.0
        %4884 = vmatprep.subr.mxu0 0.0
        %4885 = vmatpush2.xpose.msra.mxu0 0.0
        %4886 = vmatprep.subr.mxu0 0.0
        %4887 = vmatpush2.xpose.msra.mxu0 0.0
        %4888 = vmatprep.subr.mxu0 0.0
        %4889 = vmatpush2.xpose.msra.mxu0 0.0
        %4890 = vmatprep.subr.mxu0 0.0
        %4891 = vmatpush2.xpose.msra.mxu0 0.0
        %4892 = vmatprep.mubr.f32.mxu0 0.0
        %4893 = vmatmul.mubr.f32.gmra.mxu0 %v4823
        %v4894 = vpop.f32.mrf.mxu0
        %v4895 = vadd.f32 0.0, %v4894
        %v4896 = vpop.f32.mrf.mxu0
        %4897 = vdwg.mxu0
        %v4898 = vmul.f32 %v4363, 2.0
        %v4899 = vmul.f32 %v4439, 2.0
        %v4900 = vmul.f32 %v4515, 2.0
        %v4901 = vmul.f32 %v4591, 2.0
        %v4902 = vmul.f32 %v4667, 2.0
        %v4903 = vmul.f32 %v4743, 2.0
        %v4904 = vmul.f32 %v4819, 2.0
        %v4905 = vmul.f32 %v4895, 2.0
        %v4906 = vsel %vm2222, %v4898, -inf
        %4907 = vmax.xlane.f32.xlu0 %v4906
        %v4908 = vpop.xlane.xlu0 %4907
        %v4909 = vsel %vm2222, %v4899, -inf
        %4910 = vmax.xlane.f32.xlu0 %v4909
        %v4911 = vpop.xlane.xlu0 %4910
        %v4912 = vsel %vm2222, %v4900, -inf
        %4913 = vmax.xlane.f32.xlu0 %v4912
        %v4914 = vpop.xlane.xlu0 %4913
        %v4915 = vsel %vm2222, %v4901, -inf
        %4916 = vmax.xlane.f32.xlu0 %v4915
        %v4917 = vpop.xlane.xlu0 %4916
        %v4918 = vsel %vm2222, %v4902, -inf
        %4919 = vmax.xlane.f32.xlu0 %v4918
        %v4920 = vpop.xlane.xlu0 %4919
        %v4921 = vsel %vm2222, %v4903, -inf
        %4922 = vmax.xlane.f32.xlu0 %v4921
        %v4923 = vpop.xlane.xlu0 %4922
        %v4924 = vsel %vm2222, %v4904, -inf
        %4925 = vmax.xlane.f32.xlu0 %v4924
        %v4926 = vpop.xlane.xlu0 %4925
        %v4927 = vsel %vm2222, %v4905, -inf
        %4928 = vmax.xlane.f32.xlu0 %v4927
        %v4929 = vpop.xlane.xlu0 %4928
        %v4930 = vsub.f32 %v4898, %v4908
        %v4931 = vsub.f32 %v4899, %v4911
        %v4932 = vsub.f32 %v4900, %v4914
        %v4933 = vsub.f32 %v4901, %v4917
        %v4934 = vsub.f32 %v4902, %v4920
        %v4935 = vsub.f32 %v4903, %v4923
        %v4936 = vsub.f32 %v4904, %v4926
        %v4937 = vsub.f32 %v4905, %v4929
        %v4938 = vmul.f32 %v4930, 1.442695
        %v4939 = vpow.pop %v4938
        %v4940 = vmul.f32 %v4931, 1.442695
        %v4941 = vpow.pop %v4940
        %v4942 = vmul.f32 %v4932, 1.442695
        %v4943 = vpow.pop %v4942
        %v4944 = vmul.f32 %v4933, 1.442695
        %v4945 = vpow.pop %v4944
        %v4946 = vmul.f32 %v4934, 1.442695
        %v4947 = vpow.pop %v4946
        %v4948 = vmul.f32 %v4935, 1.442695
        %v4949 = vpow.pop %v4948
        %v4950 = vmul.f32 %v4936, 1.442695
        %v4951 = vpow.pop %v4950
        %v4952 = vmul.f32 %v4937, 1.442695
        %v4953 = vpow.pop %v4952
        %v4954 = vsel %vm2222, %v4939, 0.0
        %4955 = vadd.xlane.f32.xlu0 %v4954
        %v4956 = vpop.xlane.xlu0 %4955
        %v4957 = vsel %vm2222, %v4941, 0.0
        %4958 = vadd.xlane.f32.xlu0 %v4957
        %v4959 = vpop.xlane.xlu0 %4958
        %v4960 = vsel %vm2222, %v4943, 0.0
        %4961 = vadd.xlane.f32.xlu0 %v4960
        %v4962 = vpop.xlane.xlu0 %4961
        %v4963 = vsel %vm2222, %v4945, 0.0
        %4964 = vadd.xlane.f32.xlu0 %v4963
        %v4965 = vpop.xlane.xlu0 %4964
        %v4966 = vsel %vm2222, %v4947, 0.0
        %4967 = vadd.xlane.f32.xlu0 %v4966
        %v4968 = vpop.xlane.xlu0 %4967
        %v4969 = vsel %vm2222, %v4949, 0.0
        %4970 = vadd.xlane.f32.xlu0 %v4969
        %v4971 = vpop.xlane.xlu0 %4970
        %v4972 = vsel %vm2222, %v4951, 0.0
        %4973 = vadd.xlane.f32.xlu0 %v4972
        %v4974 = vpop.xlane.xlu0 %4973
        %v4975 = vsel %vm2222, %v4953, 0.0
        %4976 = vadd.xlane.f32.xlu0 %v4975
        %v4977 = vpop.xlane.xlu0 %4976
        %v4978 = vrcp.pop %v4956
        %v4979 = vmul.f32 %v4939, %v4978
        %v4980 = vrcp.pop %v4959
        %v4981 = vmul.f32 %v4941, %v4980
        %v4982 = vrcp.pop %v4962
        %v4983 = vmul.f32 %v4943, %v4982
        %v4984 = vrcp.pop %v4965
        %v4985 = vmul.f32 %v4945, %v4984
        %v4986 = vrcp.pop %v4968
        %v4987 = vmul.f32 %v4947, %v4986
        %v4988 = vrcp.pop %v4971
        %v4989 = vmul.f32 %v4949, %v4988
        %v4990 = vrcp.pop %v4974
        %v4991 = vmul.f32 %v4951, %v4990
        %v4992 = vrcp.pop %v4977
        %v4993 = vmul.f32 %v4953, %v4992
        %v4995 = vsel %vm2222, %v4979, 0
        %4997 = vmatprep.subr.mxu0 0.0
        %4998 = vmatpush1.msra.mxu0 0.0
        %4999 = vmatprep.subr.mxu0 0.0
        %5000 = vmatpush1.msra.mxu0 0.0
        %5001 = vmatprep.subr.mxu0 0.0
        %5002 = vmatpush1.msra.mxu0 0.0
        %5003 = vmatprep.subr.mxu0 0.0
        %5004 = vmatpush1.msra.mxu0 0.0
        %5005 = vmatprep.subr.mxu0 0.0
        %5006 = vmatpush1.msra.mxu0 0.0
        %5007 = vmatprep.subr.mxu0 0.0
        %5008 = vmatpush1.msra.mxu0 0.0
        %5009 = vmatprep.subr.mxu0 0.0
        %5010 = vmatpush1.msra.mxu0 0.0
        %5011 = vmatprep.subr.mxu0 0.0
        %5012 = vmatpush1.msra.mxu0 0.0
        %5013 = vmatprep.subr.mxu0 0.0
        %5014 = vmatpush1.msra.mxu0 0.0
        %5015 = vmatprep.subr.mxu0 0.0
        %5016 = vmatpush1.msra.mxu0 0.0
        %5017 = vmatprep.subr.mxu0 0.0
        %5018 = vmatpush1.msra.mxu0 0.0
        %5019 = vmatprep.subr.mxu0 0.0
        %5020 = vmatpush1.msra.mxu0 0.0
        %5021 = vmatprep.subr.mxu0 0.0
        %5022 = vmatpush1.msra.mxu0 0.0
        %5023 = vmatprep.subr.mxu0 0.0
        %5024 = vmatpush1.msra.mxu0 0.0
        %5025 = vmatprep.subr.mxu0 0.0
        %5026 = vmatpush1.msra.mxu0 0.0
        %5027 = vmatprep.subr.mxu0 0.0
        %5028 = vmatpush1.msra.mxu0 %v4282
        %5029 = vmatprep.subr.mxu0 0.0
        %5030 = vmatpush2.msra.mxu0 0.0
        %5031 = vmatprep.subr.mxu0 0.0
        %5032 = vmatpush2.msra.mxu0 0.0
        %5033 = vmatprep.subr.mxu0 0.0
        %5034 = vmatpush2.msra.mxu0 0.0
        %5035 = vmatprep.subr.mxu0 0.0
        %5036 = vmatpush2.msra.mxu0 0.0
        %5037 = vmatprep.subr.mxu0 0.0
        %5038 = vmatpush2.msra.mxu0 0.0
        %5039 = vmatprep.subr.mxu0 0.0
        %5040 = vmatpush2.msra.mxu0 0.0
        %5041 = vmatprep.subr.mxu0 0.0
        %5042 = vmatpush2.msra.mxu0 0.0
        %5043 = vmatprep.subr.mxu0 0.0
        %5044 = vmatpush2.msra.mxu0 0.0
        %5045 = vmatprep.subr.mxu0 0.0
        %5046 = vmatpush2.msra.mxu0 0.0
        %5047 = vmatprep.subr.mxu0 0.0
        %5048 = vmatpush2.msra.mxu0 0.0
        %5049 = vmatprep.subr.mxu0 0.0
        %5050 = vmatpush2.msra.mxu0 0.0
        %5051 = vmatprep.subr.mxu0 0.0
        %5052 = vmatpush2.msra.mxu0 0.0
        %5053 = vmatprep.subr.mxu0 0.0
        %5054 = vmatpush2.msra.mxu0 0.0
        %5055 = vmatprep.subr.mxu0 0.0
        %5056 = vmatpush2.msra.mxu0 0.0
        %5057 = vmatprep.subr.mxu0 0.0
        %5058 = vmatpush2.msra.mxu0 0.0
        %5059 = vmatprep.subr.mxu0 0.0
        %5060 = vmatpush2.msra.mxu0 0.0
        %5061 = vmatprep.mubr.f32.mxu0 0.0
        %5062 = vmatmul.mubr.f32.gmra.mxu0 %v4995
        %v5063 = vpop.f32.mrf.mxu0
        %v5064 = vadd.f32 0.0, %v5063
        %v5065 = vpop.f32.mrf.mxu0
        %5066 = vdwg.mxu0
        %v5068 = vsel %vm2222, %v4981, 0
        %5070 = vmatprep.subr.mxu0 0.0
        %5071 = vmatpush1.msra.mxu0 0.0
        %5072 = vmatprep.subr.mxu0 0.0
        %5073 = vmatpush1.msra.mxu0 0.0
        %5074 = vmatprep.subr.mxu0 0.0
        %5075 = vmatpush1.msra.mxu0 0.0
        %5076 = vmatprep.subr.mxu0 0.0
        %5077 = vmatpush1.msra.mxu0 0.0
        %5078 = vmatprep.subr.mxu0 0.0
        %5079 = vmatpush1.msra.mxu0 0.0
        %5080 = vmatprep.subr.mxu0 0.0
        %5081 = vmatpush1.msra.mxu0 0.0
        %5082 = vmatprep.subr.mxu0 0.0
        %5083 = vmatpush1.msra.mxu0 0.0
        %5084 = vmatprep.subr.mxu0 0.0
        %5085 = vmatpush1.msra.mxu0 0.0
        %5086 = vmatprep.subr.mxu0 0.0
        %5087 = vmatpush1.msra.mxu0 0.0
        %5088 = vmatprep.subr.mxu0 0.0
        %5089 = vmatpush1.msra.mxu0 0.0
        %5090 = vmatprep.subr.mxu0 0.0
        %5091 = vmatpush1.msra.mxu0 0.0
        %5092 = vmatprep.subr.mxu0 0.0
        %5093 = vmatpush1.msra.mxu0 0.0
        %5094 = vmatprep.subr.mxu0 0.0
        %5095 = vmatpush1.msra.mxu0 0.0
        %5096 = vmatprep.subr.mxu0 0.0
        %5097 = vmatpush1.msra.mxu0 0.0
        %5098 = vmatprep.subr.mxu0 0.0
        %5099 = vmatpush1.msra.mxu0 0.0
        %5100 = vmatprep.subr.mxu0 0.0
        %5101 = vmatpush1.msra.mxu0 %v4283
        %5102 = vmatprep.subr.mxu0 0.0
        %5103 = vmatpush2.msra.mxu0 0.0
        %5104 = vmatprep.subr.mxu0 0.0
        %5105 = vmatpush2.msra.mxu0 0.0
        %5106 = vmatprep.subr.mxu0 0.0
        %5107 = vmatpush2.msra.mxu0 0.0
        %5108 = vmatprep.subr.mxu0 0.0
        %5109 = vmatpush2.msra.mxu0 0.0
        %5110 = vmatprep.subr.mxu0 0.0
        %5111 = vmatpush2.msra.mxu0 0.0
        %5112 = vmatprep.subr.mxu0 0.0
        %5113 = vmatpush2.msra.mxu0 0.0
        %5114 = vmatprep.subr.mxu0 0.0
        %5115 = vmatpush2.msra.mxu0 0.0
        %5116 = vmatprep.subr.mxu0 0.0
        %5117 = vmatpush2.msra.mxu0 0.0
        %5118 = vmatprep.subr.mxu0 0.0
        %5119 = vmatpush2.msra.mxu0 0.0
        %5120 = vmatprep.subr.mxu0 0.0
        %5121 = vmatpush2.msra.mxu0 0.0
        %5122 = vmatprep.subr.mxu0 0.0
        %5123 = vmatpush2.msra.mxu0 0.0
        %5124 = vmatprep.subr.mxu0 0.0
        %5125 = vmatpush2.msra.mxu0 0.0
        %5126 = vmatprep.subr.mxu0 0.0
        %5127 = vmatpush2.msra.mxu0 0.0
        %5128 = vmatprep.subr.mxu0 0.0
        %5129 = vmatpush2.msra.mxu0 0.0
        %5130 = vmatprep.subr.mxu0 0.0
        %5131 = vmatpush2.msra.mxu0 0.0
        %5132 = vmatprep.subr.mxu0 0.0
        %5133 = vmatpush2.msra.mxu0 0.0
        %5134 = vmatprep.mubr.f32.mxu0 0.0
        %5135 = vmatmul.mubr.f32.gmra.mxu0 %v5068
        %v5136 = vpop.f32.mrf.mxu0
        %v5137 = vadd.f32 0.0, %v5136
        %v5138 = vpop.f32.mrf.mxu0
        %5139 = vdwg.mxu0
        %v5141 = vsel %vm2222, %v4983, 0
        %5143 = vmatprep.subr.mxu0 0.0
        %5144 = vmatpush1.msra.mxu0 0.0
        %5145 = vmatprep.subr.mxu0 0.0
        %5146 = vmatpush1.msra.mxu0 0.0
        %5147 = vmatprep.subr.mxu0 0.0
        %5148 = vmatpush1.msra.mxu0 0.0
        %5149 = vmatprep.subr.mxu0 0.0
        %5150 = vmatpush1.msra.mxu0 0.0
        %5151 = vmatprep.subr.mxu0 0.0
        %5152 = vmatpush1.msra.mxu0 0.0
        %5153 = vmatprep.subr.mxu0 0.0
        %5154 = vmatpush1.msra.mxu0 0.0
        %5155 = vmatprep.subr.mxu0 0.0
        %5156 = vmatpush1.msra.mxu0 0.0
        %5157 = vmatprep.subr.mxu0 0.0
        %5158 = vmatpush1.msra.mxu0 0.0
        %5159 = vmatprep.subr.mxu0 0.0
        %5160 = vmatpush1.msra.mxu0 0.0
        %5161 = vmatprep.subr.mxu0 0.0
        %5162 = vmatpush1.msra.mxu0 0.0
        %5163 = vmatprep.subr.mxu0 0.0
        %5164 = vmatpush1.msra.mxu0 0.0
        %5165 = vmatprep.subr.mxu0 0.0
        %5166 = vmatpush1.msra.mxu0 0.0
        %5167 = vmatprep.subr.mxu0 0.0
        %5168 = vmatpush1.msra.mxu0 0.0
        %5169 = vmatprep.subr.mxu0 0.0
        %5170 = vmatpush1.msra.mxu0 0.0
        %5171 = vmatprep.subr.mxu0 0.0
        %5172 = vmatpush1.msra.mxu0 0.0
        %5173 = vmatprep.subr.mxu0 0.0
        %5174 = vmatpush1.msra.mxu0 %v4284
        %5175 = vmatprep.subr.mxu0 0.0
        %5176 = vmatpush2.msra.mxu0 0.0
        %5177 = vmatprep.subr.mxu0 0.0
        %5178 = vmatpush2.msra.mxu0 0.0
        %5179 = vmatprep.subr.mxu0 0.0
        %5180 = vmatpush2.msra.mxu0 0.0
        %5181 = vmatprep.subr.mxu0 0.0
        %5182 = vmatpush2.msra.mxu0 0.0
        %5183 = vmatprep.subr.mxu0 0.0
        %5184 = vmatpush2.msra.mxu0 0.0
        %5185 = vmatprep.subr.mxu0 0.0
        %5186 = vmatpush2.msra.mxu0 0.0
        %5187 = vmatprep.subr.mxu0 0.0
        %5188 = vmatpush2.msra.mxu0 0.0
        %5189 = vmatprep.subr.mxu0 0.0
        %5190 = vmatpush2.msra.mxu0 0.0
        %5191 = vmatprep.subr.mxu0 0.0
        %5192 = vmatpush2.msra.mxu0 0.0
        %5193 = vmatprep.subr.mxu0 0.0
        %5194 = vmatpush2.msra.mxu0 0.0
        %5195 = vmatprep.subr.mxu0 0.0
        %5196 = vmatpush2.msra.mxu0 0.0
        %5197 = vmatprep.subr.mxu0 0.0
        %5198 = vmatpush2.msra.mxu0 0.0
        %5199 = vmatprep.subr.mxu0 0.0
        %5200 = vmatpush2.msra.mxu0 0.0
        %5201 = vmatprep.subr.mxu0 0.0
        %5202 = vmatpush2.msra.mxu0 0.0
        %5203 = vmatprep.subr.mxu0 0.0
        %5204 = vmatpush2.msra.mxu0 0.0
        %5205 = vmatprep.subr.mxu0 0.0
        %5206 = vmatpush2.msra.mxu0 0.0
        %5207 = vmatprep.mubr.f32.mxu0 0.0
        %5208 = vmatmul.mubr.f32.gmra.mxu0 %v5141
        %v5209 = vpop.f32.mrf.mxu0
        %v5210 = vadd.f32 0.0, %v5209
        %v5211 = vpop.f32.mrf.mxu0
        %5212 = vdwg.mxu0
        %v5214 = vsel %vm2222, %v4985, 0
        %5216 = vmatprep.subr.mxu0 0.0
        %5217 = vmatpush1.msra.mxu0 0.0
        %5218 = vmatprep.subr.mxu0 0.0
        %5219 = vmatpush1.msra.mxu0 0.0
        %5220 = vmatprep.subr.mxu0 0.0
        %5221 = vmatpush1.msra.mxu0 0.0
        %5222 = vmatprep.subr.mxu0 0.0
        %5223 = vmatpush1.msra.mxu0 0.0
        %5224 = vmatprep.subr.mxu0 0.0
        %5225 = vmatpush1.msra.mxu0 0.0
        %5226 = vmatprep.subr.mxu0 0.0
        %5227 = vmatpush1.msra.mxu0 0.0
        %5228 = vmatprep.subr.mxu0 0.0
        %5229 = vmatpush1.msra.mxu0 0.0
        %5230 = vmatprep.subr.mxu0 0.0
        %5231 = vmatpush1.msra.mxu0 0.0
        %5232 = vmatprep.subr.mxu0 0.0
        %5233 = vmatpush1.msra.mxu0 0.0
        %5234 = vmatprep.subr.mxu0 0.0
        %5235 = vmatpush1.msra.mxu0 0.0
        %5236 = vmatprep.subr.mxu0 0.0
        %5237 = vmatpush1.msra.mxu0 0.0
        %5238 = vmatprep.subr.mxu0 0.0
        %5239 = vmatpush1.msra.mxu0 0.0
        %5240 = vmatprep.subr.mxu0 0.0
        %5241 = vmatpush1.msra.mxu0 0.0
        %5242 = vmatprep.subr.mxu0 0.0
        %5243 = vmatpush1.msra.mxu0 0.0
        %5244 = vmatprep.subr.mxu0 0.0
        %5245 = vmatpush1.msra.mxu0 0.0
        %5246 = vmatprep.subr.mxu0 0.0
        %5247 = vmatpush1.msra.mxu0 %v4285
        %5248 = vmatprep.subr.mxu0 0.0
        %5249 = vmatpush2.msra.mxu0 0.0
        %5250 = vmatprep.subr.mxu0 0.0
        %5251 = vmatpush2.msra.mxu0 0.0
        %5252 = vmatprep.subr.mxu0 0.0
        %5253 = vmatpush2.msra.mxu0 0.0
        %5254 = vmatprep.subr.mxu0 0.0
        %5255 = vmatpush2.msra.mxu0 0.0
        %5256 = vmatprep.subr.mxu0 0.0
        %5257 = vmatpush2.msra.mxu0 0.0
        %5258 = vmatprep.subr.mxu0 0.0
        %5259 = vmatpush2.msra.mxu0 0.0
        %5260 = vmatprep.subr.mxu0 0.0
        %5261 = vmatpush2.msra.mxu0 0.0
        %5262 = vmatprep.subr.mxu0 0.0
        %5263 = vmatpush2.msra.mxu0 0.0
        %5264 = vmatprep.subr.mxu0 0.0
        %5265 = vmatpush2.msra.mxu0 0.0
        %5266 = vmatprep.subr.mxu0 0.0
        %5267 = vmatpush2.msra.mxu0 0.0
        %5268 = vmatprep.subr.mxu0 0.0
        %5269 = vmatpush2.msra.mxu0 0.0
        %5270 = vmatprep.subr.mxu0 0.0
        %5271 = vmatpush2.msra.mxu0 0.0
        %5272 = vmatprep.subr.mxu0 0.0
        %5273 = vmatpush2.msra.mxu0 0.0
        %5274 = vmatprep.subr.mxu0 0.0
        %5275 = vmatpush2.msra.mxu0 0.0
        %5276 = vmatprep.subr.mxu0 0.0
        %5277 = vmatpush2.msra.mxu0 0.0
        %5278 = vmatprep.subr.mxu0 0.0
        %5279 = vmatpush2.msra.mxu0 0.0
        %5280 = vmatprep.mubr.f32.mxu0 0.0
        %5281 = vmatmul.mubr.f32.gmra.mxu0 %v5214
        %v5282 = vpop.f32.mrf.mxu0
        %v5283 = vadd.f32 0.0, %v5282
        %v5284 = vpop.f32.mrf.mxu0
        %5285 = vdwg.mxu0
        %v5287 = vsel %vm2222, %v4987, 0
        %5289 = vmatprep.subr.mxu0 0.0
        %5290 = vmatpush1.msra.mxu0 0.0
        %5291 = vmatprep.subr.mxu0 0.0
        %5292 = vmatpush1.msra.mxu0 0.0
        %5293 = vmatprep.subr.mxu0 0.0
        %5294 = vmatpush1.msra.mxu0 0.0
        %5295 = vmatprep.subr.mxu0 0.0
        %5296 = vmatpush1.msra.mxu0 0.0
        %5297 = vmatprep.subr.mxu0 0.0
        %5298 = vmatpush1.msra.mxu0 0.0
        %5299 = vmatprep.subr.mxu0 0.0
        %5300 = vmatpush1.msra.mxu0 0.0
        %5301 = vmatprep.subr.mxu0 0.0
        %5302 = vmatpush1.msra.mxu0 0.0
        %5303 = vmatprep.subr.mxu0 0.0
        %5304 = vmatpush1.msra.mxu0 0.0
        %5305 = vmatprep.subr.mxu0 0.0
        %5306 = vmatpush1.msra.mxu0 0.0
        %5307 = vmatprep.subr.mxu0 0.0
        %5308 = vmatpush1.msra.mxu0 0.0
        %5309 = vmatprep.subr.mxu0 0.0
        %5310 = vmatpush1.msra.mxu0 0.0
        %5311 = vmatprep.subr.mxu0 0.0
        %5312 = vmatpush1.msra.mxu0 0.0
        %5313 = vmatprep.subr.mxu0 0.0
        %5314 = vmatpush1.msra.mxu0 0.0
        %5315 = vmatprep.subr.mxu0 0.0
        %5316 = vmatpush1.msra.mxu0 0.0
        %5317 = vmatprep.subr.mxu0 0.0
        %5318 = vmatpush1.msra.mxu0 0.0
        %5319 = vmatprep.subr.mxu0 0.0
        %5320 = vmatpush1.msra.mxu0 %v4286
        %5321 = vmatprep.subr.mxu0 0.0
        %5322 = vmatpush2.msra.mxu0 0.0
        %5323 = vmatprep.subr.mxu0 0.0
        %5324 = vmatpush2.msra.mxu0 0.0
        %5325 = vmatprep.subr.mxu0 0.0
        %5326 = vmatpush2.msra.mxu0 0.0
        %5327 = vmatprep.subr.mxu0 0.0
        %5328 = vmatpush2.msra.mxu0 0.0
        %5329 = vmatprep.subr.mxu0 0.0
        %5330 = vmatpush2.msra.mxu0 0.0
        %5331 = vmatprep.subr.mxu0 0.0
        %5332 = vmatpush2.msra.mxu0 0.0
        %5333 = vmatprep.subr.mxu0 0.0
        %5334 = vmatpush2.msra.mxu0 0.0
        %5335 = vmatprep.subr.mxu0 0.0
        %5336 = vmatpush2.msra.mxu0 0.0
        %5337 = vmatprep.subr.mxu0 0.0
        %5338 = vmatpush2.msra.mxu0 0.0
        %5339 = vmatprep.subr.mxu0 0.0
        %5340 = vmatpush2.msra.mxu0 0.0
        %5341 = vmatprep.subr.mxu0 0.0
        %5342 = vmatpush2.msra.mxu0 0.0
        %5343 = vmatprep.subr.mxu0 0.0
        %5344 = vmatpush2.msra.mxu0 0.0
        %5345 = vmatprep.subr.mxu0 0.0
        %5346 = vmatpush2.msra.mxu0 0.0
        %5347 = vmatprep.subr.mxu0 0.0
        %5348 = vmatpush2.msra.mxu0 0.0
        %5349 = vmatprep.subr.mxu0 0.0
        %5350 = vmatpush2.msra.mxu0 0.0
        %5351 = vmatprep.subr.mxu0 0.0
        %5352 = vmatpush2.msra.mxu0 0.0
        %5353 = vmatprep.mubr.f32.mxu0 0.0
        %5354 = vmatmul.mubr.f32.gmra.mxu0 %v5287
        %v5355 = vpop.f32.mrf.mxu0
        %v5356 = vadd.f32 0.0, %v5355
        %v5357 = vpop.f32.mrf.mxu0
        %5358 = vdwg.mxu0
        %v5360 = vsel %vm2222, %v4989, 0
        %5362 = vmatprep.subr.mxu0 0.0
        %5363 = vmatpush1.msra.mxu0 0.0
        %5364 = vmatprep.subr.mxu0 0.0
        %5365 = vmatpush1.msra.mxu0 0.0
        %5366 = vmatprep.subr.mxu0 0.0
        %5367 = vmatpush1.msra.mxu0 0.0
        %5368 = vmatprep.subr.mxu0 0.0
        %5369 = vmatpush1.msra.mxu0 0.0
        %5370 = vmatprep.subr.mxu0 0.0
        %5371 = vmatpush1.msra.mxu0 0.0
        %5372 = vmatprep.subr.mxu0 0.0
        %5373 = vmatpush1.msra.mxu0 0.0
        %5374 = vmatprep.subr.mxu0 0.0
        %5375 = vmatpush1.msra.mxu0 0.0
        %5376 = vmatprep.subr.mxu0 0.0
        %5377 = vmatpush1.msra.mxu0 0.0
        %5378 = vmatprep.subr.mxu0 0.0
        %5379 = vmatpush1.msra.mxu0 0.0
        %5380 = vmatprep.subr.mxu0 0.0
        %5381 = vmatpush1.msra.mxu0 0.0
        %5382 = vmatprep.subr.mxu0 0.0
        %5383 = vmatpush1.msra.mxu0 0.0
        %5384 = vmatprep.subr.mxu0 0.0
        %5385 = vmatpush1.msra.mxu0 0.0
        %5386 = vmatprep.subr.mxu0 0.0
        %5387 = vmatpush1.msra.mxu0 0.0
        %5388 = vmatprep.subr.mxu0 0.0
        %5389 = vmatpush1.msra.mxu0 0.0
        %5390 = vmatprep.subr.mxu0 0.0
        %5391 = vmatpush1.msra.mxu0 0.0
        %5392 = vmatprep.subr.mxu0 0.0
        %5393 = vmatpush1.msra.mxu0 %v4287
        %5394 = vmatprep.subr.mxu0 0.0
        %5395 = vmatpush2.msra.mxu0 0.0
        %5396 = vmatprep.subr.mxu0 0.0
        %5397 = vmatpush2.msra.mxu0 0.0
        %5398 = vmatprep.subr.mxu0 0.0
        %5399 = vmatpush2.msra.mxu0 0.0
        %5400 = vmatprep.subr.mxu0 0.0
        %5401 = vmatpush2.msra.mxu0 0.0
        %5402 = vmatprep.subr.mxu0 0.0
        %5403 = vmatpush2.msra.mxu0 0.0
        %5404 = vmatprep.subr.mxu0 0.0
        %5405 = vmatpush2.msra.mxu0 0.0
        %5406 = vmatprep.subr.mxu0 0.0
        %5407 = vmatpush2.msra.mxu0 0.0
        %5408 = vmatprep.subr.mxu0 0.0
        %5409 = vmatpush2.msra.mxu0 0.0
        %5410 = vmatprep.subr.mxu0 0.0
        %5411 = vmatpush2.msra.mxu0 0.0
        %5412 = vmatprep.subr.mxu0 0.0
        %5413 = vmatpush2.msra.mxu0 0.0
        %5414 = vmatprep.subr.mxu0 0.0
        %5415 = vmatpush2.msra.mxu0 0.0
        %5416 = vmatprep.subr.mxu0 0.0
        %5417 = vmatpush2.msra.mxu0 0.0
        %5418 = vmatprep.subr.mxu0 0.0
        %5419 = vmatpush2.msra.mxu0 0.0
        %5420 = vmatprep.subr.mxu0 0.0
        %5421 = vmatpush2.msra.mxu0 0.0
        %5422 = vmatprep.subr.mxu0 0.0
        %5423 = vmatpush2.msra.mxu0 0.0
        %5424 = vmatprep.subr.mxu0 0.0
        %5425 = vmatpush2.msra.mxu0 0.0
        %5426 = vmatprep.mubr.f32.mxu0 0.0
        %5427 = vmatmul.mubr.f32.gmra.mxu0 %v5360
        %v5428 = vpop.f32.mrf.mxu0
        %v5429 = vadd.f32 0.0, %v5428
        %v5430 = vpop.f32.mrf.mxu0
        %5431 = vdwg.mxu0
        %v5433 = vsel %vm2222, %v4991, 0
        %5435 = vmatprep.subr.mxu0 0.0
        %5436 = vmatpush1.msra.mxu0 0.0
        %5437 = vmatprep.subr.mxu0 0.0
        %5438 = vmatpush1.msra.mxu0 0.0
        %5439 = vmatprep.subr.mxu0 0.0
        %5440 = vmatpush1.msra.mxu0 0.0
        %5441 = vmatprep.subr.mxu0 0.0
        %5442 = vmatpush1.msra.mxu0 0.0
        %5443 = vmatprep.subr.mxu0 0.0
        %5444 = vmatpush1.msra.mxu0 0.0
        %5445 = vmatprep.subr.mxu0 0.0
        %5446 = vmatpush1.msra.mxu0 0.0
        %5447 = vmatprep.subr.mxu0 0.0
        %5448 = vmatpush1.msra.mxu0 0.0
        %5449 = vmatprep.subr.mxu0 0.0
        %5450 = vmatpush1.msra.mxu0 0.0
        %5451 = vmatprep.subr.mxu0 0.0
        %5452 = vmatpush1.msra.mxu0 0.0
        %5453 = vmatprep.subr.mxu0 0.0
        %5454 = vmatpush1.msra.mxu0 0.0
        %5455 = vmatprep.subr.mxu0 0.0
        %5456 = vmatpush1.msra.mxu0 0.0
        %5457 = vmatprep.subr.mxu0 0.0
        %5458 = vmatpush1.msra.mxu0 0.0
        %5459 = vmatprep.subr.mxu0 0.0
        %5460 = vmatpush1.msra.mxu0 0.0
        %5461 = vmatprep.subr.mxu0 0.0
        %5462 = vmatpush1.msra.mxu0 0.0
        %5463 = vmatprep.subr.mxu0 0.0
        %5464 = vmatpush1.msra.mxu0 0.0
        %5465 = vmatprep.subr.mxu0 0.0
        %5466 = vmatpush1.msra.mxu0 %v4288
        %5467 = vmatprep.subr.mxu0 0.0
        %5468 = vmatpush2.msra.mxu0 0.0
        %5469 = vmatprep.subr.mxu0 0.0
        %5470 = vmatpush2.msra.mxu0 0.0
        %5471 = vmatprep.subr.mxu0 0.0
        %5472 = vmatpush2.msra.mxu0 0.0
        %5473 = vmatprep.subr.mxu0 0.0
        %5474 = vmatpush2.msra.mxu0 0.0
        %5475 = vmatprep.subr.mxu0 0.0
        %5476 = vmatpush2.msra.mxu0 0.0
        %5477 = vmatprep.subr.mxu0 0.0
        %5478 = vmatpush2.msra.mxu0 0.0
        %5479 = vmatprep.subr.mxu0 0.0
        %5480 = vmatpush2.msra.mxu0 0.0
        %5481 = vmatprep.subr.mxu0 0.0
        %5482 = vmatpush2.msra.mxu0 0.0
        %5483 = vmatprep.subr.mxu0 0.0
        %5484 = vmatpush2.msra.mxu0 0.0
        %5485 = vmatprep.subr.mxu0 0.0
        %5486 = vmatpush2.msra.mxu0 0.0
        %5487 = vmatprep.subr.mxu0 0.0
        %5488 = vmatpush2.msra.mxu0 0.0
        %5489 = vmatprep.subr.mxu0 0.0
        %5490 = vmatpush2.msra.mxu0 0.0
        %5491 = vmatprep.subr.mxu0 0.0
        %5492 = vmatpush2.msra.mxu0 0.0
        %5493 = vmatprep.subr.mxu0 0.0
        %5494 = vmatpush2.msra.mxu0 0.0
        %5495 = vmatprep.subr.mxu0 0.0
        %5496 = vmatpush2.msra.mxu0 0.0
        %5497 = vmatprep.subr.mxu0 0.0
        %5498 = vmatpush2.msra.mxu0 0.0
        %5499 = vmatprep.mubr.f32.mxu0 0.0
        %5500 = vmatmul.mubr.f32.gmra.mxu0 %v5433
        %v5501 = vpop.f32.mrf.mxu0
        %v5502 = vadd.f32 0.0, %v5501
        %v5503 = vpop.f32.mrf.mxu0
        %5504 = vdwg.mxu0
        %v5506 = vsel %vm2222, %v4993, 0
        %5508 = vmatprep.subr.mxu0 0.0
        %5509 = vmatpush1.msra.mxu0 0.0
        %5510 = vmatprep.subr.mxu0 0.0
        %5511 = vmatpush1.msra.mxu0 0.0
        %5512 = vmatprep.subr.mxu0 0.0
        %5513 = vmatpush1.msra.mxu0 0.0
        %5514 = vmatprep.subr.mxu0 0.0
        %5515 = vmatpush1.msra.mxu0 0.0
        %5516 = vmatprep.subr.mxu0 0.0
        %5517 = vmatpush1.msra.mxu0 0.0
        %5518 = vmatprep.subr.mxu0 0.0
        %5519 = vmatpush1.msra.mxu0 0.0
        %5520 = vmatprep.subr.mxu0 0.0
        %5521 = vmatpush1.msra.mxu0 0.0
        %5522 = vmatprep.subr.mxu0 0.0
        %5523 = vmatpush1.msra.mxu0 0.0
        %5524 = vmatprep.subr.mxu0 0.0
        %5525 = vmatpush1.msra.mxu0 0.0
        %5526 = vmatprep.subr.mxu0 0.0
        %5527 = vmatpush1.msra.mxu0 0.0
        %5528 = vmatprep.subr.mxu0 0.0
        %5529 = vmatpush1.msra.mxu0 0.0
        %5530 = vmatprep.subr.mxu0 0.0
        %5531 = vmatpush1.msra.mxu0 0.0
        %5532 = vmatprep.subr.mxu0 0.0
        %5533 = vmatpush1.msra.mxu0 0.0
        %5534 = vmatprep.subr.mxu0 0.0
        %5535 = vmatpush1.msra.mxu0 0.0
        %5536 = vmatprep.subr.mxu0 0.0
        %5537 = vmatpush1.msra.mxu0 0.0
        %5538 = vmatprep.subr.mxu0 0.0
        %5539 = vmatpush1.msra.mxu0 %v4289
        %5540 = vmatprep.subr.mxu0 0.0
        %5541 = vmatpush2.msra.mxu0 0.0
        %5542 = vmatprep.subr.mxu0 0.0
        %5543 = vmatpush2.msra.mxu0 0.0
        %5544 = vmatprep.subr.mxu0 0.0
        %5545 = vmatpush2.msra.mxu0 0.0
        %5546 = vmatprep.subr.mxu0 0.0
        %5547 = vmatpush2.msra.mxu0 0.0
        %5548 = vmatprep.subr.mxu0 0.0
        %5549 = vmatpush2.msra.mxu0 0.0
        %5550 = vmatprep.subr.mxu0 0.0
        %5551 = vmatpush2.msra.mxu0 0.0
        %5552 = vmatprep.subr.mxu0 0.0
        %5553 = vmatpush2.msra.mxu0 0.0
        %5554 = vmatprep.subr.mxu0 0.0
        %5555 = vmatpush2.msra.mxu0 0.0
        %5556 = vmatprep.subr.mxu0 0.0
        %5557 = vmatpush2.msra.mxu0 0.0
        %5558 = vmatprep.subr.mxu0 0.0
        %5559 = vmatpush2.msra.mxu0 0.0
        %5560 = vmatprep.subr.mxu0 0.0
        %5561 = vmatpush2.msra.mxu0 0.0
        %5562 = vmatprep.subr.mxu0 0.0
        %5563 = vmatpush2.msra.mxu0 0.0
        %5564 = vmatprep.subr.mxu0 0.0
        %5565 = vmatpush2.msra.mxu0 0.0
        %5566 = vmatprep.subr.mxu0 0.0
        %5567 = vmatpush2.msra.mxu0 0.0
        %5568 = vmatprep.subr.mxu0 0.0
        %5569 = vmatpush2.msra.mxu0 0.0
        %5570 = vmatprep.subr.mxu0 0.0
        %5571 = vmatpush2.msra.mxu0 0.0
        %5572 = vmatprep.mubr.f32.mxu0 0.0
        %5573 = vmatmul.mubr.f32.gmra.mxu0 %v5506
        %v5574 = vpop.f32.mrf.mxu0
        %v5575 = vadd.f32 0.0, %v5574
        %v5576 = vpop.f32.mrf.mxu0
        %5577 = vdwg.mxu0
        %v5578 = vcombine.low %v5064, %v5210
        %v5579 = vcombine.high %v5064, %v5210
        %v5581 = vunpack.c.l.s4 1983009808
        %v5582 = vunpack.c.0.s8 %v5581
        %v5583 = vlaneseq
        %v5584 = vshrl.u32 %v5583, 7
        %v5585 = vsub.s32 %v5582, %v5584
        %v5586 = vrot.slane %v5578, %v5585
        %v5588 = vunpack.c.l.s4 1983009808
        %v5589 = vunpack.c.0.s8 %v5588
        %v5590 = vlaneseq
        %v5591 = vshrl.u32 %v5590, 7
        %v5592 = vsub.s32 %v5589, %v5591
        %v5593 = vrot.slane %v5579, %v5592
        %v5594 = vcombine.low %v5137, %v5283
        %v5595 = vcombine.high %v5137, %v5283
        %v5597 = vunpack.c.l.s4 1983009808
        %v5598 = vunpack.c.0.s8 %v5597
        %v5599 = vlaneseq
        %v5600 = vshrl.u32 %v5599, 7
        %v5601 = vsub.s32 %v5598, %v5600
        %v5602 = vrot.slane %v5594, %v5601
        %v5604 = vunpack.c.l.s4 1983009808
        %v5605 = vunpack.c.0.s8 %v5604
        %v5606 = vlaneseq
        %v5607 = vshrl.u32 %v5606, 7
        %v5608 = vsub.s32 %v5605, %v5607
        %v5609 = vrot.slane %v5595, %v5608
        %v5610 = vcombine.low %v5356, %v5502
        %v5611 = vcombine.high %v5356, %v5502
        %v5613 = vunpack.c.l.s4 1983009808
        %v5614 = vunpack.c.0.s8 %v5613
        %v5615 = vlaneseq
        %v5616 = vshrl.u32 %v5615, 7
        %v5617 = vsub.s32 %v5614, %v5616
        %v5618 = vrot.slane %v5610, %v5617
        %v5620 = vunpack.c.l.s4 1983009808
        %v5621 = vunpack.c.0.s8 %v5620
        %v5622 = vlaneseq
        %v5623 = vshrl.u32 %v5622, 7
        %v5624 = vsub.s32 %v5621, %v5623
        %v5625 = vrot.slane %v5611, %v5624
        %v5626 = vcombine.low %v5429, %v5575
        %v5627 = vcombine.high %v5429, %v5575
        %v5629 = vunpack.c.l.s4 1983009808
        %v5630 = vunpack.c.0.s8 %v5629
        %v5631 = vlaneseq
        %v5632 = vshrl.u32 %v5631, 7
        %v5633 = vsub.s32 %v5630, %v5632
        %v5634 = vrot.slane %v5626, %v5633
        %v5636 = vunpack.c.l.s4 1983009808
        %v5637 = vunpack.c.0.s8 %v5636
        %v5638 = vlaneseq
        %v5639 = vshrl.u32 %v5638, 7
        %v5640 = vsub.s32 %v5637, %v5639
        %v5641 = vrot.slane %v5627, %v5640
        %v5642 = vcombine.low %v5586, %v5602
        %v5643 = vcombine.high %v5586, %v5602
        %v5645 = vunpack.c.l.s4 1934713408
        %v5646 = vunpack.c.0.s8 %v5645
        %v5647 = vlaneseq
        %v5648 = vshrl.u32 %v5647, 7
        %v5649 = vsub.s32 %v5646, %v5648
        %v5650 = vrot.slane %v5642, %v5649
        %v5652 = vunpack.c.l.s4 1934713408
        %v5653 = vunpack.c.0.s8 %v5652
        %v5654 = vlaneseq
        %v5655 = vshrl.u32 %v5654, 7
        %v5656 = vsub.s32 %v5653, %v5655
        %v5657 = vrot.slane %v5643, %v5656
        %v5658 = vcombine.low %v5593, %v5609
        %v5659 = vcombine.high %v5593, %v5609
        %v5661 = vunpack.c.l.s4 1934713408
        %v5662 = vunpack.c.0.s8 %v5661
        %v5663 = vlaneseq
        %v5664 = vshrl.u32 %v5663, 7
        %v5665 = vsub.s32 %v5662, %v5664
        %v5666 = vrot.slane %v5658, %v5665
        %v5668 = vunpack.c.l.s4 1934713408
        %v5669 = vunpack.c.0.s8 %v5668
        %v5670 = vlaneseq
        %v5671 = vshrl.u32 %v5670, 7
        %v5672 = vsub.s32 %v5669, %v5671
        %v5673 = vrot.slane %v5659, %v5672
        %v5674 = vcombine.low %v5618, %v5634
        %v5675 = vcombine.high %v5618, %v5634
        %v5677 = vunpack.c.l.s4 1934713408
        %v5678 = vunpack.c.0.s8 %v5677
        %v5679 = vlaneseq
        %v5680 = vshrl.u32 %v5679, 7
        %v5681 = vsub.s32 %v5678, %v5680
        %v5682 = vrot.slane %v5674, %v5681
        %v5684 = vunpack.c.l.s4 1934713408
        %v5685 = vunpack.c.0.s8 %v5684
        %v5686 = vlaneseq
        %v5687 = vshrl.u32 %v5686, 7
        %v5688 = vsub.s32 %v5685, %v5687
        %v5689 = vrot.slane %v5675, %v5688
        %v5690 = vcombine.low %v5625, %v5641
        %v5691 = vcombine.high %v5625, %v5641
        %v5693 = vunpack.c.l.s4 1934713408
        %v5694 = vunpack.c.0.s8 %v5693
        %v5695 = vlaneseq
        %v5696 = vshrl.u32 %v5695, 7
        %v5697 = vsub.s32 %v5694, %v5696
        %v5698 = vrot.slane %v5690, %v5697
        %v5700 = vunpack.c.l.s4 1934713408
        %v5701 = vunpack.c.0.s8 %v5700
        %v5702 = vlaneseq
        %v5703 = vshrl.u32 %v5702, 7
        %v5704 = vsub.s32 %v5701, %v5703
        %v5705 = vrot.slane %v5691, %v5704
        %v5706 = vcombine.low %v5650, %v5682
        %v5707 = vcombine.high %v5650, %v5682
        %v5708 = vcombine.low %v5657, %v5689
        %v5709 = vcombine.high %v5657, %v5689
        %v5710 = vcombine.low %v5666, %v5698
        %v5711 = vcombine.high %v5666, %v5698
        %v5712 = vcombine.low %v5673, %v5705
        %v5713 = vcombine.high %v5673, %v5705
        %v5714 = vcombine.low %v5706, %v5708
        %v5715 = vcombine.high %v5706, %v5708
        %v5717 = vunpack.c.l.s4 1983009808
        %v5718 = vunpack.c.0.s8 %v5717
        %v5719 = vlaneseq
        %v5720 = vshrl.u32 %v5719, 7
        %v5721 = vsub.s32 %v5718, %v5720
        %v5722 = vrot.slane %v5714, %v5721
        %v5724 = vunpack.c.l.s4 1983009808
        %v5725 = vunpack.c.0.s8 %v5724
        %v5726 = vlaneseq
        %v5727 = vshrl.u32 %v5726, 7
        %v5728 = vsub.s32 %v5725, %v5727
        %v5729 = vrot.slane %v5715, %v5728
        %v5730 = vcombine.low %v5707, %v5709
        %v5731 = vcombine.high %v5707, %v5709
        %v5733 = vunpack.c.l.s4 1983009808
        %v5734 = vunpack.c.0.s8 %v5733
        %v5735 = vlaneseq
        %v5736 = vshrl.u32 %v5735, 7
        %v5737 = vsub.s32 %v5734, %v5736
        %v5738 = vrot.slane %v5730, %v5737
        %v5740 = vunpack.c.l.s4 1983009808
        %v5741 = vunpack.c.0.s8 %v5740
        %v5742 = vlaneseq
        %v5743 = vshrl.u32 %v5742, 7
        %v5744 = vsub.s32 %v5741, %v5743
        %v5745 = vrot.slane %v5731, %v5744
        %v5746 = vcombine.low %v5710, %v5712
        %v5747 = vcombine.high %v5710, %v5712
        %v5749 = vunpack.c.l.s4 1983009808
        %v5750 = vunpack.c.0.s8 %v5749
        %v5751 = vlaneseq
        %v5752 = vshrl.u32 %v5751, 7
        %v5753 = vsub.s32 %v5750, %v5752
        %v5754 = vrot.slane %v5746, %v5753
        %v5756 = vunpack.c.l.s4 1983009808
        %v5757 = vunpack.c.0.s8 %v5756
        %v5758 = vlaneseq
        %v5759 = vshrl.u32 %v5758, 7
        %v5760 = vsub.s32 %v5757, %v5759
        %v5761 = vrot.slane %v5747, %v5760
        %v5762 = vcombine.low %v5711, %v5713
        %v5763 = vcombine.high %v5711, %v5713
        %v5765 = vunpack.c.l.s4 1983009808
        %v5766 = vunpack.c.0.s8 %v5765
        %v5767 = vlaneseq
        %v5768 = vshrl.u32 %v5767, 7
        %v5769 = vsub.s32 %v5766, %v5768
        %v5770 = vrot.slane %v5762, %v5769
        %v5772 = vunpack.c.l.s4 1983009808
        %v5773 = vunpack.c.0.s8 %v5772
        %v5774 = vlaneseq
        %v5775 = vshrl.u32 %v5774, 7
        %v5776 = vsub.s32 %v5773, %v5775
        %v5777 = vrot.slane %v5763, %v5776
        %v5778 = vcombine.low %v5722, %v5738
        %v5779 = vcombine.high %v5722, %v5738
        %v5781 = vunpack.c.l.s4 1934713408
        %v5782 = vunpack.c.0.s8 %v5781
        %v5783 = vlaneseq
        %v5784 = vshrl.u32 %v5783, 7
        %v5785 = vsub.s32 %v5782, %v5784
        %v5786 = vrot.slane %v5778, %v5785
        %v5788 = vunpack.c.l.s4 1934713408
        %v5789 = vunpack.c.0.s8 %v5788
        %v5790 = vlaneseq
        %v5791 = vshrl.u32 %v5790, 7
        %v5792 = vsub.s32 %v5789, %v5791
        %v5793 = vrot.slane %v5779, %v5792
        %v5794 = vcombine.low %v5729, %v5745
        %v5795 = vcombine.high %v5729, %v5745
        %v5797 = vunpack.c.l.s4 1934713408
        %v5798 = vunpack.c.0.s8 %v5797
        %v5799 = vlaneseq
        %v5800 = vshrl.u32 %v5799, 7
        %v5801 = vsub.s32 %v5798, %v5800
        %v5802 = vrot.slane %v5794, %v5801
        %v5804 = vunpack.c.l.s4 1934713408
        %v5805 = vunpack.c.0.s8 %v5804
        %v5806 = vlaneseq
        %v5807 = vshrl.u32 %v5806, 7
        %v5808 = vsub.s32 %v5805, %v5807
        %v5809 = vrot.slane %v5795, %v5808
        %v5810 = vcombine.low %v5754, %v5770
        %v5811 = vcombine.high %v5754, %v5770
        %v5813 = vunpack.c.l.s4 1934713408
        %v5814 = vunpack.c.0.s8 %v5813
        %v5815 = vlaneseq
        %v5816 = vshrl.u32 %v5815, 7
        %v5817 = vsub.s32 %v5814, %v5816
        %v5818 = vrot.slane %v5810, %v5817
        %v5820 = vunpack.c.l.s4 1934713408
        %v5821 = vunpack.c.0.s8 %v5820
        %v5822 = vlaneseq
        %v5823 = vshrl.u32 %v5822, 7
        %v5824 = vsub.s32 %v5821, %v5823
        %v5825 = vrot.slane %v5811, %v5824
        %v5826 = vcombine.low %v5761, %v5777
        %v5827 = vcombine.high %v5761, %v5777
        %v5829 = vunpack.c.l.s4 1934713408
        %v5830 = vunpack.c.0.s8 %v5829
        %v5831 = vlaneseq
        %v5832 = vshrl.u32 %v5831, 7
        %v5833 = vsub.s32 %v5830, %v5832
        %v5834 = vrot.slane %v5826, %v5833
        %v5836 = vunpack.c.l.s4 1934713408
        %v5837 = vunpack.c.0.s8 %v5836
        %v5838 = vlaneseq
        %v5839 = vshrl.u32 %v5838, 7
        %v5840 = vsub.s32 %v5837, %v5839
        %v5841 = vrot.slane %v5827, %v5840
        %v5842 = vcombine.low %v5786, %v5818
        %v5843 = vcombine.high %v5786, %v5818
        %v5844 = vcombine.low %v5793, %v5825
        %v5845 = vcombine.high %v5793, %v5825
        %v5846 = vcombine.low %v5802, %v5834
        %v5847 = vcombine.high %v5802, %v5834
        %v5848 = vcombine.low %v5809, %v5841
        %v5849 = vcombine.high %v5809, %v5841
        %5851 = vrot.lane.b32.xlu0 %v5843, 4
        %v5852 = vpop.permute.xlu0 %5851
        %5855 = vrot.lane.b32.xlu0 %v5844, 8
        %v5856 = vpop.permute.xlu0 %5855
        %5859 = vrot.lane.b32.xlu0 %v5845, 12
        %v5860 = vpop.permute.xlu0 %5859
        %5863 = vrot.lane.b32.xlu0 %v5846, 16
        %v5864 = vpop.permute.xlu0 %5863
        %5867 = vrot.lane.b32.xlu0 %v5847, 20
        %v5868 = vpop.permute.xlu0 %5867
        %5871 = vrot.lane.b32.xlu0 %v5848, 24
        %v5872 = vpop.permute.xlu0 %5871
        %5875 = vrot.lane.b32.xlu0 %v5849, 28
        %v5876 = vpop.permute.xlu0 %5875
        %v5878 = vsel %vm1605, %v5842, %v5852
        %v5879 = vsel %vm2222, %v5878, %v5856
        %v5880 = vsel %vm3197, %v5879, %v5860
        %v5881 = vsel %vm3199, %v5880, %v5864
        %v5882 = vsel %vm3201, %v5881, %v5868
        %v5883 = vsel %vm3203, %v5882, %v5872
        %v5884 = vsel %vm3205, %v5883, %v5876
        %v5885 = vadd.f32 %v3237, %v5884
        %v5886 = vld [vmem:[%s12] sm:$0x1]
        %v5887 = vld [vmem:[%s13] sm:$0x1]
        %v5888 = vsel %vm645, %v5885, 0.0
        %5889 = vadd.xlane.f32.xlu0 %v5888
        %v5890 = vpop.xlane.xlu0 %5889
        %v5891 = vmul.f32 %v5890, %v3213
        %v5892 = vsub.f32 %v5885, %v5891
        %v5893 = vmul.f32 %v5892, %v5892
        %v5894 = vsel %vm645, %v5893, 0.0
        %5895 = vadd.xlane.f32.xlu0 %v5894
        %v5896 = vpop.xlane.xlu0 %5895
        %v5897 = vmul.f32 %v5896, %v3213
        %v5898 = vadd.f32 %v5897, 1e-05
        %v5899 = vrsqrt.pop %v5898
        %v5900 = vmul.f32 %v5892, %v5899
        %v5902 = vlaneseq
        %v5903 = vshrl.u32 %v5902, 7
        %v5904 = vsub.s32 0, %v5903
        %v5905 = vrot.slane %v5886, %v5904
        %v5907 = vmul.f32 %v5900, %v5905
        %v5909 = vlaneseq
        %v5910 = vshrl.u32 %v5909, 7
        %v5911 = vsub.s32 0, %v5910
        %v5912 = vrot.slane %v5887, %v5911
        %v5914 = vadd.f32 %v5907, %v5912
        %v5915 = vld [vmem:[#allocation11] sm:$0xff]
        %v5916 = vld [vmem:[#allocation11 + $0x8] sm:$0xff]
        %v5917 = vld [vmem:[#allocation11 + $0x10] sm:$0xff]
        %v5918 = vld [vmem:[#allocation11 + $0x18] sm:$0xff]
        %v5919 = vld [vmem:[%s9] sm:$0x1]
        %v5921 = vlaneseq
        %v5922 = vshrl.u32 %v5921, 7
        %v5923 = vsub.s32 0, %v5922
        %v5924 = vrot.slane %v5919, %v5923
        %v5927 = vsel %vm645, %v5914, 0
        %5929 = vmatprep.subr.mxu0 0.0
        %5930 = vmatpush1.msra.mxu0 0.0
        %5931 = vmatprep.subr.mxu0 0.0
        %5932 = vmatpush1.msra.mxu0 0.0
        %5933 = vmatprep.subr.mxu0 0.0
        %5934 = vmatpush1.msra.mxu0 0.0
        %5935 = vmatprep.subr.mxu0 0.0
        %5936 = vmatpush1.msra.mxu0 0.0
        %5937 = vmatprep.subr.mxu0 0.0
        %5938 = vmatpush1.msra.mxu0 0.0
        %5939 = vmatprep.subr.mxu0 0.0
        %5940 = vmatpush1.msra.mxu0 0.0
        %5941 = vmatprep.subr.mxu0 0.0
        %5942 = vmatpush1.msra.mxu0 0.0
        %5943 = vmatprep.subr.mxu0 0.0
        %5944 = vmatpush1.msra.mxu0 0.0
        %5945 = vmatprep.subr.mxu0 0.0
        %5946 = vmatpush1.msra.mxu0 0.0
        %5947 = vmatprep.subr.mxu0 0.0
        %5948 = vmatpush1.msra.mxu0 0.0
        %5949 = vmatprep.subr.mxu0 0.0
        %5950 = vmatpush1.msra.mxu0 0.0
        %5951 = vmatprep.subr.mxu0 0.0
        %5952 = vmatpush1.msra.mxu0 0.0
        %5953 = vmatprep.subr.mxu0 0.0
        %5954 = vmatpush1.msra.mxu0 %v5918
        %5955 = vmatprep.subr.mxu0 0.0
        %5956 = vmatpush1.msra.mxu0 %v5917
        %5957 = vmatprep.subr.mxu0 0.0
        %5958 = vmatpush1.msra.mxu0 %v5916
        %5959 = vmatprep.subr.mxu0 0.0
        %5960 = vmatpush1.msra.mxu0 %v5915
        %5961 = vmatprep.subr.mxu0 0.0
        %5962 = vmatpush2.msra.mxu0 0.0
        %5963 = vmatprep.subr.mxu0 0.0
        %5964 = vmatpush2.msra.mxu0 0.0
        %5965 = vmatprep.subr.mxu0 0.0
        %5966 = vmatpush2.msra.mxu0 0.0
        %5967 = vmatprep.subr.mxu0 0.0
        %5968 = vmatpush2.msra.mxu0 0.0
        %5969 = vmatprep.subr.mxu0 0.0
        %5970 = vmatpush2.msra.mxu0 0.0
        %5971 = vmatprep.subr.mxu0 0.0
        %5972 = vmatpush2.msra.mxu0 0.0
        %5973 = vmatprep.subr.mxu0 0.0
        %5974 = vmatpush2.msra.mxu0 0.0
        %5975 = vmatprep.subr.mxu0 0.0
        %5976 = vmatpush2.msra.mxu0 0.0
        %5977 = vmatprep.subr.mxu0 0.0
        %5978 = vmatpush2.msra.mxu0 0.0
        %5979 = vmatprep.subr.mxu0 0.0
        %5980 = vmatpush2.msra.mxu0 0.0
        %5981 = vmatprep.subr.mxu0 0.0
        %5982 = vmatpush2.msra.mxu0 0.0
        %5983 = vmatprep.subr.mxu0 0.0
        %5984 = vmatpush2.msra.mxu0 0.0
        %5985 = vmatprep.subr.mxu0 0.0
        %5986 = vmatpush2.msra.mxu0 0.0
        %5987 = vmatprep.subr.mxu0 0.0
        %5988 = vmatpush2.msra.mxu0 0.0
        %5989 = vmatprep.subr.mxu0 0.0
        %5990 = vmatpush2.msra.mxu0 0.0
        %5991 = vmatprep.subr.mxu0 0.0
        %5992 = vmatpush2.msra.mxu0 0.0
        %5993 = vmatprep.mubr.f32.mxu0 0.0
        %5994 = vmatmul.mubr.f32.gmra.mxu0 %v5927
        %v5995 = vpop.f32.mrf.mxu0
        %v5996 = vadd.f32 %v5924, %v5995
        %v5997 = vpop.f32.mrf.mxu0
        %5998 = vdwg.mxu0
        %v5999 = vadd.f32 %v5914, %v5996
        %v6000 = vld [vmem:[%s14] sm:$0x1]
        %v6001 = vld [vmem:[%s15] sm:$0x1]
        %v6002 = vsel %vm645, %v5999, 0.0
        %6003 = vadd.xlane.f32.xlu0 %v6002
        %v6004 = vpop.xlane.xlu0 %6003
        %v6005 = vmul.f32 %v6004, %v3213
        %v6006 = vsub.f32 %v5999, %v6005
        %v6007 = vmul.f32 %v6006, %v6006
        %v6008 = vsel %vm645, %v6007, 0.0
        %6009 = vadd.xlane.f32.xlu0 %v6008
        %v6010 = vpop.xlane.xlu0 %6009
        %v6011 = vmul.f32 %v6010, %v3213
        %v6012 = vadd.f32 %v6011, 1e-05
        %v6013 = vrsqrt.pop %v6012
        %v6014 = vmul.f32 %v6006, %v6013
        %v6016 = vlaneseq
        %v6017 = vshrl.u32 %v6016, 7
        %v6018 = vsub.s32 0, %v6017
        %v6019 = vrot.slane %v6000, %v6018
        %v6021 = vmul.f32 %v6014, %v6019
        %v6023 = vlaneseq
        %v6024 = vshrl.u32 %v6023, 7
        %v6025 = vsub.s32 0, %v6024
        %v6026 = vrot.slane %v6001, %v6025
        %v6028 = vadd.f32 %v6021, %v6026
        %6029 = vst.msk [vmem:[%s631] sm:$0xff] %vm645, %v6028
        %s6030 = sand.u32 %s392, 1
        %s6031 = scalar_lea.sflag [#allocation4], %s6030
        %s6032 = sand.u32 %s392, 1
        %s6033 = smul.addr %s6032, 8
        %s6034 = scalar_lea.vmem [#allocation13], %s6033
        // Predicated region
        $region109: #{tpu_custom_call.1} parent=83 // pred_check
          %p6035 = pneg %p402
        $region110: #{tpu_custom_call.1} parent=83 // pred_check_branch
          %6037 = sbr.rel (%p6035) target = $region112
        $region111: #{tpu_custom_call.1} parent=83 // pred_region
          %s6039 = ssub.s32 128, 128
          %6040 = vsyncadd %s6031, %s6039
          %s6041 = smul.addr %s38, 128
          %s6042 = scalar_lea.hbm %s16, %s6041
          %s6044 = sshll.u32 %s6034, 4
          %s6045 = int_to_ptr.vmem [resolvable:$true] %s6044
          %6047 = dma.vmem_to_hbm [thread:$0]  %s6045, 128, %s6042, %s6031
        $region112: #{tpu_custom_call.1} parent=83 // pred_fallthru
          _
      $region84: #{tpu_custom_call.1} parent=5 // pred_fallthru
        _
      %p6048 = scmp.le.s32.totalorder 2, %s33
      // Predicated region
      $region113: #{tpu_custom_call.1} parent=5 // pred_check
        %p6049 = pneg %p6048
      $region114: #{tpu_custom_call.1} parent=5 // pred_check_branch
        %6051 = sbr.rel (%p6049) target = $region116
      $region115: #{tpu_custom_call.1} parent=5 // pred_region
        %s6052 = ssub.s32 %s33, 2
        // Predicated region
        $region117: #{tpu_custom_call.1} parent=115 // pred_check
          %p6053 = pneg %p408
        $region118: #{tpu_custom_call.1} parent=115 // pred_check_branch
          %6055 = sbr.rel (%p6053) target = $region120
        $region119: #{tpu_custom_call.1} parent=115 // pred_region
          %s6056 = sand.u32 %s393, 1
          %s6057 = scalar_lea.sflag [#allocation4], %s6056
          %s6058 = sand.u32 %s393, 1
          %s6059 = smul.addr %s6058, 8
          %s6060 = scalar_lea.vmem [#allocation13], %s6059
          %6061 = dma.done %s6057, 128
        $region120: #{tpu_custom_call.1} parent=115 // pred_fallthru
          _
      $region116: #{tpu_custom_call.1} parent=5 // pred_fallthru
        _
    $region6: #{tpu_custom_call.1} parent=1 // loop_footer
      %s37 = sadd.s32 1, %s33
    $region7: #{tpu_custom_call.1} parent=1 // loop_footer_branch
      %32 = sbr.rel target = $region3
    $region8: #{tpu_custom_call.1} parent=1 // loop_exit
      _
    %6062 = vsyncpa [#allocation3], 1
    %s6063 = scalar_lea.sflag [#allocation3], 1
    %6064 = vsyncpa %s6063, 1
    %6065 = vsyncpa [#allocation6], 1
    %s6066 = scalar_lea.sflag [#allocation6], 1
    %6067 = vsyncpa %s6066, 1
    %6068 = vsyncpa [#allocation9], 1
    %6069 = vsyncpa [#allocation12], 1
    %6070 = vsyncpa [#allocation4], 1
    %s6071 = scalar_lea.sflag [#allocation4], 1
    %6072 = vsyncpa %s6071, 1

</llo_original>
